<compile_context>
chip_gen: v7x
topology: tpu7x:2x2x1
jax: 0.10.0
libtpu: 0.0.40
codegen_flags: <defaults>
</compile_context>

<pallas_src>
import functools

import jax
import jax.numpy as jnp
from jax.experimental import pallas as pl
from jax.experimental.pallas import tpu as pltpu

EPS = 1e-5


def conv_bn_add_kernel(x_ref, w_ref, gamma_ref, beta_ref, res_ref, o_ref):
    # x_ref:     [M, Cin]   full activation slab (all pixels, channels-last)
    # w_ref:     [Cin, TN]  conv-weight slice for this output-channel tile
    # gamma_ref: [1, TN]    BN scale (f32)
    # beta_ref:  [1, TN]    BN shift (f32)
    # res_ref:   [M, TN]    residual slice
    # o_ref:     [M, TN]    output slice (f32)
    x = x_ref[...]
    w = w_ref[...]

    # 1x1 conv == matmul on the MXU, accumulate in f32.
    y = jnp.dot(x, w, preferred_element_type=jnp.float32)  # [M, TN] f32

    # One-pass BN statistics over the batch (all M = N*H*W rows, per channel):
    #   mean = sum(y)/M, var = E[y^2] - mean^2  (biased, matches PyTorch train BN)
    m_rows = y.shape[0]
    inv_m = jnp.float32(1.0 / m_rows)
    mean = jnp.sum(y, axis=0, keepdims=True) * inv_m          # [1, TN]
    mean_sq = jnp.sum(y * y, axis=0, keepdims=True) * inv_m   # [1, TN]
    var = mean_sq - mean * mean
    inv_std = jax.lax.rsqrt(var + EPS)

    # Fold gamma*inv_std and mean into one scale/shift -> single FMA epilogue.
    scale = inv_std * gamma_ref[...]                          # [1, TN]
    shift = beta_ref[...] - mean * scale                      # [1, TN]

    o_ref[...] = y * scale + shift + res_ref[...].astype(jnp.float32)


def _pick_tile_n(cout):
    """Whole-Cout tile (grid=1) on single-TensorCore chips (v5e/v6e); split
    into two parallel channel tiles on v7x so both TensorCores get a step."""
    try:
        kind = jax.devices()[0].device_kind.lower()
    except Exception:
        kind = ""
    if "v7" in kind and cout % 256 == 0:
        return cout // 2
    return cout


@functools.partial(jax.jit, static_argnames=("tile_n", "use_bf16"))
def conv1x1_bn_add(x_nchw, w_oihw, gamma, beta, res_nchw, *, tile_n=None,
                   use_bf16=False):
    """x_nchw: [N, Cin, H, W], w_oihw: [Cout, Cin, 1, 1], res_nchw: [N, Cout, H, W]."""
    N, Cin, H, W = x_nchw.shape
    Cout = w_oihw.shape[0]
    M = N * H * W

    if tile_n is None:
        tile_n = _pick_tile_n(Cout)
    assert Cout % tile_n == 0 and tile_n % 128 == 0
    assert M % 8 == 0 and Cin % 128 == 0
    grid_n = Cout // tile_n

    # Layout glue stays inside the same jit as the kernel so XLA can fuse the
    # NCHW<->NHWC relayouts with neighbouring ops (biggest end-to-end lever).
    x_flat = jnp.transpose(x_nchw, (0, 2, 3, 1)).reshape(M, Cin)
    res_flat = jnp.transpose(res_nchw, (0, 2, 3, 1)).reshape(M, Cout)
    w_mat = jnp.transpose(w_oihw.reshape(Cout, Cin))          # [Cin, Cout]
    gamma2 = gamma.reshape(1, Cout).astype(jnp.float32)
    beta2 = beta.reshape(1, Cout).astype(jnp.float32)

    if use_bf16:
        # v6e/v7x option: halve HBM traffic of the large operands; BN math and
        # MXU accumulation stay in f32 inside the kernel. Skip on v5e.
        x_flat = x_flat.astype(jnp.bfloat16)
        res_flat = res_flat.astype(jnp.bfloat16)
        w_mat = w_mat.astype(jnp.bfloat16)

    in_size = x_flat.dtype.itemsize
    cost = pl.CostEstimate(
        flops=2 * M * Cin * Cout,
        transcendentals=0,
        bytes_accessed=(grid_n * M * Cin * in_size            # x slab per tile
                        + Cin * Cout * in_size                # weights
                        + M * Cout * res_flat.dtype.itemsize  # residual
                        + M * Cout * 4                        # f32 output
                        + 2 * Cout * 4),                      # gamma / beta
    )

    # TODO(synk): for very large M (real ResNet batch sizes) the full-M x slab
    # plus double buffering can exceed v7x's 64 MiB VMEM; that needs an M-tiled
    # two-pass BN (partial sum/sumsq in VMEM scratch + finalize pass). At the
    # module's M = N*H*W = 784 everything fits comfortably.
    out_flat = pl.pallas_call(
        conv_bn_add_kernel,
        out_shape=jax.ShapeDtypeStruct((M, Cout), jnp.float32),
        grid_spec=pltpu.PrefetchScalarGridSpec(
            num_scalar_prefetch=0,
            grid=(grid_n,),
            in_specs=[
                pl.BlockSpec((M, Cin), lambda j: (0, 0)),        # x (full slab)
                pl.BlockSpec((Cin, tile_n), lambda j: (0, j)),   # weight tile
                pl.BlockSpec((1, tile_n), lambda j: (0, j)),     # gamma tile
                pl.BlockSpec((1, tile_n), lambda j: (0, j)),     # beta tile
                pl.BlockSpec((M, tile_n), lambda j: (0, j)),     # residual tile
            ],
            out_specs=pl.BlockSpec((M, tile_n), lambda j: (0, j)),
        ),
        compiler_params=pltpu.CompilerParams(
            dimension_semantics=("parallel",),
            vmem_limit_bytes=32 * 1024 * 1024,
        ),
        cost_estimate=cost,
    )(x_flat, w_mat, gamma2, beta2, res_flat)

    # [M, Cout] -> NCHW (also inside the jit for fusion).
    return jnp.transpose(out_flat.reshape(N, H, W, Cout), (0, 3, 1, 2))


def reference(x_nchw, w_oihw, gamma, beta, res_nchw):
    # Plain-JAX reference (PyTorch training-mode BN: biased batch variance).
    N, Cin, H, W = x_nchw.shape
    Cout = w_oihw.shape[0]
    xf = jnp.transpose(x_nchw, (0, 2, 3, 1)).reshape(-1, Cin)
    y = xf @ w_oihw.reshape(Cout, Cin).T
    mean = y.mean(axis=0, keepdims=True)
    var = ((y - mean) ** 2).mean(axis=0, keepdims=True)
    yn = (y - mean) / jnp.sqrt(var + EPS) * gamma[None, :] + beta[None, :]
    out = yn + jnp.transpose(res_nchw, (0, 2, 3, 1)).reshape(-1, Cout)
    return jnp.transpose(out.reshape(N, H, W, Cout), (0, 3, 1, 2))


if __name__ == "__main__":
    # Shapes from the module: x104 [1,128,28,28], x98 [1,512,28,28]  (M = 784)
    N, Cin, Cout, H, W = 1, 128, 512, 28, 28

    key = jax.random.PRNGKey(0)
    k1, k2, k3 = jax.random.split(key, 3)

    x104 = jax.random.normal(k1, (N, Cin, H, W), dtype=jnp.float32)
    x98 = jax.random.normal(k2, (N, Cout, H, W), dtype=jnp.float32)

    # Conv weight random, BN affine params = PyTorch defaults (gamma=1, beta=0).
    w = jax.random.normal(k3, (Cout, Cin, 1, 1), dtype=jnp.float32) * 0.05
    gamma = jnp.ones((Cout,), dtype=jnp.float32)
    beta = jnp.zeros((Cout,), dtype=jnp.float32)

    # TODO(synk): PyTorch training-mode BN also updates running_mean/running_var
    # buffers; only the forward activation is produced here.
    out = conv1x1_bn_add(x104, w, gamma, beta, x98)
    out = jax.block_until_ready(out)

    ref = reference(x104, w, gamma, beta, x98)
    assert out.shape == (N, Cout, H, W)
    assert jnp.allclose(out, ref, atol=2e-4, rtol=2e-4), "mismatch vs reference"

    print("KERNEL_OK")
</pallas_src>

<mosaic_0001>
module attributes {stable_mosaic.version = 11 : i64} {
  func.func @conv_bn_add_kernel(%arg0: i32, %arg1: memref<784x128xf32, #tpu.memory_space<vmem>>, %arg2: memref<128x512xf32, #tpu.memory_space<vmem>>, %arg3: memref<1x512xf32, #tpu.memory_space<vmem>>, %arg4: memref<1x512xf32, #tpu.memory_space<vmem>>, %arg5: memref<784x512xf32, #tpu.memory_space<vmem>>, %arg6: memref<784x512xf32, #tpu.memory_space<vmem>>) attributes {dimension_semantics = [#tpu.dimension_semantics<parallel>], iteration_bounds = array<i64: 1>, scalar_prefetch = 0 : i64, scratch_operands = 0 : i64, tpu.core_type = #tpu.core_type<tc>, window_params = [{pipeline_mode = #tpu.pipeline_mode<synchronous>, transform_indices = @transform_0, window_bounds = array<i64: 784, 128>}, {transform_indices = @transform_1, window_bounds = array<i64: 128, 512>}, {transform_indices = @transform_2, window_bounds = array<i64: 1, 512>}, {transform_indices = @transform_3, window_bounds = array<i64: 1, 512>}, {transform_indices = @transform_4, window_bounds = array<i64: 784, 512>}, {transform_indices = @transform_5, window_bounds = array<i64: 784, 512>}]} {
    %c0 = arith.constant 0 : index
    %c0_0 = arith.constant 0 : index
    %0 = vector.load %arg1[%c0, %c0_0] : memref<784x128xf32, #tpu.memory_space<vmem>>, vector<784x128xf32>
    %c0_1 = arith.constant 0 : index
    %c0_2 = arith.constant 0 : index
    %1 = vector.load %arg2[%c0_1, %c0_2] : memref<128x512xf32, #tpu.memory_space<vmem>>, vector<128x512xf32>
    %cst = arith.constant dense<0.000000e+00> : vector<784x512xf32>
    %2 = tpu.matmul %0, %1, %cst {dimension_numbers = #tpu.dot_dimension_numbers<[1], [0], [0], [1], [0, 0, 1, 1], [], []>} : vector<784x128xf32>, vector<128x512xf32>, vector<784x512xf32> -> vector<784x512xf32>
    %cst_3 = arith.constant dense<0.000000e+00> : vector<512xf32>
    %3 = vector.multi_reduction <add>, %2, %cst_3 [0] : vector<784x512xf32> to vector<512xf32>
    %4 = vector.shape_cast %3 : vector<512xf32> to vector<1x512xf32>
    %cst_4 = arith.constant 0.00127551018 : f32
    %5 = vector.broadcast %cst_4 : f32 to vector<1x512xf32>
    %6 = arith.mulf %4, %5 : vector<1x512xf32>
    %7 = arith.mulf %2, %2 : vector<784x512xf32>
    %cst_5 = arith.constant dense<0.000000e+00> : vector<512xf32>
    %8 = vector.multi_reduction <add>, %7, %cst_5 [0] : vector<784x512xf32> to vector<512xf32>
    %9 = vector.shape_cast %8 : vector<512xf32> to vector<1x512xf32>
    %cst_6 = arith.constant 0.00127551018 : f32
    %10 = vector.broadcast %cst_6 : f32 to vector<1x512xf32>
    %11 = arith.mulf %9, %10 : vector<1x512xf32>
    %12 = arith.mulf %6, %6 : vector<1x512xf32>
    %13 = arith.subf %11, %12 : vector<1x512xf32>
    %cst_7 = arith.constant 9.99999974E-6 : f32
    %14 = vector.broadcast %cst_7 : f32 to vector<1x512xf32>
    %15 = arith.addf %13, %14 : vector<1x512xf32>
    %16 = math.rsqrt %15 : vector<1x512xf32>
    %c0_8 = arith.constant 0 : index
    %c0_9 = arith.constant 0 : index
    %17 = vector.load %arg3[%c0_8, %c0_9] : memref<1x512xf32, #tpu.memory_space<vmem>>, vector<1x512xf32>
    %18 = arith.mulf %16, %17 : vector<1x512xf32>
    %c0_10 = arith.constant 0 : index
    %c0_11 = arith.constant 0 : index
    %19 = vector.load %arg4[%c0_10, %c0_11] : memref<1x512xf32, #tpu.memory_space<vmem>>, vector<1x512xf32>
    %20 = arith.mulf %6, %18 : vector<1x512xf32>
    %21 = arith.subf %19, %20 : vector<1x512xf32>
    %22 = vector.broadcast %18 : vector<1x512xf32> to vector<784x512xf32>
    %23 = arith.mulf %2, %22 : vector<784x512xf32>
    %24 = vector.broadcast %21 : vector<1x512xf32> to vector<784x512xf32>
    %25 = arith.addf %23, %24 : vector<784x512xf32>
    %c0_12 = arith.constant 0 : index
    %c0_13 = arith.constant 0 : index
    %26 = vector.load %arg5[%c0_12, %c0_13] : memref<784x512xf32, #tpu.memory_space<vmem>>, vector<784x512xf32>
    %27 = arith.addf %25, %26 : vector<784x512xf32>
    %c0_14 = arith.constant 0 : index
    %c0_15 = arith.constant 0 : index
    %28 = vector.load %arg6[%c0_14, %c0_15] : memref<784x512xf32, #tpu.memory_space<vmem>>, vector<784x512xf32>
    tpu.vector_store %arg6[%c0_14, %c0_15], %27 {strides = array<i32>} : memref<784x512xf32, #tpu.memory_space<vmem>>, vector<784x512xf32>,
    return
  }
  func.func @transform_0(%arg0: i32) -> (i32, i32) {
    %c0_i32 = arith.constant 0 : i32
    %c0_i32_0 = arith.constant 0 : i32
    %c0_i32_1 = arith.constant 0 : i32
    return %c0_i32, %c0_i32_0 : i32, i32
  }
  func.func @transform_1(%arg0: i32) -> (i32, i32) {
    %c0_i32 = arith.constant 0 : i32
    %c0_i32_0 = arith.constant 0 : i32
    return %c0_i32, %arg0 : i32, i32
  }
  func.func @transform_2(%arg0: i32) -> (i32, i32) {
    %c0_i32 = arith.constant 0 : i32
    %c0_i32_0 = arith.constant 0 : i32
    return %c0_i32, %arg0 : i32, i32
  }
  func.func @transform_3(%arg0: i32) -> (i32, i32) {
    %c0_i32 = arith.constant 0 : i32
    %c0_i32_0 = arith.constant 0 : i32
    return %c0_i32, %arg0 : i32, i32
  }
  func.func @transform_4(%arg0: i32) -> (i32, i32) {
    %c0_i32 = arith.constant 0 : i32
    %c0_i32_0 = arith.constant 0 : i32
    return %c0_i32, %arg0 : i32, i32
  }
  func.func @transform_5(%arg0: i32) -> (i32, i32) {
    %c0_i32 = arith.constant 0 : i32
    %c0_i32_0 = arith.constant 0 : i32
    return %c0_i32, %arg0 : i32, i32
  }
}

</mosaic_0001>

<llo_original>
// kernel: conv1x1_bn_add.1
$region0: #{conv1x1_bn_add.1}
  #allocation0 [shape = 'u32[]', space=smem, size = 0x4, offset = 0x4, fixed_abs, tag = 'smem constant byte address 0x4 - core index']
  #allocation1 [shape = 'u32[144,128]{1,0:T(1,128)}', space=vmem, size = 0x12000, scoped, tag = 'internal scratch']
  %s0 = inlined_call_operand.vmem [shape: f32[784,128], index: 0, kind: input, shape index: {}]
  %s1 = inlined_call_operand.vmem [shape: f32[128,512], index: 1, kind: input, shape index: {}]
  %s2 = inlined_call_operand.vmem [shape: f32[1,512], index: 2, kind: input, shape index: {}]
  %s3 = inlined_call_operand.vmem [shape: f32[1,512], index: 3, kind: input, shape index: {}]
  %s4 = inlined_call_operand.vmem [shape: f32[784,512], index: 4, kind: input, shape index: {}]
  %s5 = inlined_call_operand.vmem [shape: f32[784,512], index: 5, kind: output, shape index: {}]
  %s6 = sld [smem:[#allocation0]]
  $region30: #{conv1x1_bn_add.1} parent=0
    _
  %s8 = ssub.s32 1, %s6
  %s9 = scalar_select 0, %s8, %s6
  // Predicated region
  $region2: #{conv1x1_bn_add.1} parent=0 // pred_check
    _
  $region3: #{conv1x1_bn_add.1} parent=0 // pred_check_branch
    %11 = sbr.rel (0) target = $region5
  $region4: #{conv1x1_bn_add.1} parent=0 // pred_region
    _
  $region5: #{conv1x1_bn_add.1} parent=0 // pred_fallthru
    _
  // Predicated region
  $region6: #{conv1x1_bn_add.1} parent=0 // pred_check
    _
  $region7: #{conv1x1_bn_add.1} parent=0 // pred_check_branch
    %13 = sbr.rel (0) target = $region9
  $region8: #{conv1x1_bn_add.1} parent=0 // pred_region
    _
  $region9: #{conv1x1_bn_add.1} parent=0 // pred_fallthru
    _
  // Predicated region
  $region10: #{conv1x1_bn_add.1} parent=0 // pred_check
    _
  $region11: #{conv1x1_bn_add.1} parent=0 // pred_check_branch
    %15 = sbr.rel (0) target = $region13
  $region12: #{conv1x1_bn_add.1} parent=0 // pred_region
    _
  $region13: #{conv1x1_bn_add.1} parent=0 // pred_fallthru
    _
  // Predicated region
  $region14: #{conv1x1_bn_add.1} parent=0 // pred_check
    _
  $region15: #{conv1x1_bn_add.1} parent=0 // pred_check_branch
    %17 = sbr.rel (0) target = $region17
  $region16: #{conv1x1_bn_add.1} parent=0 // pred_region
    _
  $region17: #{conv1x1_bn_add.1} parent=0 // pred_fallthru
    _
  // Predicated region
  $region18: #{conv1x1_bn_add.1} parent=0 // pred_check
    _
  $region19: #{conv1x1_bn_add.1} parent=0 // pred_check_branch
    %19 = sbr.rel (0) target = $region21
  $region20: #{conv1x1_bn_add.1} parent=0 // pred_region
    _
  $region21: #{conv1x1_bn_add.1} parent=0 // pred_fallthru
    _
  %v20 = vld [vmem:[%s0] sm:$0xff]
  %v21 = vld [vmem:[%s0 + $0x8] sm:$0xff]
  %v22 = vld [vmem:[%s0 + $0x10] sm:$0xff]
  %v23 = vld [vmem:[%s0 + $0x18] sm:$0xff]
  %v24 = vld [vmem:[%s0 + $0x20] sm:$0xff]
  %v25 = vld [vmem:[%s0 + $0x28] sm:$0xff]
  %v26 = vld [vmem:[%s0 + $0x30] sm:$0xff]
  %v27 = vld [vmem:[%s0 + $0x38] sm:$0xff]
  %v28 = vld [vmem:[%s0 + $0x40] sm:$0xff]
  %v29 = vld [vmem:[%s0 + $0x48] sm:$0xff]
  %v30 = vld [vmem:[%s0 + $0x50] sm:$0xff]
  %v31 = vld [vmem:[%s0 + $0x58] sm:$0xff]
  %v32 = vld [vmem:[%s0 + $0x60] sm:$0xff]
  %v33 = vld [vmem:[%s0 + $0x68] sm:$0xff]
  %v34 = vld [vmem:[%s0 + $0x70] sm:$0xff]
  %v35 = vld [vmem:[%s0 + $0x78] sm:$0xff]
  %v36 = vld [vmem:[%s0 + $0x80] sm:$0xff]
  %v37 = vld [vmem:[%s0 + $0x88] sm:$0xff]
  %v38 = vld [vmem:[%s0 + $0x90] sm:$0xff]
  %v39 = vld [vmem:[%s0 + $0x98] sm:$0xff]
  %v40 = vld [vmem:[%s0 + $0xa0] sm:$0xff]
  %v41 = vld [vmem:[%s0 + $0xa8] sm:$0xff]
  %v42 = vld [vmem:[%s0 + $0xb0] sm:$0xff]
  %v43 = vld [vmem:[%s0 + $0xb8] sm:$0xff]
  %v44 = vld [vmem:[%s0 + $0xc0] sm:$0xff]
  %v45 = vld [vmem:[%s0 + $0xc8] sm:$0xff]
  %v46 = vld [vmem:[%s0 + $0xd0] sm:$0xff]
  %v47 = vld [vmem:[%s0 + $0xd8] sm:$0xff]
  %v48 = vld [vmem:[%s0 + $0xe0] sm:$0xff]
  %v49 = vld [vmem:[%s0 + $0xe8] sm:$0xff]
  %v50 = vld [vmem:[%s0 + $0xf0] sm:$0xff]
  %v51 = vld [vmem:[%s0 + $0xf8] sm:$0xff]
  %v52 = vld [vmem:[%s0 + $0x100] sm:$0xff]
  %v53 = vld [vmem:[%s0 + $0x108] sm:$0xff]
  %v54 = vld [vmem:[%s0 + $0x110] sm:$0xff]
  %v55 = vld [vmem:[%s0 + $0x118] sm:$0xff]
  %v56 = vld [vmem:[%s0 + $0x120] sm:$0xff]
  %v57 = vld [vmem:[%s0 + $0x128] sm:$0xff]
  %v58 = vld [vmem:[%s0 + $0x130] sm:$0xff]
  %v59 = vld [vmem:[%s0 + $0x138] sm:$0xff]
  %v60 = vld [vmem:[%s0 + $0x140] sm:$0xff]
  %v61 = vld [vmem:[%s0 + $0x148] sm:$0xff]
  %v62 = vld [vmem:[%s0 + $0x150] sm:$0xff]
  %v63 = vld [vmem:[%s0 + $0x158] sm:$0xff]
  %v64 = vld [vmem:[%s0 + $0x160] sm:$0xff]
  %v65 = vld [vmem:[%s0 + $0x168] sm:$0xff]
  %v66 = vld [vmem:[%s0 + $0x170] sm:$0xff]
  %v67 = vld [vmem:[%s0 + $0x178] sm:$0xff]
  %v68 = vld [vmem:[%s0 + $0x180] sm:$0xff]
  %v69 = vld [vmem:[%s0 + $0x188] sm:$0xff]
  %v70 = vld [vmem:[%s0 + $0x190] sm:$0xff]
  %v71 = vld [vmem:[%s0 + $0x198] sm:$0xff]
  %v72 = vld [vmem:[%s0 + $0x1a0] sm:$0xff]
  %v73 = vld [vmem:[%s0 + $0x1a8] sm:$0xff]
  %v74 = vld [vmem:[%s0 + $0x1b0] sm:$0xff]
  %v75 = vld [vmem:[%s0 + $0x1b8] sm:$0xff]
  %v76 = vld [vmem:[%s0 + $0x1c0] sm:$0xff]
  %v77 = vld [vmem:[%s0 + $0x1c8] sm:$0xff]
  %v78 = vld [vmem:[%s0 + $0x1d0] sm:$0xff]
  %v79 = vld [vmem:[%s0 + $0x1d8] sm:$0xff]
  %v80 = vld [vmem:[%s0 + $0x1e0] sm:$0xff]
  %v81 = vld [vmem:[%s0 + $0x1e8] sm:$0xff]
  %v82 = vld [vmem:[%s0 + $0x1f0] sm:$0xff]
  %v83 = vld [vmem:[%s0 + $0x1f8] sm:$0xff]
  %v84 = vld [vmem:[%s0 + $0x200] sm:$0xff]
  %v85 = vld [vmem:[%s0 + $0x208] sm:$0xff]
  %v86 = vld [vmem:[%s0 + $0x210] sm:$0xff]
  %v87 = vld [vmem:[%s0 + $0x218] sm:$0xff]
  %v88 = vld [vmem:[%s0 + $0x220] sm:$0xff]
  %v89 = vld [vmem:[%s0 + $0x228] sm:$0xff]
  %v90 = vld [vmem:[%s0 + $0x230] sm:$0xff]
  %v91 = vld [vmem:[%s0 + $0x238] sm:$0xff]
  %v92 = vld [vmem:[%s0 + $0x240] sm:$0xff]
  %v93 = vld [vmem:[%s0 + $0x248] sm:$0xff]
  %v94 = vld [vmem:[%s0 + $0x250] sm:$0xff]
  %v95 = vld [vmem:[%s0 + $0x258] sm:$0xff]
  %v96 = vld [vmem:[%s0 + $0x260] sm:$0xff]
  %v97 = vld [vmem:[%s0 + $0x268] sm:$0xff]
  %v98 = vld [vmem:[%s0 + $0x270] sm:$0xff]
  %v99 = vld [vmem:[%s0 + $0x278] sm:$0xff]
  %v100 = vld [vmem:[%s0 + $0x280] sm:$0xff]
  %v101 = vld [vmem:[%s0 + $0x288] sm:$0xff]
  %v102 = vld [vmem:[%s0 + $0x290] sm:$0xff]
  %v103 = vld [vmem:[%s0 + $0x298] sm:$0xff]
  %v104 = vld [vmem:[%s0 + $0x2a0] sm:$0xff]
  %v105 = vld [vmem:[%s0 + $0x2a8] sm:$0xff]
  %v106 = vld [vmem:[%s0 + $0x2b0] sm:$0xff]
  %v107 = vld [vmem:[%s0 + $0x2b8] sm:$0xff]
  %v108 = vld [vmem:[%s0 + $0x2c0] sm:$0xff]
  %v109 = vld [vmem:[%s0 + $0x2c8] sm:$0xff]
  %v110 = vld [vmem:[%s0 + $0x2d0] sm:$0xff]
  %v111 = vld [vmem:[%s0 + $0x2d8] sm:$0xff]
  %v112 = vld [vmem:[%s0 + $0x2e0] sm:$0xff]
  %v113 = vld [vmem:[%s0 + $0x2e8] sm:$0xff]
  %v114 = vld [vmem:[%s0 + $0x2f0] sm:$0xff]
  %v115 = vld [vmem:[%s0 + $0x2f8] sm:$0xff]
  %v116 = vld [vmem:[%s0 + $0x300] sm:$0xff]
  %v117 = vld [vmem:[%s0 + $0x308] sm:$0xff]
  %v118 = vld [vmem:[%s1] sm:$0xff]
  %v119 = vld [vmem:[%s1 + $0x8] sm:$0xff]
  %v120 = vld [vmem:[%s1 + $0x10] sm:$0xff]
  %v121 = vld [vmem:[%s1 + $0x18] sm:$0xff]
  %v122 = vld [vmem:[%s1 + $0x20] sm:$0xff]
  %v123 = vld [vmem:[%s1 + $0x28] sm:$0xff]
  %v124 = vld [vmem:[%s1 + $0x30] sm:$0xff]
  %v125 = vld [vmem:[%s1 + $0x38] sm:$0xff]
  %v126 = vld [vmem:[%s1 + $0x40] sm:$0xff]
  %v127 = vld [vmem:[%s1 + $0x48] sm:$0xff]
  %v128 = vld [vmem:[%s1 + $0x50] sm:$0xff]
  %v129 = vld [vmem:[%s1 + $0x58] sm:$0xff]
  %v130 = vld [vmem:[%s1 + $0x60] sm:$0xff]
  %v131 = vld [vmem:[%s1 + $0x68] sm:$0xff]
  %v132 = vld [vmem:[%s1 + $0x70] sm:$0xff]
  %v133 = vld [vmem:[%s1 + $0x78] sm:$0xff]
  %v134 = vld [vmem:[%s1 + $0x80] sm:$0xff]
  %v135 = vld [vmem:[%s1 + $0x88] sm:$0xff]
  %v136 = vld [vmem:[%s1 + $0x90] sm:$0xff]
  %v137 = vld [vmem:[%s1 + $0x98] sm:$0xff]
  %v138 = vld [vmem:[%s1 + $0xa0] sm:$0xff]
  %v139 = vld [vmem:[%s1 + $0xa8] sm:$0xff]
  %v140 = vld [vmem:[%s1 + $0xb0] sm:$0xff]
  %v141 = vld [vmem:[%s1 + $0xb8] sm:$0xff]
  %v142 = vld [vmem:[%s1 + $0xc0] sm:$0xff]
  %v143 = vld [vmem:[%s1 + $0xc8] sm:$0xff]
  %v144 = vld [vmem:[%s1 + $0xd0] sm:$0xff]
  %v145 = vld [vmem:[%s1 + $0xd8] sm:$0xff]
  %v146 = vld [vmem:[%s1 + $0xe0] sm:$0xff]
  %v147 = vld [vmem:[%s1 + $0xe8] sm:$0xff]
  %v148 = vld [vmem:[%s1 + $0xf0] sm:$0xff]
  %v149 = vld [vmem:[%s1 + $0xf8] sm:$0xff]
  %v150 = vld [vmem:[%s1 + $0x100] sm:$0xff]
  %v151 = vld [vmem:[%s1 + $0x108] sm:$0xff]
  %v152 = vld [vmem:[%s1 + $0x110] sm:$0xff]
  %v153 = vld [vmem:[%s1 + $0x118] sm:$0xff]
  %v154 = vld [vmem:[%s1 + $0x120] sm:$0xff]
  %v155 = vld [vmem:[%s1 + $0x128] sm:$0xff]
  %v156 = vld [vmem:[%s1 + $0x130] sm:$0xff]
  %v157 = vld [vmem:[%s1 + $0x138] sm:$0xff]
  %v158 = vld [vmem:[%s1 + $0x140] sm:$0xff]
  %v159 = vld [vmem:[%s1 + $0x148] sm:$0xff]
  %v160 = vld [vmem:[%s1 + $0x150] sm:$0xff]
  %v161 = vld [vmem:[%s1 + $0x158] sm:$0xff]
  %v162 = vld [vmem:[%s1 + $0x160] sm:$0xff]
  %v163 = vld [vmem:[%s1 + $0x168] sm:$0xff]
  %v164 = vld [vmem:[%s1 + $0x170] sm:$0xff]
  %v165 = vld [vmem:[%s1 + $0x178] sm:$0xff]
  %v166 = vld [vmem:[%s1 + $0x180] sm:$0xff]
  %v167 = vld [vmem:[%s1 + $0x188] sm:$0xff]
  %v168 = vld [vmem:[%s1 + $0x190] sm:$0xff]
  %v169 = vld [vmem:[%s1 + $0x198] sm:$0xff]
  %v170 = vld [vmem:[%s1 + $0x1a0] sm:$0xff]
  %v171 = vld [vmem:[%s1 + $0x1a8] sm:$0xff]
  %v172 = vld [vmem:[%s1 + $0x1b0] sm:$0xff]
  %v173 = vld [vmem:[%s1 + $0x1b8] sm:$0xff]
  %v174 = vld [vmem:[%s1 + $0x1c0] sm:$0xff]
  %v175 = vld [vmem:[%s1 + $0x1c8] sm:$0xff]
  %v176 = vld [vmem:[%s1 + $0x1d0] sm:$0xff]
  %v177 = vld [vmem:[%s1 + $0x1d8] sm:$0xff]
  %v178 = vld [vmem:[%s1 + $0x1e0] sm:$0xff]
  %v179 = vld [vmem:[%s1 + $0x1e8] sm:$0xff]
  %v180 = vld [vmem:[%s1 + $0x1f0] sm:$0xff]
  %v181 = vld [vmem:[%s1 + $0x1f8] sm:$0xff]
  %182 = vmatprep.subr.mxu0 %v119
  %183 = vmatpush1.msra.mxu0 %v118
  %184 = vmatprep.subr.mxu0 %v123
  %185 = vmatpush1.msra.mxu0 %v122
  %186 = vmatprep.subr.mxu0 %v127
  %187 = vmatpush1.msra.mxu0 %v126
  %188 = vmatprep.subr.mxu0 %v131
  %189 = vmatpush1.msra.mxu0 %v130
  %190 = vmatprep.subr.mxu0 %v135
  %191 = vmatpush1.msra.mxu0 %v134
  %192 = vmatprep.subr.mxu0 %v139
  %193 = vmatpush1.msra.mxu0 %v138
  %194 = vmatprep.subr.mxu0 %v143
  %195 = vmatpush1.msra.mxu0 %v142
  %196 = vmatprep.subr.mxu0 %v147
  %197 = vmatpush1.msra.mxu0 %v146
  %198 = vmatprep.subr.mxu0 %v151
  %199 = vmatpush1.msra.mxu0 %v150
  %200 = vmatprep.subr.mxu0 %v155
  %201 = vmatpush1.msra.mxu0 %v154
  %202 = vmatprep.subr.mxu0 %v159
  %203 = vmatpush1.msra.mxu0 %v158
  %204 = vmatprep.subr.mxu0 %v163
  %205 = vmatpush1.msra.mxu0 %v162
  %206 = vmatprep.subr.mxu0 %v167
  %207 = vmatpush1.msra.mxu0 %v166
  %208 = vmatprep.subr.mxu0 %v171
  %209 = vmatpush1.msra.mxu0 %v170
  %210 = vmatprep.subr.mxu0 %v175
  %211 = vmatpush1.msra.mxu0 %v174
  %212 = vmatprep.subr.mxu0 %v179
  %213 = vmatpush1.msra.mxu0 %v178
  %214 = vmatprep.subr.mxu0 0.0
  %215 = vmatpush1.msra.mxu0 0.0
  %216 = vmatprep.subr.mxu0 0.0
  %217 = vmatpush1.msra.mxu0 0.0
  %218 = vmatprep.subr.mxu0 0.0
  %219 = vmatpush1.msra.mxu0 0.0
  %220 = vmatprep.subr.mxu0 0.0
  %221 = vmatpush1.msra.mxu0 0.0
  %222 = vmatprep.subr.mxu0 0.0
  %223 = vmatpush1.msra.mxu0 0.0
  %224 = vmatprep.subr.mxu0 0.0
  %225 = vmatpush1.msra.mxu0 0.0
  %226 = vmatprep.subr.mxu0 0.0
  %227 = vmatpush1.msra.mxu0 0.0
  %228 = vmatprep.subr.mxu0 0.0
  %229 = vmatpush1.msra.mxu0 0.0
  %230 = vmatprep.subr.mxu0 0.0
  %231 = vmatpush1.msra.mxu0 0.0
  %232 = vmatprep.subr.mxu0 0.0
  %233 = vmatpush1.msra.mxu0 0.0
  %234 = vmatprep.subr.mxu0 0.0
  %235 = vmatpush1.msra.mxu0 0.0
  %236 = vmatprep.subr.mxu0 0.0
  %237 = vmatpush1.msra.mxu0 0.0
  %238 = vmatprep.subr.mxu0 0.0
  %239 = vmatpush1.msra.mxu0 0.0
  %240 = vmatprep.subr.mxu0 0.0
  %241 = vmatpush1.msra.mxu0 0.0
  %242 = vmatprep.subr.mxu0 0.0
  %243 = vmatpush1.msra.mxu0 0.0
  %244 = vmatprep.subr.mxu0 0.0
  %245 = vmatpush1.msra.mxu0 0.0
  %246 = vmatprep.mubr.f32.mxu0 0.0
  %247 = vmatmul.mubr.f32.gmra.mrb[0].mxu0 %v20
  %v248 = vpop.f32.mrb[0].mxu0
  %v249 = vadd.f32 0.0, %v248
  %v250 = vpop.f32.mrb[0].mxu0
  %v251 = vadd.f32 0.0, %v250
  %252 = vmatprep.mubr.f32.mxu0 0.0
  %253 = vmatmul.mubr.f32.gmra.mrb[0].mxu0 %v21
  %v254 = vpop.f32.mrb[0].mxu0
  %v255 = vadd.f32 0.0, %v254
  %v256 = vpop.f32.mrb[0].mxu0
  %v257 = vadd.f32 0.0, %v256
  %258 = vmatprep.mubr.f32.mxu0 0.0
  %259 = vmatmul.mubr.f32.gmra.mrb[0].mxu0 %v22
  %v260 = vpop.f32.mrb[0].mxu0
  %v261 = vadd.f32 0.0, %v260
  %v262 = vpop.f32.mrb[0].mxu0
  %v263 = vadd.f32 0.0, %v262
  %264 = vmatprep.mubr.f32.mxu0 0.0
  %265 = vmatmul.mubr.f32.gmra.mrb[0].mxu0 %v23
  %v266 = vpop.f32.mrb[0].mxu0
  %v267 = vadd.f32 0.0, %v266
  %v268 = vpop.f32.mrb[0].mxu0
  %v269 = vadd.f32 0.0, %v268
  %270 = vmatprep.mubr.f32.mxu0 0.0
  %271 = vmatmul.mubr.f32.gmra.mrb[0].mxu0 %v24
  %v272 = vpop.f32.mrb[0].mxu0
  %v273 = vadd.f32 0.0, %v272
  %v274 = vpop.f32.mrb[0].mxu0
  %v275 = vadd.f32 0.0, %v274
  %276 = vmatprep.mubr.f32.mxu0 0.0
  %277 = vmatmul.mubr.f32.gmra.mrb[0].mxu0 %v25
  %v278 = vpop.f32.mrb[0].mxu0
  %v279 = vadd.f32 0.0, %v278
  %v280 = vpop.f32.mrb[0].mxu0
  %v281 = vadd.f32 0.0, %v280
  %282 = vmatprep.mubr.f32.mxu0 0.0
  %283 = vmatmul.mubr.f32.gmra.mrb[0].mxu0 %v26
  %v284 = vpop.f32.mrb[0].mxu0
  %v285 = vadd.f32 0.0, %v284
  %v286 = vpop.f32.mrb[0].mxu0
  %v287 = vadd.f32 0.0, %v286
  %288 = vmatprep.mubr.f32.mxu0 0.0
  %289 = vmatmul.mubr.f32.gmra.mrb[0].mxu0 %v27
  %v290 = vpop.f32.mrb[0].mxu0
  %v291 = vadd.f32 0.0, %v290
  %v292 = vpop.f32.mrb[0].mxu0
  %v293 = vadd.f32 0.0, %v292
  %294 = vmatprep.mubr.f32.mxu0 0.0
  %295 = vmatmul.mubr.f32.gmra.mrb[0].mxu0 %v28
  %v296 = vpop.f32.mrb[0].mxu0
  %v297 = vadd.f32 0.0, %v296
  %v298 = vpop.f32.mrb[0].mxu0
  %v299 = vadd.f32 0.0, %v298
  %300 = vmatprep.mubr.f32.mxu0 0.0
  %301 = vmatmul.mubr.f32.gmra.mrb[0].mxu0 %v29
  %v302 = vpop.f32.mrb[0].mxu0
  %v303 = vadd.f32 0.0, %v302
  %v304 = vpop.f32.mrb[0].mxu0
  %v305 = vadd.f32 0.0, %v304
  %306 = vmatprep.mubr.f32.mxu0 0.0
  %307 = vmatmul.mubr.f32.gmra.mrb[0].mxu0 %v30
  %v308 = vpop.f32.mrb[0].mxu0
  %v309 = vadd.f32 0.0, %v308
  %v310 = vpop.f32.mrb[0].mxu0
  %v311 = vadd.f32 0.0, %v310
  %312 = vmatprep.mubr.f32.mxu0 0.0
  %313 = vmatmul.mubr.f32.gmra.mrb[0].mxu0 %v31
  %v314 = vpop.f32.mrb[0].mxu0
  %v315 = vadd.f32 0.0, %v314
  %v316 = vpop.f32.mrb[0].mxu0
  %v317 = vadd.f32 0.0, %v316
  %318 = vmatprep.mubr.f32.mxu0 0.0
  %319 = vmatmul.mubr.f32.gmra.mrb[0].mxu0 %v32
  %v320 = vpop.f32.mrb[0].mxu0
  %v321 = vadd.f32 0.0, %v320
  %v322 = vpop.f32.mrb[0].mxu0
  %v323 = vadd.f32 0.0, %v322
  %324 = vmatprep.mubr.f32.mxu0 0.0
  %325 = vmatmul.mubr.f32.gmra.mrb[0].mxu0 %v33
  %v326 = vpop.f32.mrb[0].mxu0
  %v327 = vadd.f32 0.0, %v326
  %v328 = vpop.f32.mrb[0].mxu0
  %v329 = vadd.f32 0.0, %v328
  %330 = vmatprep.mubr.f32.mxu0 0.0
  %331 = vmatmul.mubr.f32.gmra.mrb[0].mxu0 %v34
  %v332 = vpop.f32.mrb[0].mxu0
  %v333 = vadd.f32 0.0, %v332
  %v334 = vpop.f32.mrb[0].mxu0
  %v335 = vadd.f32 0.0, %v334
  %336 = vmatprep.mubr.f32.mxu0 0.0
  %337 = vmatmul.mubr.f32.gmra.mrb[0].mxu0 %v35
  %v338 = vpop.f32.mrb[0].mxu0
  %v339 = vadd.f32 0.0, %v338
  %v340 = vpop.f32.mrb[0].mxu0
  %v341 = vadd.f32 0.0, %v340
  %342 = vmatprep.mubr.f32.mxu0 0.0
  %343 = vmatmul.mubr.f32.gmra.mrb[0].mxu0 %v36
  %v344 = vpop.f32.mrb[0].mxu0
  %v345 = vadd.f32 0.0, %v344
  %v346 = vpop.f32.mrb[0].mxu0
  %v347 = vadd.f32 0.0, %v346
  %348 = vmatprep.mubr.f32.mxu0 0.0
  %349 = vmatmul.mubr.f32.gmra.mrb[0].mxu0 %v37
  %v350 = vpop.f32.mrb[0].mxu0
  %v351 = vadd.f32 0.0, %v350
  %v352 = vpop.f32.mrb[0].mxu0
  %v353 = vadd.f32 0.0, %v352
  %354 = vmatprep.mubr.f32.mxu0 0.0
  %355 = vmatmul.mubr.f32.gmra.mrb[0].mxu0 %v38
  %v356 = vpop.f32.mrb[0].mxu0
  %v357 = vadd.f32 0.0, %v356
  %v358 = vpop.f32.mrb[0].mxu0
  %v359 = vadd.f32 0.0, %v358
  %360 = vmatprep.mubr.f32.mxu0 0.0
  %361 = vmatmul.mubr.f32.gmra.mrb[0].mxu0 %v39
  %v362 = vpop.f32.mrb[0].mxu0
  %v363 = vadd.f32 0.0, %v362
  %v364 = vpop.f32.mrb[0].mxu0
  %v365 = vadd.f32 0.0, %v364
  %366 = vmatprep.mubr.f32.mxu0 0.0
  %367 = vmatmul.mubr.f32.gmra.mrb[0].mxu0 %v40
  %v368 = vpop.f32.mrb[0].mxu0
  %v369 = vadd.f32 0.0, %v368
  %v370 = vpop.f32.mrb[0].mxu0
  %v371 = vadd.f32 0.0, %v370
  %372 = vmatprep.mubr.f32.mxu0 0.0
  %373 = vmatmul.mubr.f32.gmra.mrb[0].mxu0 %v41
  %v374 = vpop.f32.mrb[0].mxu0
  %v375 = vadd.f32 0.0, %v374
  %v376 = vpop.f32.mrb[0].mxu0
  %v377 = vadd.f32 0.0, %v376
  %378 = vmatprep.mubr.f32.mxu0 0.0
  %379 = vmatmul.mubr.f32.gmra.mrb[0].mxu0 %v42
  %v380 = vpop.f32.mrb[0].mxu0
  %v381 = vadd.f32 0.0, %v380
  %v382 = vpop.f32.mrb[0].mxu0
  %v383 = vadd.f32 0.0, %v382
  %384 = vmatprep.mubr.f32.mxu0 0.0
  %385 = vmatmul.mubr.f32.gmra.mrb[0].mxu0 %v43
  %v386 = vpop.f32.mrb[0].mxu0
  %v387 = vadd.f32 0.0, %v386
  %v388 = vpop.f32.mrb[0].mxu0
  %v389 = vadd.f32 0.0, %v388
  %390 = vmatprep.mubr.f32.mxu0 0.0
  %391 = vmatmul.mubr.f32.gmra.mrb[0].mxu0 %v44
  %v392 = vpop.f32.mrb[0].mxu0
  %v393 = vadd.f32 0.0, %v392
  %v394 = vpop.f32.mrb[0].mxu0
  %v395 = vadd.f32 0.0, %v394
  %396 = vmatprep.mubr.f32.mxu0 0.0
  %397 = vmatmul.mubr.f32.gmra.mrb[0].mxu0 %v45
  %v398 = vpop.f32.mrb[0].mxu0
  %v399 = vadd.f32 0.0, %v398
  %v400 = vpop.f32.mrb[0].mxu0
  %v401 = vadd.f32 0.0, %v400
  %402 = vmatprep.mubr.f32.mxu0 0.0
  %403 = vmatmul.mubr.f32.gmra.mrb[0].mxu0 %v46
  %v404 = vpop.f32.mrb[0].mxu0
  %v405 = vadd.f32 0.0, %v404
  %v406 = vpop.f32.mrb[0].mxu0
  %v407 = vadd.f32 0.0, %v406
  %408 = vmatprep.mubr.f32.mxu0 0.0
  %409 = vmatmul.mubr.f32.gmra.mrb[0].mxu0 %v47
  %v410 = vpop.f32.mrb[0].mxu0
  %v411 = vadd.f32 0.0, %v410
  %v412 = vpop.f32.mrb[0].mxu0
  %v413 = vadd.f32 0.0, %v412
  %414 = vmatprep.mubr.f32.mxu0 0.0
  %415 = vmatmul.mubr.f32.gmra.mrb[0].mxu0 %v48
  %v416 = vpop.f32.mrb[0].mxu0
  %v417 = vadd.f32 0.0, %v416
  %v418 = vpop.f32.mrb[0].mxu0
  %v419 = vadd.f32 0.0, %v418
  %420 = vmatprep.mubr.f32.mxu0 0.0
  %421 = vmatmul.mubr.f32.gmra.mrb[0].mxu0 %v49
  %v422 = vpop.f32.mrb[0].mxu0
  %v423 = vadd.f32 0.0, %v422
  %v424 = vpop.f32.mrb[0].mxu0
  %v425 = vadd.f32 0.0, %v424
  %426 = vmatprep.mubr.f32.mxu0 0.0
  %427 = vmatmul.mubr.f32.gmra.mrb[0].mxu0 %v50
  %v428 = vpop.f32.mrb[0].mxu0
  %v429 = vadd.f32 0.0, %v428
  %v430 = vpop.f32.mrb[0].mxu0
  %v431 = vadd.f32 0.0, %v430
  %432 = vmatprep.mubr.f32.mxu0 0.0
  %433 = vmatmul.mubr.f32.gmra.mrb[0].mxu0 %v51
  %v434 = vpop.f32.mrb[0].mxu0
  %v435 = vadd.f32 0.0, %v434
  %v436 = vpop.f32.mrb[0].mxu0
  %v437 = vadd.f32 0.0, %v436
  %438 = vmatprep.mubr.f32.mxu0 0.0
  %439 = vmatmul.mubr.f32.gmra.mrb[0].mxu0 %v52
  %v440 = vpop.f32.mrb[0].mxu0
  %v441 = vadd.f32 0.0, %v440
  %v442 = vpop.f32.mrb[0].mxu0
  %v443 = vadd.f32 0.0, %v442
  %444 = vmatprep.mubr.f32.mxu0 0.0
  %445 = vmatmul.mubr.f32.gmra.mrb[0].mxu0 %v53
  %v446 = vpop.f32.mrb[0].mxu0
  %v447 = vadd.f32 0.0, %v446
  %v448 = vpop.f32.mrb[0].mxu0
  %v449 = vadd.f32 0.0, %v448
  %450 = vmatprep.mubr.f32.mxu0 0.0
  %451 = vmatmul.mubr.f32.gmra.mrb[0].mxu0 %v54
  %v452 = vpop.f32.mrb[0].mxu0
  %v453 = vadd.f32 0.0, %v452
  %v454 = vpop.f32.mrb[0].mxu0
  %v455 = vadd.f32 0.0, %v454
  %456 = vmatprep.mubr.f32.mxu0 0.0
  %457 = vmatmul.mubr.f32.gmra.mrb[0].mxu0 %v55
  %v458 = vpop.f32.mrb[0].mxu0
  %v459 = vadd.f32 0.0, %v458
  %v460 = vpop.f32.mrb[0].mxu0
  %v461 = vadd.f32 0.0, %v460
  %462 = vmatprep.mubr.f32.mxu0 0.0
  %463 = vmatmul.mubr.f32.gmra.mrb[0].mxu0 %v56
  %v464 = vpop.f32.mrb[0].mxu0
  %v465 = vadd.f32 0.0, %v464
  %v466 = vpop.f32.mrb[0].mxu0
  %v467 = vadd.f32 0.0, %v466
  %468 = vmatprep.mubr.f32.mxu0 0.0
  %469 = vmatmul.mubr.f32.gmra.mrb[0].mxu0 %v57
  %v470 = vpop.f32.mrb[0].mxu0
  %v471 = vadd.f32 0.0, %v470
  %v472 = vpop.f32.mrb[0].mxu0
  %v473 = vadd.f32 0.0, %v472
  %474 = vmatprep.mubr.f32.mxu0 0.0
  %475 = vmatmul.mubr.f32.gmra.mrb[0].mxu0 %v58
  %v476 = vpop.f32.mrb[0].mxu0
  %v477 = vadd.f32 0.0, %v476
  %v478 = vpop.f32.mrb[0].mxu0
  %v479 = vadd.f32 0.0, %v478
  %480 = vmatprep.mubr.f32.mxu0 0.0
  %481 = vmatmul.mubr.f32.gmra.mrb[0].mxu0 %v59
  %v482 = vpop.f32.mrb[0].mxu0
  %v483 = vadd.f32 0.0, %v482
  %v484 = vpop.f32.mrb[0].mxu0
  %v485 = vadd.f32 0.0, %v484
  %486 = vmatprep.mubr.f32.mxu0 0.0
  %487 = vmatmul.mubr.f32.gmra.mrb[0].mxu0 %v60
  %v488 = vpop.f32.mrb[0].mxu0
  %v489 = vadd.f32 0.0, %v488
  %v490 = vpop.f32.mrb[0].mxu0
  %v491 = vadd.f32 0.0, %v490
  %492 = vmatprep.mubr.f32.mxu0 0.0
  %493 = vmatmul.mubr.f32.gmra.mrb[0].mxu0 %v61
  %v494 = vpop.f32.mrb[0].mxu0
  %v495 = vadd.f32 0.0, %v494
  %v496 = vpop.f32.mrb[0].mxu0
  %v497 = vadd.f32 0.0, %v496
  %498 = vmatprep.mubr.f32.mxu0 0.0
  %499 = vmatmul.mubr.f32.gmra.mrb[0].mxu0 %v62
  %v500 = vpop.f32.mrb[0].mxu0
  %v501 = vadd.f32 0.0, %v500
  %v502 = vpop.f32.mrb[0].mxu0
  %v503 = vadd.f32 0.0, %v502
  %504 = vmatprep.mubr.f32.mxu0 0.0
  %505 = vmatmul.mubr.f32.gmra.mrb[0].mxu0 %v63
  %v506 = vpop.f32.mrb[0].mxu0
  %v507 = vadd.f32 0.0, %v506
  %v508 = vpop.f32.mrb[0].mxu0
  %v509 = vadd.f32 0.0, %v508
  %510 = vmatprep.mubr.f32.mxu0 0.0
  %511 = vmatmul.mubr.f32.gmra.mrb[0].mxu0 %v64
  %v512 = vpop.f32.mrb[0].mxu0
  %v513 = vadd.f32 0.0, %v512
  %v514 = vpop.f32.mrb[0].mxu0
  %v515 = vadd.f32 0.0, %v514
  %516 = vmatprep.mubr.f32.mxu0 0.0
  %517 = vmatmul.mubr.f32.gmra.mrb[0].mxu0 %v65
  %v518 = vpop.f32.mrb[0].mxu0
  %v519 = vadd.f32 0.0, %v518
  %v520 = vpop.f32.mrb[0].mxu0
  %v521 = vadd.f32 0.0, %v520
  %522 = vmatprep.mubr.f32.mxu0 0.0
  %523 = vmatmul.mubr.f32.gmra.mrb[0].mxu0 %v66
  %v524 = vpop.f32.mrb[0].mxu0
  %v525 = vadd.f32 0.0, %v524
  %v526 = vpop.f32.mrb[0].mxu0
  %v527 = vadd.f32 0.0, %v526
  %528 = vmatprep.mubr.f32.mxu0 0.0
  %529 = vmatmul.mubr.f32.gmra.mrb[0].mxu0 %v67
  %v530 = vpop.f32.mrb[0].mxu0
  %v531 = vadd.f32 0.0, %v530
  %v532 = vpop.f32.mrb[0].mxu0
  %v533 = vadd.f32 0.0, %v532
  %534 = vmatprep.mubr.f32.mxu0 0.0
  %535 = vmatmul.mubr.f32.gmra.mrb[0].mxu0 %v68
  %v536 = vpop.f32.mrb[0].mxu0
  %v537 = vadd.f32 0.0, %v536
  %v538 = vpop.f32.mrb[0].mxu0
  %v539 = vadd.f32 0.0, %v538
  %540 = vmatprep.mubr.f32.mxu0 0.0
  %541 = vmatmul.mubr.f32.gmra.mrb[0].mxu0 %v69
  %v542 = vpop.f32.mrb[0].mxu0
  %v543 = vadd.f32 0.0, %v542
  %v544 = vpop.f32.mrb[0].mxu0
  %v545 = vadd.f32 0.0, %v544
  %546 = vmatprep.mubr.f32.mxu0 0.0
  %547 = vmatmul.mubr.f32.gmra.mrb[0].mxu0 %v70
  %v548 = vpop.f32.mrb[0].mxu0
  %v549 = vadd.f32 0.0, %v548
  %v550 = vpop.f32.mrb[0].mxu0
  %v551 = vadd.f32 0.0, %v550
  %552 = vmatprep.mubr.f32.mxu0 0.0
  %553 = vmatmul.mubr.f32.gmra.mrb[0].mxu0 %v71
  %v554 = vpop.f32.mrb[0].mxu0
  %v555 = vadd.f32 0.0, %v554
  %v556 = vpop.f32.mrb[0].mxu0
  %v557 = vadd.f32 0.0, %v556
  %558 = vmatprep.mubr.f32.mxu0 0.0
  %559 = vmatmul.mubr.f32.gmra.mrb[0].mxu0 %v72
  %v560 = vpop.f32.mrb[0].mxu0
  %v561 = vadd.f32 0.0, %v560
  %v562 = vpop.f32.mrb[0].mxu0
  %v563 = vadd.f32 0.0, %v562
  %564 = vmatprep.mubr.f32.mxu0 0.0
  %565 = vmatmul.mubr.f32.gmra.mrb[0].mxu0 %v73
  %v566 = vpop.f32.mrb[0].mxu0
  %v567 = vadd.f32 0.0, %v566
  %v568 = vpop.f32.mrb[0].mxu0
  %v569 = vadd.f32 0.0, %v568
  %570 = vmatprep.mubr.f32.mxu0 0.0
  %571 = vmatmul.mubr.f32.gmra.mrb[0].mxu0 %v74
  %v572 = vpop.f32.mrb[0].mxu0
  %v573 = vadd.f32 0.0, %v572
  %v574 = vpop.f32.mrb[0].mxu0
  %v575 = vadd.f32 0.0, %v574
  %576 = vmatprep.mubr.f32.mxu0 0.0
  %577 = vmatmul.mubr.f32.gmra.mrb[0].mxu0 %v75
  %v578 = vpop.f32.mrb[0].mxu0
  %v579 = vadd.f32 0.0, %v578
  %v580 = vpop.f32.mrb[0].mxu0
  %v581 = vadd.f32 0.0, %v580
  %582 = vmatprep.mubr.f32.mxu0 0.0
  %583 = vmatmul.mubr.f32.gmra.mrb[0].mxu0 %v76
  %v584 = vpop.f32.mrb[0].mxu0
  %v585 = vadd.f32 0.0, %v584
  %v586 = vpop.f32.mrb[0].mxu0
  %v587 = vadd.f32 0.0, %v586
  %588 = vmatprep.mubr.f32.mxu0 0.0
  %589 = vmatmul.mubr.f32.gmra.mrb[0].mxu0 %v77
  %v590 = vpop.f32.mrb[0].mxu0
  %v591 = vadd.f32 0.0, %v590
  %v592 = vpop.f32.mrb[0].mxu0
  %v593 = vadd.f32 0.0, %v592
  %594 = vmatprep.mubr.f32.mxu0 0.0
  %595 = vmatmul.mubr.f32.gmra.mrb[0].mxu0 %v78
  %v596 = vpop.f32.mrb[0].mxu0
  %v597 = vadd.f32 0.0, %v596
  %v598 = vpop.f32.mrb[0].mxu0
  %v599 = vadd.f32 0.0, %v598
  %600 = vmatprep.mubr.f32.mxu0 0.0
  %601 = vmatmul.mubr.f32.gmra.mrb[0].mxu0 %v79
  %v602 = vpop.f32.mrb[0].mxu0
  %v603 = vadd.f32 0.0, %v602
  %v604 = vpop.f32.mrb[0].mxu0
  %v605 = vadd.f32 0.0, %v604
  %606 = vmatprep.mubr.f32.mxu0 0.0
  %607 = vmatmul.mubr.f32.gmra.mrb[0].mxu0 %v80
  %v608 = vpop.f32.mrb[0].mxu0
  %v609 = vadd.f32 0.0, %v608
  %v610 = vpop.f32.mrb[0].mxu0
  %v611 = vadd.f32 0.0, %v610
  %612 = vmatprep.mubr.f32.mxu0 0.0
  %613 = vmatmul.mubr.f32.gmra.mrb[0].mxu0 %v81
  %v614 = vpop.f32.mrb[0].mxu0
  %v615 = vadd.f32 0.0, %v614
  %v616 = vpop.f32.mrb[0].mxu0
  %v617 = vadd.f32 0.0, %v616
  %618 = vmatprep.mubr.f32.mxu0 0.0
  %619 = vmatmul.mubr.f32.gmra.mrb[0].mxu0 %v82
  %v620 = vpop.f32.mrb[0].mxu0
  %v621 = vadd.f32 0.0, %v620
  %v622 = vpop.f32.mrb[0].mxu0
  %v623 = vadd.f32 0.0, %v622
  %624 = vmatprep.mubr.f32.mxu0 0.0
  %625 = vmatmul.mubr.f32.gmra.mrb[0].mxu0 %v83
  %v626 = vpop.f32.mrb[0].mxu0
  %v627 = vadd.f32 0.0, %v626
  %v628 = vpop.f32.mrb[0].mxu0
  %v629 = vadd.f32 0.0, %v628
  %630 = vmatprep.mubr.f32.mxu0 0.0
  %631 = vmatmul.mubr.f32.gmra.mrb[0].mxu0 %v84
  %v632 = vpop.f32.mrb[0].mxu0
  %v633 = vadd.f32 0.0, %v632
  %v634 = vpop.f32.mrb[0].mxu0
  %v635 = vadd.f32 0.0, %v634
  %636 = vmatprep.mubr.f32.mxu0 0.0
  %637 = vmatmul.mubr.f32.gmra.mrb[0].mxu0 %v85
  %v638 = vpop.f32.mrb[0].mxu0
  %v639 = vadd.f32 0.0, %v638
  %v640 = vpop.f32.mrb[0].mxu0
  %v641 = vadd.f32 0.0, %v640
  %642 = vmatprep.mubr.f32.mxu0 0.0
  %643 = vmatmul.mubr.f32.gmra.mrb[0].mxu0 %v86
  %v644 = vpop.f32.mrb[0].mxu0
  %v645 = vadd.f32 0.0, %v644
  %v646 = vpop.f32.mrb[0].mxu0
  %v647 = vadd.f32 0.0, %v646
  %648 = vmatprep.mubr.f32.mxu0 0.0
  %649 = vmatmul.mubr.f32.gmra.mrb[0].mxu0 %v87
  %v650 = vpop.f32.mrb[0].mxu0
  %v651 = vadd.f32 0.0, %v650
  %v652 = vpop.f32.mrb[0].mxu0
  %v653 = vadd.f32 0.0, %v652
  %654 = vmatprep.mubr.f32.mxu0 0.0
  %655 = vmatmul.mubr.f32.gmra.mrb[0].mxu0 %v88
  %v656 = vpop.f32.mrb[0].mxu0
  %v657 = vadd.f32 0.0, %v656
  %v658 = vpop.f32.mrb[0].mxu0
  %v659 = vadd.f32 0.0, %v658
  %660 = vmatprep.mubr.f32.mxu0 0.0
  %661 = vmatmul.mubr.f32.gmra.mrb[0].mxu0 %v89
  %v662 = vpop.f32.mrb[0].mxu0
  %v663 = vadd.f32 0.0, %v662
  %v664 = vpop.f32.mrb[0].mxu0
  %v665 = vadd.f32 0.0, %v664
  %666 = vmatprep.mubr.f32.mxu0 0.0
  %667 = vmatmul.mubr.f32.gmra.mrb[0].mxu0 %v90
  %v668 = vpop.f32.mrb[0].mxu0
  %v669 = vadd.f32 0.0, %v668
  %v670 = vpop.f32.mrb[0].mxu0
  %v671 = vadd.f32 0.0, %v670
  %672 = vmatprep.mubr.f32.mxu0 0.0
  %673 = vmatmul.mubr.f32.gmra.mrb[0].mxu0 %v91
  %v674 = vpop.f32.mrb[0].mxu0
  %v675 = vadd.f32 0.0, %v674
  %v676 = vpop.f32.mrb[0].mxu0
  %v677 = vadd.f32 0.0, %v676
  %678 = vmatprep.mubr.f32.mxu0 0.0
  %679 = vmatmul.mubr.f32.gmra.mrb[0].mxu0 %v92
  %v680 = vpop.f32.mrb[0].mxu0
  %v681 = vadd.f32 0.0, %v680
  %v682 = vpop.f32.mrb[0].mxu0
  %v683 = vadd.f32 0.0, %v682
  %684 = vmatprep.mubr.f32.mxu0 0.0
  %685 = vmatmul.mubr.f32.gmra.mrb[0].mxu0 %v93
  %v686 = vpop.f32.mrb[0].mxu0
  %v687 = vadd.f32 0.0, %v686
  %v688 = vpop.f32.mrb[0].mxu0
  %v689 = vadd.f32 0.0, %v688
  %690 = vmatprep.mubr.f32.mxu0 0.0
  %691 = vmatmul.mubr.f32.gmra.mrb[0].mxu0 %v94
  %v692 = vpop.f32.mrb[0].mxu0
  %v693 = vadd.f32 0.0, %v692
  %v694 = vpop.f32.mrb[0].mxu0
  %v695 = vadd.f32 0.0, %v694
  %696 = vmatprep.mubr.f32.mxu0 0.0
  %697 = vmatmul.mubr.f32.gmra.mrb[0].mxu0 %v95
  %v698 = vpop.f32.mrb[0].mxu0
  %v699 = vadd.f32 0.0, %v698
  %v700 = vpop.f32.mrb[0].mxu0
  %v701 = vadd.f32 0.0, %v700
  %702 = vmatprep.mubr.f32.mxu0 0.0
  %703 = vmatmul.mubr.f32.gmra.mrb[0].mxu0 %v96
  %v704 = vpop.f32.mrb[0].mxu0
  %v705 = vadd.f32 0.0, %v704
  %v706 = vpop.f32.mrb[0].mxu0
  %v707 = vadd.f32 0.0, %v706
  %708 = vmatprep.mubr.f32.mxu0 0.0
  %709 = vmatmul.mubr.f32.gmra.mrb[0].mxu0 %v97
  %v710 = vpop.f32.mrb[0].mxu0
  %v711 = vadd.f32 0.0, %v710
  %v712 = vpop.f32.mrb[0].mxu0
  %v713 = vadd.f32 0.0, %v712
  %714 = vmatprep.mubr.f32.mxu0 0.0
  %715 = vmatmul.mubr.f32.gmra.mrb[0].mxu0 %v98
  %v716 = vpop.f32.mrb[0].mxu0
  %v717 = vadd.f32 0.0, %v716
  %v718 = vpop.f32.mrb[0].mxu0
  %v719 = vadd.f32 0.0, %v718
  %720 = vmatprep.mubr.f32.mxu0 0.0
  %721 = vmatmul.mubr.f32.gmra.mrb[0].mxu0 %v99
  %v722 = vpop.f32.mrb[0].mxu0
  %v723 = vadd.f32 0.0, %v722
  %v724 = vpop.f32.mrb[0].mxu0
  %v725 = vadd.f32 0.0, %v724
  %726 = vmatprep.mubr.f32.mxu0 0.0
  %727 = vmatmul.mubr.f32.gmra.mrb[0].mxu0 %v100
  %v728 = vpop.f32.mrb[0].mxu0
  %v729 = vadd.f32 0.0, %v728
  %v730 = vpop.f32.mrb[0].mxu0
  %v731 = vadd.f32 0.0, %v730
  %732 = vmatprep.mubr.f32.mxu0 0.0
  %733 = vmatmul.mubr.f32.gmra.mrb[0].mxu0 %v101
  %v734 = vpop.f32.mrb[0].mxu0
  %v735 = vadd.f32 0.0, %v734
  %v736 = vpop.f32.mrb[0].mxu0
  %v737 = vadd.f32 0.0, %v736
  %738 = vmatprep.mubr.f32.mxu0 0.0
  %739 = vmatmul.mubr.f32.gmra.mrb[0].mxu0 %v102
  %v740 = vpop.f32.mrb[0].mxu0
  %v741 = vadd.f32 0.0, %v740
  %v742 = vpop.f32.mrb[0].mxu0
  %v743 = vadd.f32 0.0, %v742
  %744 = vmatprep.mubr.f32.mxu0 0.0
  %745 = vmatmul.mubr.f32.gmra.mrb[0].mxu0 %v103
  %v746 = vpop.f32.mrb[0].mxu0
  %v747 = vadd.f32 0.0, %v746
  %v748 = vpop.f32.mrb[0].mxu0
  %v749 = vadd.f32 0.0, %v748
  %750 = vmatprep.mubr.f32.mxu0 0.0
  %751 = vmatmul.mubr.f32.gmra.mrb[0].mxu0 %v104
  %v752 = vpop.f32.mrb[0].mxu0
  %v753 = vadd.f32 0.0, %v752
  %v754 = vpop.f32.mrb[0].mxu0
  %v755 = vadd.f32 0.0, %v754
  %756 = vmatprep.mubr.f32.mxu0 0.0
  %757 = vmatmul.mubr.f32.gmra.mrb[0].mxu0 %v105
  %v758 = vpop.f32.mrb[0].mxu0
  %v759 = vadd.f32 0.0, %v758
  %v760 = vpop.f32.mrb[0].mxu0
  %v761 = vadd.f32 0.0, %v760
  %762 = vmatprep.mubr.f32.mxu0 0.0
  %763 = vmatmul.mubr.f32.gmra.mrb[0].mxu0 %v106
  %v764 = vpop.f32.mrb[0].mxu0
  %v765 = vadd.f32 0.0, %v764
  %v766 = vpop.f32.mrb[0].mxu0
  %v767 = vadd.f32 0.0, %v766
  %768 = vmatprep.mubr.f32.mxu0 0.0
  %769 = vmatmul.mubr.f32.gmra.mrb[0].mxu0 %v107
  %v770 = vpop.f32.mrb[0].mxu0
  %v771 = vadd.f32 0.0, %v770
  %v772 = vpop.f32.mrb[0].mxu0
  %v773 = vadd.f32 0.0, %v772
  %774 = vmatprep.mubr.f32.mxu0 0.0
  %775 = vmatmul.mubr.f32.gmra.mrb[0].mxu0 %v108
  %v776 = vpop.f32.mrb[0].mxu0
  %v777 = vadd.f32 0.0, %v776
  %v778 = vpop.f32.mrb[0].mxu0
  %v779 = vadd.f32 0.0, %v778
  %780 = vmatprep.mubr.f32.mxu0 0.0
  %781 = vmatmul.mubr.f32.gmra.mrb[0].mxu0 %v109
  %v782 = vpop.f32.mrb[0].mxu0
  %v783 = vadd.f32 0.0, %v782
  %v784 = vpop.f32.mrb[0].mxu0
  %v785 = vadd.f32 0.0, %v784
  %786 = vmatprep.mubr.f32.mxu0 0.0
  %787 = vmatmul.mubr.f32.gmra.mrb[0].mxu0 %v110
  %v788 = vpop.f32.mrb[0].mxu0
  %v789 = vadd.f32 0.0, %v788
  %v790 = vpop.f32.mrb[0].mxu0
  %v791 = vadd.f32 0.0, %v790
  %792 = vmatprep.mubr.f32.mxu0 0.0
  %793 = vmatmul.mubr.f32.gmra.mrb[0].mxu0 %v111
  %v794 = vpop.f32.mrb[0].mxu0
  %v795 = vadd.f32 0.0, %v794
  %v796 = vpop.f32.mrb[0].mxu0
  %v797 = vadd.f32 0.0, %v796
  %798 = vmatprep.mubr.f32.mxu0 0.0
  %799 = vmatmul.mubr.f32.gmra.mrb[0].mxu0 %v112
  %v800 = vpop.f32.mrb[0].mxu0
  %v801 = vadd.f32 0.0, %v800
  %v802 = vpop.f32.mrb[0].mxu0
  %v803 = vadd.f32 0.0, %v802
  %804 = vmatprep.mubr.f32.mxu0 0.0
  %805 = vmatmul.mubr.f32.gmra.mrb[0].mxu0 %v113
  %v806 = vpop.f32.mrb[0].mxu0
  %v807 = vadd.f32 0.0, %v806
  %v808 = vpop.f32.mrb[0].mxu0
  %v809 = vadd.f32 0.0, %v808
  %810 = vmatprep.mubr.f32.mxu0 0.0
  %811 = vmatmul.mubr.f32.gmra.mrb[0].mxu0 %v114
  %v812 = vpop.f32.mrb[0].mxu0
  %v813 = vadd.f32 0.0, %v812
  %v814 = vpop.f32.mrb[0].mxu0
  %v815 = vadd.f32 0.0, %v814
  %816 = vmatprep.mubr.f32.mxu0 0.0
  %817 = vmatmul.mubr.f32.gmra.mrb[0].mxu0 %v115
  %v818 = vpop.f32.mrb[0].mxu0
  %v819 = vadd.f32 0.0, %v818
  %v820 = vpop.f32.mrb[0].mxu0
  %v821 = vadd.f32 0.0, %v820
  %822 = vmatprep.mubr.f32.mxu0 0.0
  %823 = vmatmul.mubr.f32.gmra.mrb[0].mxu0 %v116
  %v824 = vpop.f32.mrb[0].mxu0
  %v825 = vadd.f32 0.0, %v824
  %v826 = vpop.f32.mrb[0].mxu0
  %v827 = vadd.f32 0.0, %v826
  %828 = vmatprep.mubr.f32.mxu0 0.0
  %829 = vmatmul.mubr.f32.gmra.mrb[0].mxu0 %v117
  %v830 = vpop.f32.mrb[0].mxu0
  %v831 = vadd.f32 0.0, %v830
  %v832 = vpop.f32.mrb[0].mxu0
  %v833 = vadd.f32 0.0, %v832
  %834 = vdwg.mxu0
  %835 = vmatprep.subr.mxu0 %v121
  %836 = vmatpush1.msra.mxu0 %v120
  %837 = vmatprep.subr.mxu0 %v125
  %838 = vmatpush1.msra.mxu0 %v124
  %839 = vmatprep.subr.mxu0 %v129
  %840 = vmatpush1.msra.mxu0 %v128
  %841 = vmatprep.subr.mxu0 %v133
  %842 = vmatpush1.msra.mxu0 %v132
  %843 = vmatprep.subr.mxu0 %v137
  %844 = vmatpush1.msra.mxu0 %v136
  %845 = vmatprep.subr.mxu0 %v141
  %846 = vmatpush1.msra.mxu0 %v140
  %847 = vmatprep.subr.mxu0 %v145
  %848 = vmatpush1.msra.mxu0 %v144
  %849 = vmatprep.subr.mxu0 %v149
  %850 = vmatpush1.msra.mxu0 %v148
  %851 = vmatprep.subr.mxu0 %v153
  %852 = vmatpush1.msra.mxu0 %v152
  %853 = vmatprep.subr.mxu0 %v157
  %854 = vmatpush1.msra.mxu0 %v156
  %855 = vmatprep.subr.mxu0 %v161
  %856 = vmatpush1.msra.mxu0 %v160
  %857 = vmatprep.subr.mxu0 %v165
  %858 = vmatpush1.msra.mxu0 %v164
  %859 = vmatprep.subr.mxu0 %v169
  %860 = vmatpush1.msra.mxu0 %v168
  %861 = vmatprep.subr.mxu0 %v173
  %862 = vmatpush1.msra.mxu0 %v172
  %863 = vmatprep.subr.mxu0 %v177
  %864 = vmatpush1.msra.mxu0 %v176
  %865 = vmatprep.subr.mxu0 %v181
  %866 = vmatpush1.msra.mxu0 %v180
  %867 = vmatprep.subr.mxu0 0.0
  %868 = vmatpush1.msra.mxu0 0.0
  %869 = vmatprep.subr.mxu0 0.0
  %870 = vmatpush1.msra.mxu0 0.0
  %871 = vmatprep.subr.mxu0 0.0
  %872 = vmatpush1.msra.mxu0 0.0
  %873 = vmatprep.subr.mxu0 0.0
  %874 = vmatpush1.msra.mxu0 0.0
  %875 = vmatprep.subr.mxu0 0.0
  %876 = vmatpush1.msra.mxu0 0.0
  %877 = vmatprep.subr.mxu0 0.0
  %878 = vmatpush1.msra.mxu0 0.0
  %879 = vmatprep.subr.mxu0 0.0
  %880 = vmatpush1.msra.mxu0 0.0
  %881 = vmatprep.subr.mxu0 0.0
  %882 = vmatpush1.msra.mxu0 0.0
  %883 = vmatprep.subr.mxu0 0.0
  %884 = vmatpush1.msra.mxu0 0.0
  %885 = vmatprep.subr.mxu0 0.0
  %886 = vmatpush1.msra.mxu0 0.0
  %887 = vmatprep.subr.mxu0 0.0
  %888 = vmatpush1.msra.mxu0 0.0
  %889 = vmatprep.subr.mxu0 0.0
  %890 = vmatpush1.msra.mxu0 0.0
  %891 = vmatprep.subr.mxu0 0.0
  %892 = vmatpush1.msra.mxu0 0.0
  %893 = vmatprep.subr.mxu0 0.0
  %894 = vmatpush1.msra.mxu0 0.0
  %895 = vmatprep.subr.mxu0 0.0
  %896 = vmatpush1.msra.mxu0 0.0
  %897 = vmatprep.subr.mxu0 0.0
  %898 = vmatpush1.msra.mxu0 0.0
  %899 = vmatprep.mubr.f32.mxu0 0.0
  %900 = vmatmul.mubr.f32.gmra.mrb[0].mxu0 %v20
  %v901 = vpop.f32.mrb[0].mxu0
  %v902 = vadd.f32 0.0, %v901
  %v903 = vpop.f32.mrb[0].mxu0
  %v904 = vadd.f32 0.0, %v903
  %905 = vmatprep.mubr.f32.mxu0 0.0
  %906 = vmatmul.mubr.f32.gmra.mrb[0].mxu0 %v21
  %v907 = vpop.f32.mrb[0].mxu0
  %v908 = vadd.f32 0.0, %v907
  %v909 = vpop.f32.mrb[0].mxu0
  %v910 = vadd.f32 0.0, %v909
  %911 = vmatprep.mubr.f32.mxu0 0.0
  %912 = vmatmul.mubr.f32.gmra.mrb[0].mxu0 %v22
  %v913 = vpop.f32.mrb[0].mxu0
  %v914 = vadd.f32 0.0, %v913
  %v915 = vpop.f32.mrb[0].mxu0
  %v916 = vadd.f32 0.0, %v915
  %917 = vmatprep.mubr.f32.mxu0 0.0
  %918 = vmatmul.mubr.f32.gmra.mrb[0].mxu0 %v23
  %v919 = vpop.f32.mrb[0].mxu0
  %v920 = vadd.f32 0.0, %v919
  %v921 = vpop.f32.mrb[0].mxu0
  %v922 = vadd.f32 0.0, %v921
  %923 = vmatprep.mubr.f32.mxu0 0.0
  %924 = vmatmul.mubr.f32.gmra.mrb[0].mxu0 %v24
  %v925 = vpop.f32.mrb[0].mxu0
  %v926 = vadd.f32 0.0, %v925
  %v927 = vpop.f32.mrb[0].mxu0
  %v928 = vadd.f32 0.0, %v927
  %929 = vmatprep.mubr.f32.mxu0 0.0
  %930 = vmatmul.mubr.f32.gmra.mrb[0].mxu0 %v25
  %v931 = vpop.f32.mrb[0].mxu0
  %v932 = vadd.f32 0.0, %v931
  %v933 = vpop.f32.mrb[0].mxu0
  %v934 = vadd.f32 0.0, %v933
  %935 = vmatprep.mubr.f32.mxu0 0.0
  %936 = vmatmul.mubr.f32.gmra.mrb[0].mxu0 %v26
  %v937 = vpop.f32.mrb[0].mxu0
  %v938 = vadd.f32 0.0, %v937
  %v939 = vpop.f32.mrb[0].mxu0
  %v940 = vadd.f32 0.0, %v939
  %941 = vmatprep.mubr.f32.mxu0 0.0
  %942 = vmatmul.mubr.f32.gmra.mrb[0].mxu0 %v27
  %v943 = vpop.f32.mrb[0].mxu0
  %v944 = vadd.f32 0.0, %v943
  %v945 = vpop.f32.mrb[0].mxu0
  %v946 = vadd.f32 0.0, %v945
  %947 = vmatprep.mubr.f32.mxu0 0.0
  %948 = vmatmul.mubr.f32.gmra.mrb[0].mxu0 %v28
  %v949 = vpop.f32.mrb[0].mxu0
  %v950 = vadd.f32 0.0, %v949
  %v951 = vpop.f32.mrb[0].mxu0
  %v952 = vadd.f32 0.0, %v951
  %953 = vmatprep.mubr.f32.mxu0 0.0
  %954 = vmatmul.mubr.f32.gmra.mrb[0].mxu0 %v29
  %v955 = vpop.f32.mrb[0].mxu0
  %v956 = vadd.f32 0.0, %v955
  %v957 = vpop.f32.mrb[0].mxu0
  %v958 = vadd.f32 0.0, %v957
  %959 = vmatprep.mubr.f32.mxu0 0.0
  %960 = vmatmul.mubr.f32.gmra.mrb[0].mxu0 %v30
  %v961 = vpop.f32.mrb[0].mxu0
  %v962 = vadd.f32 0.0, %v961
  %v963 = vpop.f32.mrb[0].mxu0
  %v964 = vadd.f32 0.0, %v963
  %965 = vmatprep.mubr.f32.mxu0 0.0
  %966 = vmatmul.mubr.f32.gmra.mrb[0].mxu0 %v31
  %v967 = vpop.f32.mrb[0].mxu0
  %v968 = vadd.f32 0.0, %v967
  %v969 = vpop.f32.mrb[0].mxu0
  %v970 = vadd.f32 0.0, %v969
  %971 = vmatprep.mubr.f32.mxu0 0.0
  %972 = vmatmul.mubr.f32.gmra.mrb[0].mxu0 %v32
  %v973 = vpop.f32.mrb[0].mxu0
  %v974 = vadd.f32 0.0, %v973
  %v975 = vpop.f32.mrb[0].mxu0
  %v976 = vadd.f32 0.0, %v975
  %977 = vmatprep.mubr.f32.mxu0 0.0
  %978 = vmatmul.mubr.f32.gmra.mrb[0].mxu0 %v33
  %v979 = vpop.f32.mrb[0].mxu0
  %v980 = vadd.f32 0.0, %v979
  %v981 = vpop.f32.mrb[0].mxu0
  %v982 = vadd.f32 0.0, %v981
  %983 = vmatprep.mubr.f32.mxu0 0.0
  %984 = vmatmul.mubr.f32.gmra.mrb[0].mxu0 %v34
  %v985 = vpop.f32.mrb[0].mxu0
  %v986 = vadd.f32 0.0, %v985
  %v987 = vpop.f32.mrb[0].mxu0
  %v988 = vadd.f32 0.0, %v987
  %989 = vmatprep.mubr.f32.mxu0 0.0
  %990 = vmatmul.mubr.f32.gmra.mrb[0].mxu0 %v35
  %v991 = vpop.f32.mrb[0].mxu0
  %v992 = vadd.f32 0.0, %v991
  %v993 = vpop.f32.mrb[0].mxu0
  %v994 = vadd.f32 0.0, %v993
  %995 = vmatprep.mubr.f32.mxu0 0.0
  %996 = vmatmul.mubr.f32.gmra.mrb[0].mxu0 %v36
  %v997 = vpop.f32.mrb[0].mxu0
  %v998 = vadd.f32 0.0, %v997
  %v999 = vpop.f32.mrb[0].mxu0
  %v1000 = vadd.f32 0.0, %v999
  %1001 = vmatprep.mubr.f32.mxu0 0.0
  %1002 = vmatmul.mubr.f32.gmra.mrb[0].mxu0 %v37
  %v1003 = vpop.f32.mrb[0].mxu0
  %v1004 = vadd.f32 0.0, %v1003
  %v1005 = vpop.f32.mrb[0].mxu0
  %v1006 = vadd.f32 0.0, %v1005
  %1007 = vmatprep.mubr.f32.mxu0 0.0
  %1008 = vmatmul.mubr.f32.gmra.mrb[0].mxu0 %v38
  %v1009 = vpop.f32.mrb[0].mxu0
  %v1010 = vadd.f32 0.0, %v1009
  %v1011 = vpop.f32.mrb[0].mxu0
  %v1012 = vadd.f32 0.0, %v1011
  %1013 = vmatprep.mubr.f32.mxu0 0.0
  %1014 = vmatmul.mubr.f32.gmra.mrb[0].mxu0 %v39
  %v1015 = vpop.f32.mrb[0].mxu0
  %v1016 = vadd.f32 0.0, %v1015
  %v1017 = vpop.f32.mrb[0].mxu0
  %v1018 = vadd.f32 0.0, %v1017
  %1019 = vmatprep.mubr.f32.mxu0 0.0
  %1020 = vmatmul.mubr.f32.gmra.mrb[0].mxu0 %v40
  %v1021 = vpop.f32.mrb[0].mxu0
  %v1022 = vadd.f32 0.0, %v1021
  %v1023 = vpop.f32.mrb[0].mxu0
  %v1024 = vadd.f32 0.0, %v1023
  %1025 = vmatprep.mubr.f32.mxu0 0.0
  %1026 = vmatmul.mubr.f32.gmra.mrb[0].mxu0 %v41
  %v1027 = vpop.f32.mrb[0].mxu0
  %v1028 = vadd.f32 0.0, %v1027
  %v1029 = vpop.f32.mrb[0].mxu0
  %v1030 = vadd.f32 0.0, %v1029
  %1031 = vmatprep.mubr.f32.mxu0 0.0
  %1032 = vmatmul.mubr.f32.gmra.mrb[0].mxu0 %v42
  %v1033 = vpop.f32.mrb[0].mxu0
  %v1034 = vadd.f32 0.0, %v1033
  %v1035 = vpop.f32.mrb[0].mxu0
  %v1036 = vadd.f32 0.0, %v1035
  %1037 = vmatprep.mubr.f32.mxu0 0.0
  %1038 = vmatmul.mubr.f32.gmra.mrb[0].mxu0 %v43
  %v1039 = vpop.f32.mrb[0].mxu0
  %v1040 = vadd.f32 0.0, %v1039
  %v1041 = vpop.f32.mrb[0].mxu0
  %v1042 = vadd.f32 0.0, %v1041
  %1043 = vmatprep.mubr.f32.mxu0 0.0
  %1044 = vmatmul.mubr.f32.gmra.mrb[0].mxu0 %v44
  %v1045 = vpop.f32.mrb[0].mxu0
  %v1046 = vadd.f32 0.0, %v1045
  %v1047 = vpop.f32.mrb[0].mxu0
  %v1048 = vadd.f32 0.0, %v1047
  %1049 = vmatprep.mubr.f32.mxu0 0.0
  %1050 = vmatmul.mubr.f32.gmra.mrb[0].mxu0 %v45
  %v1051 = vpop.f32.mrb[0].mxu0
  %v1052 = vadd.f32 0.0, %v1051
  %v1053 = vpop.f32.mrb[0].mxu0
  %v1054 = vadd.f32 0.0, %v1053
  %1055 = vmatprep.mubr.f32.mxu0 0.0
  %1056 = vmatmul.mubr.f32.gmra.mrb[0].mxu0 %v46
  %v1057 = vpop.f32.mrb[0].mxu0
  %v1058 = vadd.f32 0.0, %v1057
  %v1059 = vpop.f32.mrb[0].mxu0
  %v1060 = vadd.f32 0.0, %v1059
  %1061 = vmatprep.mubr.f32.mxu0 0.0
  %1062 = vmatmul.mubr.f32.gmra.mrb[0].mxu0 %v47
  %v1063 = vpop.f32.mrb[0].mxu0
  %v1064 = vadd.f32 0.0, %v1063
  %v1065 = vpop.f32.mrb[0].mxu0
  %v1066 = vadd.f32 0.0, %v1065
  %1067 = vmatprep.mubr.f32.mxu0 0.0
  %1068 = vmatmul.mubr.f32.gmra.mrb[0].mxu0 %v48
  %v1069 = vpop.f32.mrb[0].mxu0
  %v1070 = vadd.f32 0.0, %v1069
  %v1071 = vpop.f32.mrb[0].mxu0
  %v1072 = vadd.f32 0.0, %v1071
  %1073 = vmatprep.mubr.f32.mxu0 0.0
  %1074 = vmatmul.mubr.f32.gmra.mrb[0].mxu0 %v49
  %v1075 = vpop.f32.mrb[0].mxu0
  %v1076 = vadd.f32 0.0, %v1075
  %v1077 = vpop.f32.mrb[0].mxu0
  %v1078 = vadd.f32 0.0, %v1077
  %1079 = vmatprep.mubr.f32.mxu0 0.0
  %1080 = vmatmul.mubr.f32.gmra.mrb[0].mxu0 %v50
  %v1081 = vpop.f32.mrb[0].mxu0
  %v1082 = vadd.f32 0.0, %v1081
  %v1083 = vpop.f32.mrb[0].mxu0
  %v1084 = vadd.f32 0.0, %v1083
  %1085 = vmatprep.mubr.f32.mxu0 0.0
  %1086 = vmatmul.mubr.f32.gmra.mrb[0].mxu0 %v51
  %v1087 = vpop.f32.mrb[0].mxu0
  %v1088 = vadd.f32 0.0, %v1087
  %v1089 = vpop.f32.mrb[0].mxu0
  %v1090 = vadd.f32 0.0, %v1089
  %1091 = vmatprep.mubr.f32.mxu0 0.0
  %1092 = vmatmul.mubr.f32.gmra.mrb[0].mxu0 %v52
  %v1093 = vpop.f32.mrb[0].mxu0
  %v1094 = vadd.f32 0.0, %v1093
  %v1095 = vpop.f32.mrb[0].mxu0
  %v1096 = vadd.f32 0.0, %v1095
  %1097 = vmatprep.mubr.f32.mxu0 0.0
  %1098 = vmatmul.mubr.f32.gmra.mrb[0].mxu0 %v53
  %v1099 = vpop.f32.mrb[0].mxu0
  %v1100 = vadd.f32 0.0, %v1099
  %v1101 = vpop.f32.mrb[0].mxu0
  %v1102 = vadd.f32 0.0, %v1101
  %1103 = vmatprep.mubr.f32.mxu0 0.0
  %1104 = vmatmul.mubr.f32.gmra.mrb[0].mxu0 %v54
  %v1105 = vpop.f32.mrb[0].mxu0
  %v1106 = vadd.f32 0.0, %v1105
  %v1107 = vpop.f32.mrb[0].mxu0
  %v1108 = vadd.f32 0.0, %v1107
  %1109 = vmatprep.mubr.f32.mxu0 0.0
  %1110 = vmatmul.mubr.f32.gmra.mrb[0].mxu0 %v55
  %v1111 = vpop.f32.mrb[0].mxu0
  %v1112 = vadd.f32 0.0, %v1111
  %v1113 = vpop.f32.mrb[0].mxu0
  %v1114 = vadd.f32 0.0, %v1113
  %1115 = vmatprep.mubr.f32.mxu0 0.0
  %1116 = vmatmul.mubr.f32.gmra.mrb[0].mxu0 %v56
  %v1117 = vpop.f32.mrb[0].mxu0
  %v1118 = vadd.f32 0.0, %v1117
  %v1119 = vpop.f32.mrb[0].mxu0
  %v1120 = vadd.f32 0.0, %v1119
  %1121 = vmatprep.mubr.f32.mxu0 0.0
  %1122 = vmatmul.mubr.f32.gmra.mrb[0].mxu0 %v57
  %v1123 = vpop.f32.mrb[0].mxu0
  %v1124 = vadd.f32 0.0, %v1123
  %v1125 = vpop.f32.mrb[0].mxu0
  %v1126 = vadd.f32 0.0, %v1125
  %1127 = vmatprep.mubr.f32.mxu0 0.0
  %1128 = vmatmul.mubr.f32.gmra.mrb[0].mxu0 %v58
  %v1129 = vpop.f32.mrb[0].mxu0
  %v1130 = vadd.f32 0.0, %v1129
  %v1131 = vpop.f32.mrb[0].mxu0
  %v1132 = vadd.f32 0.0, %v1131
  %1133 = vmatprep.mubr.f32.mxu0 0.0
  %1134 = vmatmul.mubr.f32.gmra.mrb[0].mxu0 %v59
  %v1135 = vpop.f32.mrb[0].mxu0
  %v1136 = vadd.f32 0.0, %v1135
  %v1137 = vpop.f32.mrb[0].mxu0
  %v1138 = vadd.f32 0.0, %v1137
  %1139 = vmatprep.mubr.f32.mxu0 0.0
  %1140 = vmatmul.mubr.f32.gmra.mrb[0].mxu0 %v60
  %v1141 = vpop.f32.mrb[0].mxu0
  %v1142 = vadd.f32 0.0, %v1141
  %v1143 = vpop.f32.mrb[0].mxu0
  %v1144 = vadd.f32 0.0, %v1143
  %1145 = vmatprep.mubr.f32.mxu0 0.0
  %1146 = vmatmul.mubr.f32.gmra.mrb[0].mxu0 %v61
  %v1147 = vpop.f32.mrb[0].mxu0
  %v1148 = vadd.f32 0.0, %v1147
  %v1149 = vpop.f32.mrb[0].mxu0
  %v1150 = vadd.f32 0.0, %v1149
  %1151 = vmatprep.mubr.f32.mxu0 0.0
  %1152 = vmatmul.mubr.f32.gmra.mrb[0].mxu0 %v62
  %v1153 = vpop.f32.mrb[0].mxu0
  %v1154 = vadd.f32 0.0, %v1153
  %v1155 = vpop.f32.mrb[0].mxu0
  %v1156 = vadd.f32 0.0, %v1155
  %1157 = vmatprep.mubr.f32.mxu0 0.0
  %1158 = vmatmul.mubr.f32.gmra.mrb[0].mxu0 %v63
  %v1159 = vpop.f32.mrb[0].mxu0
  %v1160 = vadd.f32 0.0, %v1159
  %v1161 = vpop.f32.mrb[0].mxu0
  %v1162 = vadd.f32 0.0, %v1161
  %1163 = vmatprep.mubr.f32.mxu0 0.0
  %1164 = vmatmul.mubr.f32.gmra.mrb[0].mxu0 %v64
  %v1165 = vpop.f32.mrb[0].mxu0
  %v1166 = vadd.f32 0.0, %v1165
  %v1167 = vpop.f32.mrb[0].mxu0
  %v1168 = vadd.f32 0.0, %v1167
  %1169 = vmatprep.mubr.f32.mxu0 0.0
  %1170 = vmatmul.mubr.f32.gmra.mrb[0].mxu0 %v65
  %v1171 = vpop.f32.mrb[0].mxu0
  %v1172 = vadd.f32 0.0, %v1171
  %v1173 = vpop.f32.mrb[0].mxu0
  %v1174 = vadd.f32 0.0, %v1173
  %1175 = vmatprep.mubr.f32.mxu0 0.0
  %1176 = vmatmul.mubr.f32.gmra.mrb[0].mxu0 %v66
  %v1177 = vpop.f32.mrb[0].mxu0
  %v1178 = vadd.f32 0.0, %v1177
  %v1179 = vpop.f32.mrb[0].mxu0
  %v1180 = vadd.f32 0.0, %v1179
  %1181 = vmatprep.mubr.f32.mxu0 0.0
  %1182 = vmatmul.mubr.f32.gmra.mrb[0].mxu0 %v67
  %v1183 = vpop.f32.mrb[0].mxu0
  %v1184 = vadd.f32 0.0, %v1183
  %v1185 = vpop.f32.mrb[0].mxu0
  %v1186 = vadd.f32 0.0, %v1185
  %1187 = vmatprep.mubr.f32.mxu0 0.0
  %1188 = vmatmul.mubr.f32.gmra.mrb[0].mxu0 %v68
  %v1189 = vpop.f32.mrb[0].mxu0
  %v1190 = vadd.f32 0.0, %v1189
  %v1191 = vpop.f32.mrb[0].mxu0
  %v1192 = vadd.f32 0.0, %v1191
  %1193 = vmatprep.mubr.f32.mxu0 0.0
  %1194 = vmatmul.mubr.f32.gmra.mrb[0].mxu0 %v69
  %v1195 = vpop.f32.mrb[0].mxu0
  %v1196 = vadd.f32 0.0, %v1195
  %v1197 = vpop.f32.mrb[0].mxu0
  %v1198 = vadd.f32 0.0, %v1197
  %1199 = vmatprep.mubr.f32.mxu0 0.0
  %1200 = vmatmul.mubr.f32.gmra.mrb[0].mxu0 %v70
  %v1201 = vpop.f32.mrb[0].mxu0
  %v1202 = vadd.f32 0.0, %v1201
  %v1203 = vpop.f32.mrb[0].mxu0
  %v1204 = vadd.f32 0.0, %v1203
  %1205 = vmatprep.mubr.f32.mxu0 0.0
  %1206 = vmatmul.mubr.f32.gmra.mrb[0].mxu0 %v71
  %v1207 = vpop.f32.mrb[0].mxu0
  %v1208 = vadd.f32 0.0, %v1207
  %v1209 = vpop.f32.mrb[0].mxu0
  %v1210 = vadd.f32 0.0, %v1209
  %1211 = vmatprep.mubr.f32.mxu0 0.0
  %1212 = vmatmul.mubr.f32.gmra.mrb[0].mxu0 %v72
  %v1213 = vpop.f32.mrb[0].mxu0
  %v1214 = vadd.f32 0.0, %v1213
  %v1215 = vpop.f32.mrb[0].mxu0
  %v1216 = vadd.f32 0.0, %v1215
  %1217 = vmatprep.mubr.f32.mxu0 0.0
  %1218 = vmatmul.mubr.f32.gmra.mrb[0].mxu0 %v73
  %v1219 = vpop.f32.mrb[0].mxu0
  %v1220 = vadd.f32 0.0, %v1219
  %v1221 = vpop.f32.mrb[0].mxu0
  %v1222 = vadd.f32 0.0, %v1221
  %1223 = vmatprep.mubr.f32.mxu0 0.0
  %1224 = vmatmul.mubr.f32.gmra.mrb[0].mxu0 %v74
  %v1225 = vpop.f32.mrb[0].mxu0
  %v1226 = vadd.f32 0.0, %v1225
  %v1227 = vpop.f32.mrb[0].mxu0
  %v1228 = vadd.f32 0.0, %v1227
  %1229 = vmatprep.mubr.f32.mxu0 0.0
  %1230 = vmatmul.mubr.f32.gmra.mrb[0].mxu0 %v75
  %v1231 = vpop.f32.mrb[0].mxu0
  %v1232 = vadd.f32 0.0, %v1231
  %v1233 = vpop.f32.mrb[0].mxu0
  %v1234 = vadd.f32 0.0, %v1233
  %1235 = vmatprep.mubr.f32.mxu0 0.0
  %1236 = vmatmul.mubr.f32.gmra.mrb[0].mxu0 %v76
  %v1237 = vpop.f32.mrb[0].mxu0
  %v1238 = vadd.f32 0.0, %v1237
  %v1239 = vpop.f32.mrb[0].mxu0
  %v1240 = vadd.f32 0.0, %v1239
  %1241 = vmatprep.mubr.f32.mxu0 0.0
  %1242 = vmatmul.mubr.f32.gmra.mrb[0].mxu0 %v77
  %v1243 = vpop.f32.mrb[0].mxu0
  %v1244 = vadd.f32 0.0, %v1243
  %v1245 = vpop.f32.mrb[0].mxu0
  %v1246 = vadd.f32 0.0, %v1245
  %1247 = vmatprep.mubr.f32.mxu0 0.0
  %1248 = vmatmul.mubr.f32.gmra.mrb[0].mxu0 %v78
  %v1249 = vpop.f32.mrb[0].mxu0
  %v1250 = vadd.f32 0.0, %v1249
  %v1251 = vpop.f32.mrb[0].mxu0
  %v1252 = vadd.f32 0.0, %v1251
  %1253 = vmatprep.mubr.f32.mxu0 0.0
  %1254 = vmatmul.mubr.f32.gmra.mrb[0].mxu0 %v79
  %v1255 = vpop.f32.mrb[0].mxu0
  %v1256 = vadd.f32 0.0, %v1255
  %v1257 = vpop.f32.mrb[0].mxu0
  %v1258 = vadd.f32 0.0, %v1257
  %1259 = vmatprep.mubr.f32.mxu0 0.0
  %1260 = vmatmul.mubr.f32.gmra.mrb[0].mxu0 %v80
  %v1261 = vpop.f32.mrb[0].mxu0
  %v1262 = vadd.f32 0.0, %v1261
  %v1263 = vpop.f32.mrb[0].mxu0
  %v1264 = vadd.f32 0.0, %v1263
  %1265 = vmatprep.mubr.f32.mxu0 0.0
  %1266 = vmatmul.mubr.f32.gmra.mrb[0].mxu0 %v81
  %v1267 = vpop.f32.mrb[0].mxu0
  %v1268 = vadd.f32 0.0, %v1267
  %v1269 = vpop.f32.mrb[0].mxu0
  %v1270 = vadd.f32 0.0, %v1269
  %1271 = vmatprep.mubr.f32.mxu0 0.0
  %1272 = vmatmul.mubr.f32.gmra.mrb[0].mxu0 %v82
  %v1273 = vpop.f32.mrb[0].mxu0
  %v1274 = vadd.f32 0.0, %v1273
  %v1275 = vpop.f32.mrb[0].mxu0
  %v1276 = vadd.f32 0.0, %v1275
  %1277 = vmatprep.mubr.f32.mxu0 0.0
  %1278 = vmatmul.mubr.f32.gmra.mrb[0].mxu0 %v83
  %v1279 = vpop.f32.mrb[0].mxu0
  %v1280 = vadd.f32 0.0, %v1279
  %v1281 = vpop.f32.mrb[0].mxu0
  %v1282 = vadd.f32 0.0, %v1281
  %1283 = vmatprep.mubr.f32.mxu0 0.0
  %1284 = vmatmul.mubr.f32.gmra.mrb[0].mxu0 %v84
  %v1285 = vpop.f32.mrb[0].mxu0
  %v1286 = vadd.f32 0.0, %v1285
  %v1287 = vpop.f32.mrb[0].mxu0
  %v1288 = vadd.f32 0.0, %v1287
  %1289 = vmatprep.mubr.f32.mxu0 0.0
  %1290 = vmatmul.mubr.f32.gmra.mrb[0].mxu0 %v85
  %v1291 = vpop.f32.mrb[0].mxu0
  %v1292 = vadd.f32 0.0, %v1291
  %v1293 = vpop.f32.mrb[0].mxu0
  %v1294 = vadd.f32 0.0, %v1293
  %1295 = vmatprep.mubr.f32.mxu0 0.0
  %1296 = vmatmul.mubr.f32.gmra.mrb[0].mxu0 %v86
  %v1297 = vpop.f32.mrb[0].mxu0
  %v1298 = vadd.f32 0.0, %v1297
  %v1299 = vpop.f32.mrb[0].mxu0
  %v1300 = vadd.f32 0.0, %v1299
  %1301 = vmatprep.mubr.f32.mxu0 0.0
  %1302 = vmatmul.mubr.f32.gmra.mrb[0].mxu0 %v87
  %v1303 = vpop.f32.mrb[0].mxu0
  %v1304 = vadd.f32 0.0, %v1303
  %v1305 = vpop.f32.mrb[0].mxu0
  %v1306 = vadd.f32 0.0, %v1305
  %1307 = vmatprep.mubr.f32.mxu0 0.0
  %1308 = vmatmul.mubr.f32.gmra.mrb[0].mxu0 %v88
  %v1309 = vpop.f32.mrb[0].mxu0
  %v1310 = vadd.f32 0.0, %v1309
  %v1311 = vpop.f32.mrb[0].mxu0
  %v1312 = vadd.f32 0.0, %v1311
  %1313 = vmatprep.mubr.f32.mxu0 0.0
  %1314 = vmatmul.mubr.f32.gmra.mrb[0].mxu0 %v89
  %v1315 = vpop.f32.mrb[0].mxu0
  %v1316 = vadd.f32 0.0, %v1315
  %v1317 = vpop.f32.mrb[0].mxu0
  %v1318 = vadd.f32 0.0, %v1317
  %1319 = vmatprep.mubr.f32.mxu0 0.0
  %1320 = vmatmul.mubr.f32.gmra.mrb[0].mxu0 %v90
  %v1321 = vpop.f32.mrb[0].mxu0
  %v1322 = vadd.f32 0.0, %v1321
  %v1323 = vpop.f32.mrb[0].mxu0
  %v1324 = vadd.f32 0.0, %v1323
  %1325 = vmatprep.mubr.f32.mxu0 0.0
  %1326 = vmatmul.mubr.f32.gmra.mrb[0].mxu0 %v91
  %v1327 = vpop.f32.mrb[0].mxu0
  %v1328 = vadd.f32 0.0, %v1327
  %v1329 = vpop.f32.mrb[0].mxu0
  %v1330 = vadd.f32 0.0, %v1329
  %1331 = vmatprep.mubr.f32.mxu0 0.0
  %1332 = vmatmul.mubr.f32.gmra.mrb[0].mxu0 %v92
  %v1333 = vpop.f32.mrb[0].mxu0
  %v1334 = vadd.f32 0.0, %v1333
  %v1335 = vpop.f32.mrb[0].mxu0
  %v1336 = vadd.f32 0.0, %v1335
  %1337 = vmatprep.mubr.f32.mxu0 0.0
  %1338 = vmatmul.mubr.f32.gmra.mrb[0].mxu0 %v93
  %v1339 = vpop.f32.mrb[0].mxu0
  %v1340 = vadd.f32 0.0, %v1339
  %v1341 = vpop.f32.mrb[0].mxu0
  %v1342 = vadd.f32 0.0, %v1341
  %1343 = vmatprep.mubr.f32.mxu0 0.0
  %1344 = vmatmul.mubr.f32.gmra.mrb[0].mxu0 %v94
  %v1345 = vpop.f32.mrb[0].mxu0
  %v1346 = vadd.f32 0.0, %v1345
  %v1347 = vpop.f32.mrb[0].mxu0
  %v1348 = vadd.f32 0.0, %v1347
  %1349 = vmatprep.mubr.f32.mxu0 0.0
  %1350 = vmatmul.mubr.f32.gmra.mrb[0].mxu0 %v95
  %v1351 = vpop.f32.mrb[0].mxu0
  %v1352 = vadd.f32 0.0, %v1351
  %v1353 = vpop.f32.mrb[0].mxu0
  %v1354 = vadd.f32 0.0, %v1353
  %1355 = vmatprep.mubr.f32.mxu0 0.0
  %1356 = vmatmul.mubr.f32.gmra.mrb[0].mxu0 %v96
  %v1357 = vpop.f32.mrb[0].mxu0
  %v1358 = vadd.f32 0.0, %v1357
  %v1359 = vpop.f32.mrb[0].mxu0
  %v1360 = vadd.f32 0.0, %v1359
  %1361 = vmatprep.mubr.f32.mxu0 0.0
  %1362 = vmatmul.mubr.f32.gmra.mrb[0].mxu0 %v97
  %v1363 = vpop.f32.mrb[0].mxu0
  %v1364 = vadd.f32 0.0, %v1363
  %v1365 = vpop.f32.mrb[0].mxu0
  %v1366 = vadd.f32 0.0, %v1365
  %1367 = vmatprep.mubr.f32.mxu0 0.0
  %1368 = vmatmul.mubr.f32.gmra.mrb[0].mxu0 %v98
  %v1369 = vpop.f32.mrb[0].mxu0
  %v1370 = vadd.f32 0.0, %v1369
  %v1371 = vpop.f32.mrb[0].mxu0
  %v1372 = vadd.f32 0.0, %v1371
  %1373 = vmatprep.mubr.f32.mxu0 0.0
  %1374 = vmatmul.mubr.f32.gmra.mrb[0].mxu0 %v99
  %v1375 = vpop.f32.mrb[0].mxu0
  %v1376 = vadd.f32 0.0, %v1375
  %v1377 = vpop.f32.mrb[0].mxu0
  %v1378 = vadd.f32 0.0, %v1377
  %1379 = vmatprep.mubr.f32.mxu0 0.0
  %1380 = vmatmul.mubr.f32.gmra.mrb[0].mxu0 %v100
  %v1381 = vpop.f32.mrb[0].mxu0
  %v1382 = vadd.f32 0.0, %v1381
  %v1383 = vpop.f32.mrb[0].mxu0
  %v1384 = vadd.f32 0.0, %v1383
  %1385 = vmatprep.mubr.f32.mxu0 0.0
  %1386 = vmatmul.mubr.f32.gmra.mrb[0].mxu0 %v101
  %v1387 = vpop.f32.mrb[0].mxu0
  %v1388 = vadd.f32 0.0, %v1387
  %v1389 = vpop.f32.mrb[0].mxu0
  %v1390 = vadd.f32 0.0, %v1389
  %1391 = vmatprep.mubr.f32.mxu0 0.0
  %1392 = vmatmul.mubr.f32.gmra.mrb[0].mxu0 %v102
  %v1393 = vpop.f32.mrb[0].mxu0
  %v1394 = vadd.f32 0.0, %v1393
  %v1395 = vpop.f32.mrb[0].mxu0
  %v1396 = vadd.f32 0.0, %v1395
  %1397 = vmatprep.mubr.f32.mxu0 0.0
  %1398 = vmatmul.mubr.f32.gmra.mrb[0].mxu0 %v103
  %v1399 = vpop.f32.mrb[0].mxu0
  %v1400 = vadd.f32 0.0, %v1399
  %v1401 = vpop.f32.mrb[0].mxu0
  %v1402 = vadd.f32 0.0, %v1401
  %1403 = vmatprep.mubr.f32.mxu0 0.0
  %1404 = vmatmul.mubr.f32.gmra.mrb[0].mxu0 %v104
  %v1405 = vpop.f32.mrb[0].mxu0
  %v1406 = vadd.f32 0.0, %v1405
  %v1407 = vpop.f32.mrb[0].mxu0
  %v1408 = vadd.f32 0.0, %v1407
  %1409 = vmatprep.mubr.f32.mxu0 0.0
  %1410 = vmatmul.mubr.f32.gmra.mrb[0].mxu0 %v105
  %v1411 = vpop.f32.mrb[0].mxu0
  %v1412 = vadd.f32 0.0, %v1411
  %v1413 = vpop.f32.mrb[0].mxu0
  %v1414 = vadd.f32 0.0, %v1413
  %1415 = vmatprep.mubr.f32.mxu0 0.0
  %1416 = vmatmul.mubr.f32.gmra.mrb[0].mxu0 %v106
  %v1417 = vpop.f32.mrb[0].mxu0
  %v1418 = vadd.f32 0.0, %v1417
  %v1419 = vpop.f32.mrb[0].mxu0
  %v1420 = vadd.f32 0.0, %v1419
  %1421 = vmatprep.mubr.f32.mxu0 0.0
  %1422 = vmatmul.mubr.f32.gmra.mrb[0].mxu0 %v107
  %v1423 = vpop.f32.mrb[0].mxu0
  %v1424 = vadd.f32 0.0, %v1423
  %v1425 = vpop.f32.mrb[0].mxu0
  %v1426 = vadd.f32 0.0, %v1425
  %1427 = vmatprep.mubr.f32.mxu0 0.0
  %1428 = vmatmul.mubr.f32.gmra.mrb[0].mxu0 %v108
  %v1429 = vpop.f32.mrb[0].mxu0
  %v1430 = vadd.f32 0.0, %v1429
  %v1431 = vpop.f32.mrb[0].mxu0
  %v1432 = vadd.f32 0.0, %v1431
  %1433 = vmatprep.mubr.f32.mxu0 0.0
  %1434 = vmatmul.mubr.f32.gmra.mrb[0].mxu0 %v109
  %v1435 = vpop.f32.mrb[0].mxu0
  %v1436 = vadd.f32 0.0, %v1435
  %v1437 = vpop.f32.mrb[0].mxu0
  %v1438 = vadd.f32 0.0, %v1437
  %1439 = vmatprep.mubr.f32.mxu0 0.0
  %1440 = vmatmul.mubr.f32.gmra.mrb[0].mxu0 %v110
  %v1441 = vpop.f32.mrb[0].mxu0
  %v1442 = vadd.f32 0.0, %v1441
  %v1443 = vpop.f32.mrb[0].mxu0
  %v1444 = vadd.f32 0.0, %v1443
  %1445 = vmatprep.mubr.f32.mxu0 0.0
  %1446 = vmatmul.mubr.f32.gmra.mrb[0].mxu0 %v111
  %v1447 = vpop.f32.mrb[0].mxu0
  %v1448 = vadd.f32 0.0, %v1447
  %v1449 = vpop.f32.mrb[0].mxu0
  %v1450 = vadd.f32 0.0, %v1449
  %1451 = vmatprep.mubr.f32.mxu0 0.0
  %1452 = vmatmul.mubr.f32.gmra.mrb[0].mxu0 %v112
  %v1453 = vpop.f32.mrb[0].mxu0
  %v1454 = vadd.f32 0.0, %v1453
  %v1455 = vpop.f32.mrb[0].mxu0
  %v1456 = vadd.f32 0.0, %v1455
  %1457 = vmatprep.mubr.f32.mxu0 0.0
  %1458 = vmatmul.mubr.f32.gmra.mrb[0].mxu0 %v113
  %v1459 = vpop.f32.mrb[0].mxu0
  %v1460 = vadd.f32 0.0, %v1459
  %v1461 = vpop.f32.mrb[0].mxu0
  %v1462 = vadd.f32 0.0, %v1461
  %1463 = vmatprep.mubr.f32.mxu0 0.0
  %1464 = vmatmul.mubr.f32.gmra.mrb[0].mxu0 %v114
  %v1465 = vpop.f32.mrb[0].mxu0
  %v1466 = vadd.f32 0.0, %v1465
  %v1467 = vpop.f32.mrb[0].mxu0
  %v1468 = vadd.f32 0.0, %v1467
  %1469 = vmatprep.mubr.f32.mxu0 0.0
  %1470 = vmatmul.mubr.f32.gmra.mrb[0].mxu0 %v115
  %v1471 = vpop.f32.mrb[0].mxu0
  %v1472 = vadd.f32 0.0, %v1471
  %v1473 = vpop.f32.mrb[0].mxu0
  %v1474 = vadd.f32 0.0, %v1473
  %1475 = vmatprep.mubr.f32.mxu0 0.0
  %1476 = vmatmul.mubr.f32.gmra.mrb[0].mxu0 %v116
  %v1477 = vpop.f32.mrb[0].mxu0
  %v1478 = vadd.f32 0.0, %v1477
  %v1479 = vpop.f32.mrb[0].mxu0
  %v1480 = vadd.f32 0.0, %v1479
  %1481 = vmatprep.mubr.f32.mxu0 0.0
  %1482 = vmatmul.mubr.f32.gmra.mrb[0].mxu0 %v117
  %v1483 = vpop.f32.mrb[0].mxu0
  %v1484 = vadd.f32 0.0, %v1483
  %v1485 = vpop.f32.mrb[0].mxu0
  %v1486 = vadd.f32 0.0, %v1485
  %1487 = vdwg.mxu0
  %v1488 = vadd.f32 %v249, %v255
  %v1489 = vadd.f32 %v1488, %v261
  %v1490 = vadd.f32 %v1489, %v267
  %v1491 = vadd.f32 %v1490, %v273
  %v1492 = vadd.f32 %v1491, %v279
  %v1493 = vadd.f32 %v1492, %v285
  %v1494 = vadd.f32 %v1493, %v291
  %v1495 = vadd.f32 %v1494, %v297
  %v1496 = vadd.f32 %v1495, %v303
  %v1497 = vadd.f32 %v1496, %v309
  %v1498 = vadd.f32 %v1497, %v315
  %v1499 = vadd.f32 %v1498, %v321
  %v1500 = vadd.f32 %v1499, %v327
  %v1501 = vadd.f32 %v1500, %v333
  %v1502 = vadd.f32 %v1501, %v339
  %v1503 = vadd.f32 %v1502, %v345
  %v1504 = vadd.f32 %v1503, %v351
  %v1505 = vadd.f32 %v1504, %v357
  %v1506 = vadd.f32 %v1505, %v363
  %v1507 = vadd.f32 %v1506, %v369
  %v1508 = vadd.f32 %v1507, %v375
  %v1509 = vadd.f32 %v1508, %v381
  %v1510 = vadd.f32 %v1509, %v387
  %v1511 = vadd.f32 %v1510, %v393
  %v1512 = vadd.f32 %v1511, %v399
  %v1513 = vadd.f32 %v1512, %v405
  %v1514 = vadd.f32 %v1513, %v411
  %v1515 = vadd.f32 %v1514, %v417
  %v1516 = vadd.f32 %v1515, %v423
  %v1517 = vadd.f32 %v1516, %v429
  %v1518 = vadd.f32 %v1517, %v435
  %v1519 = vadd.f32 %v1518, %v441
  %v1520 = vadd.f32 %v1519, %v447
  %v1521 = vadd.f32 %v1520, %v453
  %v1522 = vadd.f32 %v1521, %v459
  %v1523 = vadd.f32 %v1522, %v465
  %v1524 = vadd.f32 %v1523, %v471
  %v1525 = vadd.f32 %v1524, %v477
  %v1526 = vadd.f32 %v1525, %v483
  %v1527 = vadd.f32 %v1526, %v489
  %v1528 = vadd.f32 %v1527, %v495
  %v1529 = vadd.f32 %v1528, %v501
  %v1530 = vadd.f32 %v1529, %v507
  %v1531 = vadd.f32 %v1530, %v513
  %v1532 = vadd.f32 %v1531, %v519
  %v1533 = vadd.f32 %v1532, %v525
  %v1534 = vadd.f32 %v1533, %v531
  %v1535 = vadd.f32 %v1534, %v537
  %v1536 = vadd.f32 %v1535, %v543
  %v1537 = vadd.f32 %v1536, %v549
  %v1538 = vadd.f32 %v1537, %v555
  %v1539 = vadd.f32 %v1538, %v561
  %v1540 = vadd.f32 %v1539, %v567
  %v1541 = vadd.f32 %v1540, %v573
  %v1542 = vadd.f32 %v1541, %v579
  %v1543 = vadd.f32 %v1542, %v585
  %v1544 = vadd.f32 %v1543, %v591
  %v1545 = vadd.f32 %v1544, %v597
  %v1546 = vadd.f32 %v1545, %v603
  %v1547 = vadd.f32 %v1546, %v609
  %v1548 = vadd.f32 %v1547, %v615
  %v1549 = vadd.f32 %v1548, %v621
  %v1550 = vadd.f32 %v1549, %v627
  %v1551 = vadd.f32 %v1550, %v633
  %v1552 = vadd.f32 %v1551, %v639
  %v1553 = vadd.f32 %v1552, %v645
  %v1554 = vadd.f32 %v1553, %v651
  %v1555 = vadd.f32 %v1554, %v657
  %v1556 = vadd.f32 %v1555, %v663
  %v1557 = vadd.f32 %v1556, %v669
  %v1558 = vadd.f32 %v1557, %v675
  %v1559 = vadd.f32 %v1558, %v681
  %v1560 = vadd.f32 %v1559, %v687
  %v1561 = vadd.f32 %v1560, %v693
  %v1562 = vadd.f32 %v1561, %v699
  %v1563 = vadd.f32 %v1562, %v705
  %v1564 = vadd.f32 %v1563, %v711
  %v1565 = vadd.f32 %v1564, %v717
  %v1566 = vadd.f32 %v1565, %v723
  %v1567 = vadd.f32 %v1566, %v729
  %v1568 = vadd.f32 %v1567, %v735
  %v1569 = vadd.f32 %v1568, %v741
  %v1570 = vadd.f32 %v1569, %v747
  %v1571 = vadd.f32 %v1570, %v753
  %v1572 = vadd.f32 %v1571, %v759
  %v1573 = vadd.f32 %v1572, %v765
  %v1574 = vadd.f32 %v1573, %v771
  %v1575 = vadd.f32 %v1574, %v777
  %v1576 = vadd.f32 %v1575, %v783
  %v1577 = vadd.f32 %v1576, %v789
  %v1578 = vadd.f32 %v1577, %v795
  %v1579 = vadd.f32 %v1578, %v801
  %v1580 = vadd.f32 %v1579, %v807
  %v1581 = vadd.f32 %v1580, %v813
  %v1582 = vadd.f32 %v1581, %v819
  %v1583 = vadd.f32 %v1582, %v825
  %v1584 = vadd.f32 %v1583, %v831
  %v1585 = vrot.slane %v1584, 4
  %v1586 = vadd.f32 %v1584, %v1585
  %v1587 = vrot.slane %v1586, 2
  %v1588 = vadd.f32 %v1586, %v1587
  %v1589 = vrot.slane %v1588, 1
  %v1590 = vadd.f32 %v1588, %v1589
  %v1591 = vadd.f32 %v251, %v257
  %v1592 = vadd.f32 %v1591, %v263
  %v1593 = vadd.f32 %v1592, %v269
  %v1594 = vadd.f32 %v1593, %v275
  %v1595 = vadd.f32 %v1594, %v281
  %v1596 = vadd.f32 %v1595, %v287
  %v1597 = vadd.f32 %v1596, %v293
  %v1598 = vadd.f32 %v1597, %v299
  %v1599 = vadd.f32 %v1598, %v305
  %v1600 = vadd.f32 %v1599, %v311
  %v1601 = vadd.f32 %v1600, %v317
  %v1602 = vadd.f32 %v1601, %v323
  %v1603 = vadd.f32 %v1602, %v329
  %v1604 = vadd.f32 %v1603, %v335
  %v1605 = vadd.f32 %v1604, %v341
  %v1606 = vadd.f32 %v1605, %v347
  %v1607 = vadd.f32 %v1606, %v353
  %v1608 = vadd.f32 %v1607, %v359
  %v1609 = vadd.f32 %v1608, %v365
  %v1610 = vadd.f32 %v1609, %v371
  %v1611 = vadd.f32 %v1610, %v377
  %v1612 = vadd.f32 %v1611, %v383
  %v1613 = vadd.f32 %v1612, %v389
  %v1614 = vadd.f32 %v1613, %v395
  %v1615 = vadd.f32 %v1614, %v401
  %v1616 = vadd.f32 %v1615, %v407
  %v1617 = vadd.f32 %v1616, %v413
  %v1618 = vadd.f32 %v1617, %v419
  %v1619 = vadd.f32 %v1618, %v425
  %v1620 = vadd.f32 %v1619, %v431
  %v1621 = vadd.f32 %v1620, %v437
  %v1622 = vadd.f32 %v1621, %v443
  %v1623 = vadd.f32 %v1622, %v449
  %v1624 = vadd.f32 %v1623, %v455
  %v1625 = vadd.f32 %v1624, %v461
  %v1626 = vadd.f32 %v1625, %v467
  %v1627 = vadd.f32 %v1626, %v473
  %v1628 = vadd.f32 %v1627, %v479
  %v1629 = vadd.f32 %v1628, %v485
  %v1630 = vadd.f32 %v1629, %v491
  %v1631 = vadd.f32 %v1630, %v497
  %v1632 = vadd.f32 %v1631, %v503
  %v1633 = vadd.f32 %v1632, %v509
  %v1634 = vadd.f32 %v1633, %v515
  %v1635 = vadd.f32 %v1634, %v521
  %v1636 = vadd.f32 %v1635, %v527
  %v1637 = vadd.f32 %v1636, %v533
  %v1638 = vadd.f32 %v1637, %v539
  %v1639 = vadd.f32 %v1638, %v545
  %v1640 = vadd.f32 %v1639, %v551
  %v1641 = vadd.f32 %v1640, %v557
  %v1642 = vadd.f32 %v1641, %v563
  %v1643 = vadd.f32 %v1642, %v569
  %v1644 = vadd.f32 %v1643, %v575
  %v1645 = vadd.f32 %v1644, %v581
  %v1646 = vadd.f32 %v1645, %v587
  %v1647 = vadd.f32 %v1646, %v593
  %v1648 = vadd.f32 %v1647, %v599
  %v1649 = vadd.f32 %v1648, %v605
  %v1650 = vadd.f32 %v1649, %v611
  %v1651 = vadd.f32 %v1650, %v617
  %v1652 = vadd.f32 %v1651, %v623
  %v1653 = vadd.f32 %v1652, %v629
  %v1654 = vadd.f32 %v1653, %v635
  %v1655 = vadd.f32 %v1654, %v641
  %v1656 = vadd.f32 %v1655, %v647
  %v1657 = vadd.f32 %v1656, %v653
  %v1658 = vadd.f32 %v1657, %v659
  %v1659 = vadd.f32 %v1658, %v665
  %v1660 = vadd.f32 %v1659, %v671
  %v1661 = vadd.f32 %v1660, %v677
  %v1662 = vadd.f32 %v1661, %v683
  %v1663 = vadd.f32 %v1662, %v689
  %v1664 = vadd.f32 %v1663, %v695
  %v1665 = vadd.f32 %v1664, %v701
  %v1666 = vadd.f32 %v1665, %v707
  %v1667 = vadd.f32 %v1666, %v713
  %v1668 = vadd.f32 %v1667, %v719
  %v1669 = vadd.f32 %v1668, %v725
  %v1670 = vadd.f32 %v1669, %v731
  %v1671 = vadd.f32 %v1670, %v737
  %v1672 = vadd.f32 %v1671, %v743
  %v1673 = vadd.f32 %v1672, %v749
  %v1674 = vadd.f32 %v1673, %v755
  %v1675 = vadd.f32 %v1674, %v761
  %v1676 = vadd.f32 %v1675, %v767
  %v1677 = vadd.f32 %v1676, %v773
  %v1678 = vadd.f32 %v1677, %v779
  %v1679 = vadd.f32 %v1678, %v785
  %v1680 = vadd.f32 %v1679, %v791
  %v1681 = vadd.f32 %v1680, %v797
  %v1682 = vadd.f32 %v1681, %v803
  %v1683 = vadd.f32 %v1682, %v809
  %v1684 = vadd.f32 %v1683, %v815
  %v1685 = vadd.f32 %v1684, %v821
  %v1686 = vadd.f32 %v1685, %v827
  %v1687 = vadd.f32 %v1686, %v833
  %v1688 = vrot.slane %v1687, 4
  %v1689 = vadd.f32 %v1687, %v1688
  %v1690 = vrot.slane %v1689, 2
  %v1691 = vadd.f32 %v1689, %v1690
  %v1692 = vrot.slane %v1691, 1
  %v1693 = vadd.f32 %v1691, %v1692
  %v1694 = vadd.f32 %v902, %v908
  %v1695 = vadd.f32 %v1694, %v914
  %v1696 = vadd.f32 %v1695, %v920
  %v1697 = vadd.f32 %v1696, %v926
  %v1698 = vadd.f32 %v1697, %v932
  %v1699 = vadd.f32 %v1698, %v938
  %v1700 = vadd.f32 %v1699, %v944
  %v1701 = vadd.f32 %v1700, %v950
  %v1702 = vadd.f32 %v1701, %v956
  %v1703 = vadd.f32 %v1702, %v962
  %v1704 = vadd.f32 %v1703, %v968
  %v1705 = vadd.f32 %v1704, %v974
  %v1706 = vadd.f32 %v1705, %v980
  %v1707 = vadd.f32 %v1706, %v986
  %v1708 = vadd.f32 %v1707, %v992
  %v1709 = vadd.f32 %v1708, %v998
  %v1710 = vadd.f32 %v1709, %v1004
  %v1711 = vadd.f32 %v1710, %v1010
  %v1712 = vadd.f32 %v1711, %v1016
  %v1713 = vadd.f32 %v1712, %v1022
  %v1714 = vadd.f32 %v1713, %v1028
  %v1715 = vadd.f32 %v1714, %v1034
  %v1716 = vadd.f32 %v1715, %v1040
  %v1717 = vadd.f32 %v1716, %v1046
  %v1718 = vadd.f32 %v1717, %v1052
  %v1719 = vadd.f32 %v1718, %v1058
  %v1720 = vadd.f32 %v1719, %v1064
  %v1721 = vadd.f32 %v1720, %v1070
  %v1722 = vadd.f32 %v1721, %v1076
  %v1723 = vadd.f32 %v1722, %v1082
  %v1724 = vadd.f32 %v1723, %v1088
  %v1725 = vadd.f32 %v1724, %v1094
  %v1726 = vadd.f32 %v1725, %v1100
  %v1727 = vadd.f32 %v1726, %v1106
  %v1728 = vadd.f32 %v1727, %v1112
  %v1729 = vadd.f32 %v1728, %v1118
  %v1730 = vadd.f32 %v1729, %v1124
  %v1731 = vadd.f32 %v1730, %v1130
  %v1732 = vadd.f32 %v1731, %v1136
  %v1733 = vadd.f32 %v1732, %v1142
  %v1734 = vadd.f32 %v1733, %v1148
  %v1735 = vadd.f32 %v1734, %v1154
  %v1736 = vadd.f32 %v1735, %v1160
  %v1737 = vadd.f32 %v1736, %v1166
  %v1738 = vadd.f32 %v1737, %v1172
  %v1739 = vadd.f32 %v1738, %v1178
  %v1740 = vadd.f32 %v1739, %v1184
  %v1741 = vadd.f32 %v1740, %v1190
  %v1742 = vadd.f32 %v1741, %v1196
  %v1743 = vadd.f32 %v1742, %v1202
  %v1744 = vadd.f32 %v1743, %v1208
  %v1745 = vadd.f32 %v1744, %v1214
  %v1746 = vadd.f32 %v1745, %v1220
  %v1747 = vadd.f32 %v1746, %v1226
  %v1748 = vadd.f32 %v1747, %v1232
  %v1749 = vadd.f32 %v1748, %v1238
  %v1750 = vadd.f32 %v1749, %v1244
  %v1751 = vadd.f32 %v1750, %v1250
  %v1752 = vadd.f32 %v1751, %v1256
  %v1753 = vadd.f32 %v1752, %v1262
  %v1754 = vadd.f32 %v1753, %v1268
  %v1755 = vadd.f32 %v1754, %v1274
  %v1756 = vadd.f32 %v1755, %v1280
  %v1757 = vadd.f32 %v1756, %v1286
  %v1758 = vadd.f32 %v1757, %v1292
  %v1759 = vadd.f32 %v1758, %v1298
  %v1760 = vadd.f32 %v1759, %v1304
  %v1761 = vadd.f32 %v1760, %v1310
  %v1762 = vadd.f32 %v1761, %v1316
  %v1763 = vadd.f32 %v1762, %v1322
  %v1764 = vadd.f32 %v1763, %v1328
  %v1765 = vadd.f32 %v1764, %v1334
  %v1766 = vadd.f32 %v1765, %v1340
  %v1767 = vadd.f32 %v1766, %v1346
  %v1768 = vadd.f32 %v1767, %v1352
  %v1769 = vadd.f32 %v1768, %v1358
  %v1770 = vadd.f32 %v1769, %v1364
  %v1771 = vadd.f32 %v1770, %v1370
  %v1772 = vadd.f32 %v1771, %v1376
  %v1773 = vadd.f32 %v1772, %v1382
  %v1774 = vadd.f32 %v1773, %v1388
  %v1775 = vadd.f32 %v1774, %v1394
  %v1776 = vadd.f32 %v1775, %v1400
  %v1777 = vadd.f32 %v1776, %v1406
  %v1778 = vadd.f32 %v1777, %v1412
  %v1779 = vadd.f32 %v1778, %v1418
  %v1780 = vadd.f32 %v1779, %v1424
  %v1781 = vadd.f32 %v1780, %v1430
  %v1782 = vadd.f32 %v1781, %v1436
  %v1783 = vadd.f32 %v1782, %v1442
  %v1784 = vadd.f32 %v1783, %v1448
  %v1785 = vadd.f32 %v1784, %v1454
  %v1786 = vadd.f32 %v1785, %v1460
  %v1787 = vadd.f32 %v1786, %v1466
  %v1788 = vadd.f32 %v1787, %v1472
  %v1789 = vadd.f32 %v1788, %v1478
  %v1790 = vadd.f32 %v1789, %v1484
  %v1791 = vrot.slane %v1790, 4
  %v1792 = vadd.f32 %v1790, %v1791
  %v1793 = vrot.slane %v1792, 2
  %v1794 = vadd.f32 %v1792, %v1793
  %v1795 = vrot.slane %v1794, 1
  %v1796 = vadd.f32 %v1794, %v1795
  %v1797 = vadd.f32 %v904, %v910
  %v1798 = vadd.f32 %v1797, %v916
  %v1799 = vadd.f32 %v1798, %v922
  %v1800 = vadd.f32 %v1799, %v928
  %v1801 = vadd.f32 %v1800, %v934
  %v1802 = vadd.f32 %v1801, %v940
  %v1803 = vadd.f32 %v1802, %v946
  %v1804 = vadd.f32 %v1803, %v952
  %v1805 = vadd.f32 %v1804, %v958
  %v1806 = vadd.f32 %v1805, %v964
  %v1807 = vadd.f32 %v1806, %v970
  %v1808 = vadd.f32 %v1807, %v976
  %v1809 = vadd.f32 %v1808, %v982
  %v1810 = vadd.f32 %v1809, %v988
  %v1811 = vadd.f32 %v1810, %v994
  %v1812 = vadd.f32 %v1811, %v1000
  %v1813 = vadd.f32 %v1812, %v1006
  %v1814 = vadd.f32 %v1813, %v1012
  %v1815 = vadd.f32 %v1814, %v1018
  %v1816 = vadd.f32 %v1815, %v1024
  %v1817 = vadd.f32 %v1816, %v1030
  %v1818 = vadd.f32 %v1817, %v1036
  %v1819 = vadd.f32 %v1818, %v1042
  %v1820 = vadd.f32 %v1819, %v1048
  %v1821 = vadd.f32 %v1820, %v1054
  %v1822 = vadd.f32 %v1821, %v1060
  %v1823 = vadd.f32 %v1822, %v1066
  %v1824 = vadd.f32 %v1823, %v1072
  %v1825 = vadd.f32 %v1824, %v1078
  %v1826 = vadd.f32 %v1825, %v1084
  %v1827 = vadd.f32 %v1826, %v1090
  %v1828 = vadd.f32 %v1827, %v1096
  %v1829 = vadd.f32 %v1828, %v1102
  %v1830 = vadd.f32 %v1829, %v1108
  %v1831 = vadd.f32 %v1830, %v1114
  %v1832 = vadd.f32 %v1831, %v1120
  %v1833 = vadd.f32 %v1832, %v1126
  %v1834 = vadd.f32 %v1833, %v1132
  %v1835 = vadd.f32 %v1834, %v1138
  %v1836 = vadd.f32 %v1835, %v1144
  %v1837 = vadd.f32 %v1836, %v1150
  %v1838 = vadd.f32 %v1837, %v1156
  %v1839 = vadd.f32 %v1838, %v1162
  %v1840 = vadd.f32 %v1839, %v1168
  %v1841 = vadd.f32 %v1840, %v1174
  %v1842 = vadd.f32 %v1841, %v1180
  %v1843 = vadd.f32 %v1842, %v1186
  %v1844 = vadd.f32 %v1843, %v1192
  %v1845 = vadd.f32 %v1844, %v1198
  %v1846 = vadd.f32 %v1845, %v1204
  %v1847 = vadd.f32 %v1846, %v1210
  %v1848 = vadd.f32 %v1847, %v1216
  %v1849 = vadd.f32 %v1848, %v1222
  %v1850 = vadd.f32 %v1849, %v1228
  %v1851 = vadd.f32 %v1850, %v1234
  %v1852 = vadd.f32 %v1851, %v1240
  %v1853 = vadd.f32 %v1852, %v1246
  %v1854 = vadd.f32 %v1853, %v1252
  %v1855 = vadd.f32 %v1854, %v1258
  %v1856 = vadd.f32 %v1855, %v1264
  %v1857 = vadd.f32 %v1856, %v1270
  %v1858 = vadd.f32 %v1857, %v1276
  %v1859 = vadd.f32 %v1858, %v1282
  %v1860 = vadd.f32 %v1859, %v1288
  %v1861 = vadd.f32 %v1860, %v1294
  %v1862 = vadd.f32 %v1861, %v1300
  %v1863 = vadd.f32 %v1862, %v1306
  %v1864 = vadd.f32 %v1863, %v1312
  %v1865 = vadd.f32 %v1864, %v1318
  %v1866 = vadd.f32 %v1865, %v1324
  %v1867 = vadd.f32 %v1866, %v1330
  %v1868 = vadd.f32 %v1867, %v1336
  %v1869 = vadd.f32 %v1868, %v1342
  %v1870 = vadd.f32 %v1869, %v1348
  %v1871 = vadd.f32 %v1870, %v1354
  %v1872 = vadd.f32 %v1871, %v1360
  %v1873 = vadd.f32 %v1872, %v1366
  %v1874 = vadd.f32 %v1873, %v1372
  %v1875 = vadd.f32 %v1874, %v1378
  %v1876 = vadd.f32 %v1875, %v1384
  %v1877 = vadd.f32 %v1876, %v1390
  %v1878 = vadd.f32 %v1877, %v1396
  %v1879 = vadd.f32 %v1878, %v1402
  %v1880 = vadd.f32 %v1879, %v1408
  %v1881 = vadd.f32 %v1880, %v1414
  %v1882 = vadd.f32 %v1881, %v1420
  %v1883 = vadd.f32 %v1882, %v1426
  %v1884 = vadd.f32 %v1883, %v1432
  %v1885 = vadd.f32 %v1884, %v1438
  %v1886 = vadd.f32 %v1885, %v1444
  %v1887 = vadd.f32 %v1886, %v1450
  %v1888 = vadd.f32 %v1887, %v1456
  %v1889 = vadd.f32 %v1888, %v1462
  %v1890 = vadd.f32 %v1889, %v1468
  %v1891 = vadd.f32 %v1890, %v1474
  %v1892 = vadd.f32 %v1891, %v1480
  %v1893 = vadd.f32 %v1892, %v1486
  %v1894 = vrot.slane %v1893, 4
  %v1895 = vadd.f32 %v1893, %v1894
  %v1896 = vrot.slane %v1895, 2
  %v1897 = vadd.f32 %v1895, %v1896
  %v1898 = vrot.slane %v1897, 1
  %v1899 = vadd.f32 %v1897, %v1898
  %v1900 = vmul.f32 %v1590, 0.0012755102
  %v1901 = vmul.f32 %v1693, 0.0012755102
  %v1902 = vmul.f32 %v1796, 0.0012755102
  %v1903 = vmul.f32 %v1899, 0.0012755102
  %v1904 = vmul.f32 %v249, %v249
  %v1905 = vmul.f32 %v251, %v251
  %v1906 = vmul.f32 %v902, %v902
  %v1907 = vmul.f32 %v904, %v904
  %v1908 = vmul.f32 %v255, %v255
  %v1909 = vmul.f32 %v257, %v257
  %v1910 = vmul.f32 %v908, %v908
  %v1911 = vmul.f32 %v910, %v910
  %v1912 = vmul.f32 %v261, %v261
  %v1913 = vmul.f32 %v263, %v263
  %v1914 = vmul.f32 %v914, %v914
  %v1915 = vmul.f32 %v916, %v916
  %v1916 = vmul.f32 %v267, %v267
  %v1917 = vmul.f32 %v269, %v269
  %v1918 = vmul.f32 %v920, %v920
  %v1919 = vmul.f32 %v922, %v922
  %v1920 = vmul.f32 %v273, %v273
  %v1921 = vmul.f32 %v275, %v275
  %v1922 = vmul.f32 %v926, %v926
  %v1923 = vmul.f32 %v928, %v928
  %v1924 = vmul.f32 %v279, %v279
  %v1925 = vmul.f32 %v281, %v281
  %v1926 = vmul.f32 %v932, %v932
  %v1927 = vmul.f32 %v934, %v934
  %v1928 = vmul.f32 %v285, %v285
  %v1929 = vmul.f32 %v287, %v287
  %v1930 = vmul.f32 %v938, %v938
  %v1931 = vmul.f32 %v940, %v940
  %v1932 = vmul.f32 %v291, %v291
  %v1933 = vmul.f32 %v293, %v293
  %v1934 = vmul.f32 %v944, %v944
  %v1935 = vmul.f32 %v946, %v946
  %v1936 = vmul.f32 %v297, %v297
  %v1937 = vmul.f32 %v299, %v299
  %v1938 = vmul.f32 %v950, %v950
  %v1939 = vmul.f32 %v952, %v952
  %v1940 = vmul.f32 %v303, %v303
  %v1941 = vmul.f32 %v305, %v305
  %v1942 = vmul.f32 %v956, %v956
  %v1943 = vmul.f32 %v958, %v958
  %v1944 = vmul.f32 %v309, %v309
  %v1945 = vmul.f32 %v311, %v311
  %v1946 = vmul.f32 %v962, %v962
  %v1947 = vmul.f32 %v964, %v964
  %v1948 = vmul.f32 %v315, %v315
  %v1949 = vmul.f32 %v317, %v317
  %v1950 = vmul.f32 %v968, %v968
  %v1951 = vmul.f32 %v970, %v970
  %v1952 = vmul.f32 %v321, %v321
  %v1953 = vmul.f32 %v323, %v323
  %v1954 = vmul.f32 %v974, %v974
  %v1955 = vmul.f32 %v976, %v976
  %v1956 = vmul.f32 %v327, %v327
  %v1957 = vmul.f32 %v329, %v329
  %v1958 = vmul.f32 %v980, %v980
  %v1959 = vmul.f32 %v982, %v982
  %v1960 = vmul.f32 %v333, %v333
  %v1961 = vmul.f32 %v335, %v335
  %v1962 = vmul.f32 %v986, %v986
  %v1963 = vmul.f32 %v988, %v988
  %v1964 = vmul.f32 %v339, %v339
  %v1965 = vmul.f32 %v341, %v341
  %v1966 = vmul.f32 %v992, %v992
  %v1967 = vmul.f32 %v994, %v994
  %v1968 = vmul.f32 %v345, %v345
  %v1969 = vmul.f32 %v347, %v347
  %v1970 = vmul.f32 %v998, %v998
  %v1971 = vmul.f32 %v1000, %v1000
  %v1972 = vmul.f32 %v351, %v351
  %v1973 = vmul.f32 %v353, %v353
  %v1974 = vmul.f32 %v1004, %v1004
  %v1975 = vmul.f32 %v1006, %v1006
  %v1976 = vmul.f32 %v357, %v357
  %v1977 = vmul.f32 %v359, %v359
  %v1978 = vmul.f32 %v1010, %v1010
  %v1979 = vmul.f32 %v1012, %v1012
  %v1980 = vmul.f32 %v363, %v363
  %v1981 = vmul.f32 %v365, %v365
  %v1982 = vmul.f32 %v1016, %v1016
  %v1983 = vmul.f32 %v1018, %v1018
  %v1984 = vmul.f32 %v369, %v369
  %v1985 = vmul.f32 %v371, %v371
  %v1986 = vmul.f32 %v1022, %v1022
  %v1987 = vmul.f32 %v1024, %v1024
  %v1988 = vmul.f32 %v375, %v375
  %v1989 = vmul.f32 %v377, %v377
  %v1990 = vmul.f32 %v1028, %v1028
  %v1991 = vmul.f32 %v1030, %v1030
  %v1992 = vmul.f32 %v381, %v381
  %v1993 = vmul.f32 %v383, %v383
  %v1994 = vmul.f32 %v1034, %v1034
  %v1995 = vmul.f32 %v1036, %v1036
  %v1996 = vmul.f32 %v387, %v387
  %v1997 = vmul.f32 %v389, %v389
  %v1998 = vmul.f32 %v1040, %v1040
  %v1999 = vmul.f32 %v1042, %v1042
  %v2000 = vmul.f32 %v393, %v393
  %v2001 = vmul.f32 %v395, %v395
  %v2002 = vmul.f32 %v1046, %v1046
  %v2003 = vmul.f32 %v1048, %v1048
  %v2004 = vmul.f32 %v399, %v399
  %v2005 = vmul.f32 %v401, %v401
  %v2006 = vmul.f32 %v1052, %v1052
  %v2007 = vmul.f32 %v1054, %v1054
  %v2008 = vmul.f32 %v405, %v405
  %v2009 = vmul.f32 %v407, %v407
  %v2010 = vmul.f32 %v1058, %v1058
  %v2011 = vmul.f32 %v1060, %v1060
  %v2012 = vmul.f32 %v411, %v411
  %v2013 = vmul.f32 %v413, %v413
  %v2014 = vmul.f32 %v1064, %v1064
  %v2015 = vmul.f32 %v1066, %v1066
  %v2016 = vmul.f32 %v417, %v417
  %v2017 = vmul.f32 %v419, %v419
  %v2018 = vmul.f32 %v1070, %v1070
  %v2019 = vmul.f32 %v1072, %v1072
  %v2020 = vmul.f32 %v423, %v423
  %v2021 = vmul.f32 %v425, %v425
  %v2022 = vmul.f32 %v1076, %v1076
  %v2023 = vmul.f32 %v1078, %v1078
  %v2024 = vmul.f32 %v429, %v429
  %v2025 = vmul.f32 %v431, %v431
  %v2026 = vmul.f32 %v1082, %v1082
  %v2027 = vmul.f32 %v1084, %v1084
  %v2028 = vmul.f32 %v435, %v435
  %v2029 = vmul.f32 %v437, %v437
  %v2030 = vmul.f32 %v1088, %v1088
  %v2031 = vmul.f32 %v1090, %v1090
  %v2032 = vmul.f32 %v441, %v441
  %v2033 = vmul.f32 %v443, %v443
  %v2034 = vmul.f32 %v1094, %v1094
  %v2035 = vmul.f32 %v1096, %v1096
  %v2036 = vmul.f32 %v447, %v447
  %v2037 = vmul.f32 %v449, %v449
  %v2038 = vmul.f32 %v1100, %v1100
  %v2039 = vmul.f32 %v1102, %v1102
  %v2040 = vmul.f32 %v453, %v453
  %v2041 = vmul.f32 %v455, %v455
  %v2042 = vmul.f32 %v1106, %v1106
  %v2043 = vmul.f32 %v1108, %v1108
  %v2044 = vmul.f32 %v459, %v459
  %v2045 = vmul.f32 %v461, %v461
  %v2046 = vmul.f32 %v1112, %v1112
  %v2047 = vmul.f32 %v1114, %v1114
  %v2048 = vmul.f32 %v465, %v465
  %v2049 = vmul.f32 %v467, %v467
  %v2050 = vmul.f32 %v1118, %v1118
  %v2051 = vmul.f32 %v1120, %v1120
  %v2052 = vmul.f32 %v471, %v471
  %v2053 = vmul.f32 %v473, %v473
  %v2054 = vmul.f32 %v1124, %v1124
  %v2055 = vmul.f32 %v1126, %v1126
  %v2056 = vmul.f32 %v477, %v477
  %v2057 = vmul.f32 %v479, %v479
  %v2058 = vmul.f32 %v1130, %v1130
  %v2059 = vmul.f32 %v1132, %v1132
  %v2060 = vmul.f32 %v483, %v483
  %v2061 = vmul.f32 %v485, %v485
  %v2062 = vmul.f32 %v1136, %v1136
  %v2063 = vmul.f32 %v1138, %v1138
  %v2064 = vmul.f32 %v489, %v489
  %v2065 = vmul.f32 %v491, %v491
  %v2066 = vmul.f32 %v1142, %v1142
  %v2067 = vmul.f32 %v1144, %v1144
  %v2068 = vmul.f32 %v495, %v495
  %v2069 = vmul.f32 %v497, %v497
  %v2070 = vmul.f32 %v1148, %v1148
  %v2071 = vmul.f32 %v1150, %v1150
  %v2072 = vmul.f32 %v501, %v501
  %v2073 = vmul.f32 %v503, %v503
  %v2074 = vmul.f32 %v1154, %v1154
  %v2075 = vmul.f32 %v1156, %v1156
  %v2076 = vmul.f32 %v507, %v507
  %v2077 = vmul.f32 %v509, %v509
  %v2078 = vmul.f32 %v1160, %v1160
  %v2079 = vmul.f32 %v1162, %v1162
  %v2080 = vmul.f32 %v513, %v513
  %v2081 = vmul.f32 %v515, %v515
  %v2082 = vmul.f32 %v1166, %v1166
  %v2083 = vmul.f32 %v1168, %v1168
  %v2084 = vmul.f32 %v519, %v519
  %v2085 = vmul.f32 %v521, %v521
  %v2086 = vmul.f32 %v1172, %v1172
  %v2087 = vmul.f32 %v1174, %v1174
  %v2088 = vmul.f32 %v525, %v525
  %v2089 = vmul.f32 %v527, %v527
  %v2090 = vmul.f32 %v1178, %v1178
  %v2091 = vmul.f32 %v1180, %v1180
  %v2092 = vmul.f32 %v531, %v531
  %v2093 = vmul.f32 %v533, %v533
  %v2094 = vmul.f32 %v1184, %v1184
  %v2095 = vmul.f32 %v1186, %v1186
  %v2096 = vmul.f32 %v537, %v537
  %v2097 = vmul.f32 %v539, %v539
  %v2098 = vmul.f32 %v1190, %v1190
  %v2099 = vmul.f32 %v1192, %v1192
  %v2100 = vmul.f32 %v543, %v543
  %v2101 = vmul.f32 %v545, %v545
  %v2102 = vmul.f32 %v1196, %v1196
  %v2103 = vmul.f32 %v1198, %v1198
  %v2104 = vmul.f32 %v549, %v549
  %v2105 = vmul.f32 %v551, %v551
  %v2106 = vmul.f32 %v1202, %v1202
  %v2107 = vmul.f32 %v1204, %v1204
  %v2108 = vmul.f32 %v555, %v555
  %v2109 = vmul.f32 %v557, %v557
  %v2110 = vmul.f32 %v1208, %v1208
  %v2111 = vmul.f32 %v1210, %v1210
  %v2112 = vmul.f32 %v561, %v561
  %v2113 = vmul.f32 %v563, %v563
  %v2114 = vmul.f32 %v1214, %v1214
  %v2115 = vmul.f32 %v1216, %v1216
  %v2116 = vmul.f32 %v567, %v567
  %v2117 = vmul.f32 %v569, %v569
  %v2118 = vmul.f32 %v1220, %v1220
  %v2119 = vmul.f32 %v1222, %v1222
  %v2120 = vmul.f32 %v573, %v573
  %v2121 = vmul.f32 %v575, %v575
  %v2122 = vmul.f32 %v1226, %v1226
  %v2123 = vmul.f32 %v1228, %v1228
  %v2124 = vmul.f32 %v579, %v579
  %v2125 = vmul.f32 %v581, %v581
  %v2126 = vmul.f32 %v1232, %v1232
  %v2127 = vmul.f32 %v1234, %v1234
  %v2128 = vmul.f32 %v585, %v585
  %v2129 = vmul.f32 %v587, %v587
  %v2130 = vmul.f32 %v1238, %v1238
  %v2131 = vmul.f32 %v1240, %v1240
  %v2132 = vmul.f32 %v591, %v591
  %v2133 = vmul.f32 %v593, %v593
  %v2134 = vmul.f32 %v1244, %v1244
  %v2135 = vmul.f32 %v1246, %v1246
  %v2136 = vmul.f32 %v597, %v597
  %v2137 = vmul.f32 %v599, %v599
  %v2138 = vmul.f32 %v1250, %v1250
  %v2139 = vmul.f32 %v1252, %v1252
  %v2140 = vmul.f32 %v603, %v603
  %v2141 = vmul.f32 %v605, %v605
  %v2142 = vmul.f32 %v1256, %v1256
  %v2143 = vmul.f32 %v1258, %v1258
  %v2144 = vmul.f32 %v609, %v609
  %v2145 = vmul.f32 %v611, %v611
  %v2146 = vmul.f32 %v1262, %v1262
  %v2147 = vmul.f32 %v1264, %v1264
  %v2148 = vmul.f32 %v615, %v615
  %v2149 = vmul.f32 %v617, %v617
  %v2150 = vmul.f32 %v1268, %v1268
  %v2151 = vmul.f32 %v1270, %v1270
  %v2152 = vmul.f32 %v621, %v621
  %v2153 = vmul.f32 %v623, %v623
  %v2154 = vmul.f32 %v1274, %v1274
  %v2155 = vmul.f32 %v1276, %v1276
  %v2156 = vmul.f32 %v627, %v627
  %v2157 = vmul.f32 %v629, %v629
  %v2158 = vmul.f32 %v1280, %v1280
  %v2159 = vmul.f32 %v1282, %v1282
  %v2160 = vmul.f32 %v633, %v633
  %v2161 = vmul.f32 %v635, %v635
  %v2162 = vmul.f32 %v1286, %v1286
  %v2163 = vmul.f32 %v1288, %v1288
  %v2164 = vmul.f32 %v639, %v639
  %v2165 = vmul.f32 %v641, %v641
  %v2166 = vmul.f32 %v1292, %v1292
  %v2167 = vmul.f32 %v1294, %v1294
  %v2168 = vmul.f32 %v645, %v645
  %v2169 = vmul.f32 %v647, %v647
  %v2170 = vmul.f32 %v1298, %v1298
  %v2171 = vmul.f32 %v1300, %v1300
  %v2172 = vmul.f32 %v651, %v651
  %v2173 = vmul.f32 %v653, %v653
  %v2174 = vmul.f32 %v1304, %v1304
  %v2175 = vmul.f32 %v1306, %v1306
  %v2176 = vmul.f32 %v657, %v657
  %v2177 = vmul.f32 %v659, %v659
  %v2178 = vmul.f32 %v1310, %v1310
  %v2179 = vmul.f32 %v1312, %v1312
  %v2180 = vmul.f32 %v663, %v663
  %v2181 = vmul.f32 %v665, %v665
  %v2182 = vmul.f32 %v1316, %v1316
  %v2183 = vmul.f32 %v1318, %v1318
  %v2184 = vmul.f32 %v669, %v669
  %v2185 = vmul.f32 %v671, %v671
  %v2186 = vmul.f32 %v1322, %v1322
  %v2187 = vmul.f32 %v1324, %v1324
  %v2188 = vmul.f32 %v675, %v675
  %v2189 = vmul.f32 %v677, %v677
  %v2190 = vmul.f32 %v1328, %v1328
  %v2191 = vmul.f32 %v1330, %v1330
  %v2192 = vmul.f32 %v681, %v681
  %v2193 = vmul.f32 %v683, %v683
  %v2194 = vmul.f32 %v1334, %v1334
  %v2195 = vmul.f32 %v1336, %v1336
  %v2196 = vmul.f32 %v687, %v687
  %v2197 = vmul.f32 %v689, %v689
  %v2198 = vmul.f32 %v1340, %v1340
  %v2199 = vmul.f32 %v1342, %v1342
  %v2200 = vmul.f32 %v693, %v693
  %v2201 = vmul.f32 %v695, %v695
  %v2202 = vmul.f32 %v1346, %v1346
  %v2203 = vmul.f32 %v1348, %v1348
  %v2204 = vmul.f32 %v699, %v699
  %v2205 = vmul.f32 %v701, %v701
  %v2206 = vmul.f32 %v1352, %v1352
  %v2207 = vmul.f32 %v1354, %v1354
  %v2208 = vmul.f32 %v705, %v705
  %v2209 = vmul.f32 %v707, %v707
  %v2210 = vmul.f32 %v1358, %v1358
  %v2211 = vmul.f32 %v1360, %v1360
  %v2212 = vmul.f32 %v711, %v711
  %v2213 = vmul.f32 %v713, %v713
  %v2214 = vmul.f32 %v1364, %v1364
  %v2215 = vmul.f32 %v1366, %v1366
  %v2216 = vmul.f32 %v717, %v717
  %v2217 = vmul.f32 %v719, %v719
  %v2218 = vmul.f32 %v1370, %v1370
  %v2219 = vmul.f32 %v1372, %v1372
  %v2220 = vmul.f32 %v723, %v723
  %v2221 = vmul.f32 %v725, %v725
  %v2222 = vmul.f32 %v1376, %v1376
  %v2223 = vmul.f32 %v1378, %v1378
  %v2224 = vmul.f32 %v729, %v729
  %v2225 = vmul.f32 %v731, %v731
  %v2226 = vmul.f32 %v1382, %v1382
  %v2227 = vmul.f32 %v1384, %v1384
  %v2228 = vmul.f32 %v735, %v735
  %v2229 = vmul.f32 %v737, %v737
  %v2230 = vmul.f32 %v1388, %v1388
  %v2231 = vmul.f32 %v1390, %v1390
  %v2232 = vmul.f32 %v741, %v741
  %v2233 = vmul.f32 %v743, %v743
  %v2234 = vmul.f32 %v1394, %v1394
  %v2235 = vmul.f32 %v1396, %v1396
  %v2236 = vmul.f32 %v747, %v747
  %v2237 = vmul.f32 %v749, %v749
  %v2238 = vmul.f32 %v1400, %v1400
  %v2239 = vmul.f32 %v1402, %v1402
  %v2240 = vmul.f32 %v753, %v753
  %v2241 = vmul.f32 %v755, %v755
  %v2242 = vmul.f32 %v1406, %v1406
  %v2243 = vmul.f32 %v1408, %v1408
  %v2244 = vmul.f32 %v759, %v759
  %v2245 = vmul.f32 %v761, %v761
  %v2246 = vmul.f32 %v1412, %v1412
  %v2247 = vmul.f32 %v1414, %v1414
  %v2248 = vmul.f32 %v765, %v765
  %v2249 = vmul.f32 %v767, %v767
  %v2250 = vmul.f32 %v1418, %v1418
  %v2251 = vmul.f32 %v1420, %v1420
  %v2252 = vmul.f32 %v771, %v771
  %v2253 = vmul.f32 %v773, %v773
  %v2254 = vmul.f32 %v1424, %v1424
  %v2255 = vmul.f32 %v1426, %v1426
  %v2256 = vmul.f32 %v777, %v777
  %v2257 = vmul.f32 %v779, %v779
  %v2258 = vmul.f32 %v1430, %v1430
  %v2259 = vmul.f32 %v1432, %v1432
  %v2260 = vmul.f32 %v783, %v783
  %v2261 = vmul.f32 %v785, %v785
  %v2262 = vmul.f32 %v1436, %v1436
  %v2263 = vmul.f32 %v1438, %v1438
  %v2264 = vmul.f32 %v789, %v789
  %v2265 = vmul.f32 %v791, %v791
  %v2266 = vmul.f32 %v1442, %v1442
  %v2267 = vmul.f32 %v1444, %v1444
  %v2268 = vmul.f32 %v795, %v795
  %v2269 = vmul.f32 %v797, %v797
  %v2270 = vmul.f32 %v1448, %v1448
  %v2271 = vmul.f32 %v1450, %v1450
  %v2272 = vmul.f32 %v801, %v801
  %v2273 = vmul.f32 %v803, %v803
  %v2274 = vmul.f32 %v1454, %v1454
  %v2275 = vmul.f32 %v1456, %v1456
  %v2276 = vmul.f32 %v807, %v807
  %v2277 = vmul.f32 %v809, %v809
  %v2278 = vmul.f32 %v1460, %v1460
  %v2279 = vmul.f32 %v1462, %v1462
  %v2280 = vmul.f32 %v813, %v813
  %v2281 = vmul.f32 %v815, %v815
  %v2282 = vmul.f32 %v1466, %v1466
  %v2283 = vmul.f32 %v1468, %v1468
  %v2284 = vmul.f32 %v819, %v819
  %v2285 = vmul.f32 %v821, %v821
  %v2286 = vmul.f32 %v1472, %v1472
  %v2287 = vmul.f32 %v1474, %v1474
  %v2288 = vmul.f32 %v825, %v825
  %v2289 = vmul.f32 %v827, %v827
  %v2290 = vmul.f32 %v1478, %v1478
  %v2291 = vmul.f32 %v1480, %v1480
  %v2292 = vmul.f32 %v831, %v831
  %v2293 = vmul.f32 %v833, %v833
  %v2294 = vmul.f32 %v1484, %v1484
  %v2295 = vmul.f32 %v1486, %v1486
  %v2296 = vadd.f32 %v1904, %v1908
  %v2297 = vadd.f32 %v2296, %v1912
  %v2298 = vadd.f32 %v2297, %v1916
  %v2299 = vadd.f32 %v2298, %v1920
  %v2300 = vadd.f32 %v2299, %v1924
  %v2301 = vadd.f32 %v2300, %v1928
  %v2302 = vadd.f32 %v2301, %v1932
  %v2303 = vadd.f32 %v2302, %v1936
  %v2304 = vadd.f32 %v2303, %v1940
  %v2305 = vadd.f32 %v2304, %v1944
  %v2306 = vadd.f32 %v2305, %v1948
  %v2307 = vadd.f32 %v2306, %v1952
  %v2308 = vadd.f32 %v2307, %v1956
  %v2309 = vadd.f32 %v2308, %v1960
  %v2310 = vadd.f32 %v2309, %v1964
  %v2311 = vadd.f32 %v2310, %v1968
  %v2312 = vadd.f32 %v2311, %v1972
  %v2313 = vadd.f32 %v2312, %v1976
  %v2314 = vadd.f32 %v2313, %v1980
  %v2315 = vadd.f32 %v2314, %v1984
  %v2316 = vadd.f32 %v2315, %v1988
  %v2317 = vadd.f32 %v2316, %v1992
  %v2318 = vadd.f32 %v2317, %v1996
  %v2319 = vadd.f32 %v2318, %v2000
  %v2320 = vadd.f32 %v2319, %v2004
  %v2321 = vadd.f32 %v2320, %v2008
  %v2322 = vadd.f32 %v2321, %v2012
  %v2323 = vadd.f32 %v2322, %v2016
  %v2324 = vadd.f32 %v2323, %v2020
  %v2325 = vadd.f32 %v2324, %v2024
  %v2326 = vadd.f32 %v2325, %v2028
  %v2327 = vadd.f32 %v2326, %v2032
  %v2328 = vadd.f32 %v2327, %v2036
  %v2329 = vadd.f32 %v2328, %v2040
  %v2330 = vadd.f32 %v2329, %v2044
  %v2331 = vadd.f32 %v2330, %v2048
  %v2332 = vadd.f32 %v2331, %v2052
  %v2333 = vadd.f32 %v2332, %v2056
  %v2334 = vadd.f32 %v2333, %v2060
  %v2335 = vadd.f32 %v2334, %v2064
  %v2336 = vadd.f32 %v2335, %v2068
  %v2337 = vadd.f32 %v2336, %v2072
  %v2338 = vadd.f32 %v2337, %v2076
  %v2339 = vadd.f32 %v2338, %v2080
  %v2340 = vadd.f32 %v2339, %v2084
  %v2341 = vadd.f32 %v2340, %v2088
  %v2342 = vadd.f32 %v2341, %v2092
  %v2343 = vadd.f32 %v2342, %v2096
  %v2344 = vadd.f32 %v2343, %v2100
  %v2345 = vadd.f32 %v2344, %v2104
  %v2346 = vadd.f32 %v2345, %v2108
  %v2347 = vadd.f32 %v2346, %v2112
  %v2348 = vadd.f32 %v2347, %v2116
  %v2349 = vadd.f32 %v2348, %v2120
  %v2350 = vadd.f32 %v2349, %v2124
  %v2351 = vadd.f32 %v2350, %v2128
  %v2352 = vadd.f32 %v2351, %v2132
  %v2353 = vadd.f32 %v2352, %v2136
  %v2354 = vadd.f32 %v2353, %v2140
  %v2355 = vadd.f32 %v2354, %v2144
  %v2356 = vadd.f32 %v2355, %v2148
  %v2357 = vadd.f32 %v2356, %v2152
  %v2358 = vadd.f32 %v2357, %v2156
  %v2359 = vadd.f32 %v2358, %v2160
  %v2360 = vadd.f32 %v2359, %v2164
  %v2361 = vadd.f32 %v2360, %v2168
  %v2362 = vadd.f32 %v2361, %v2172
  %v2363 = vadd.f32 %v2362, %v2176
  %v2364 = vadd.f32 %v2363, %v2180
  %v2365 = vadd.f32 %v2364, %v2184
  %v2366 = vadd.f32 %v2365, %v2188
  %v2367 = vadd.f32 %v2366, %v2192
  %v2368 = vadd.f32 %v2367, %v2196
  %v2369 = vadd.f32 %v2368, %v2200
  %v2370 = vadd.f32 %v2369, %v2204
  %v2371 = vadd.f32 %v2370, %v2208
  %v2372 = vadd.f32 %v2371, %v2212
  %v2373 = vadd.f32 %v2372, %v2216
  %v2374 = vadd.f32 %v2373, %v2220
  %v2375 = vadd.f32 %v2374, %v2224
  %v2376 = vadd.f32 %v2375, %v2228
  %v2377 = vadd.f32 %v2376, %v2232
  %v2378 = vadd.f32 %v2377, %v2236
  %v2379 = vadd.f32 %v2378, %v2240
  %v2380 = vadd.f32 %v2379, %v2244
  %v2381 = vadd.f32 %v2380, %v2248
  %v2382 = vadd.f32 %v2381, %v2252
  %v2383 = vadd.f32 %v2382, %v2256
  %v2384 = vadd.f32 %v2383, %v2260
  %v2385 = vadd.f32 %v2384, %v2264
  %v2386 = vadd.f32 %v2385, %v2268
  %v2387 = vadd.f32 %v2386, %v2272
  %v2388 = vadd.f32 %v2387, %v2276
  %v2389 = vadd.f32 %v2388, %v2280
  %v2390 = vadd.f32 %v2389, %v2284
  %v2391 = vadd.f32 %v2390, %v2288
  %v2392 = vadd.f32 %v2391, %v2292
  %v2393 = vrot.slane %v2392, 4
  %v2394 = vadd.f32 %v2392, %v2393
  %v2395 = vrot.slane %v2394, 2
  %v2396 = vadd.f32 %v2394, %v2395
  %v2397 = vrot.slane %v2396, 1
  %v2398 = vadd.f32 %v2396, %v2397
  %v2399 = vadd.f32 %v1905, %v1909
  %v2400 = vadd.f32 %v2399, %v1913
  %v2401 = vadd.f32 %v2400, %v1917
  %v2402 = vadd.f32 %v2401, %v1921
  %v2403 = vadd.f32 %v2402, %v1925
  %v2404 = vadd.f32 %v2403, %v1929
  %v2405 = vadd.f32 %v2404, %v1933
  %v2406 = vadd.f32 %v2405, %v1937
  %v2407 = vadd.f32 %v2406, %v1941
  %v2408 = vadd.f32 %v2407, %v1945
  %v2409 = vadd.f32 %v2408, %v1949
  %v2410 = vadd.f32 %v2409, %v1953
  %v2411 = vadd.f32 %v2410, %v1957
  %v2412 = vadd.f32 %v2411, %v1961
  %v2413 = vadd.f32 %v2412, %v1965
  %v2414 = vadd.f32 %v2413, %v1969
  %v2415 = vadd.f32 %v2414, %v1973
  %v2416 = vadd.f32 %v2415, %v1977
  %v2417 = vadd.f32 %v2416, %v1981
  %v2418 = vadd.f32 %v2417, %v1985
  %v2419 = vadd.f32 %v2418, %v1989
  %v2420 = vadd.f32 %v2419, %v1993
  %v2421 = vadd.f32 %v2420, %v1997
  %v2422 = vadd.f32 %v2421, %v2001
  %v2423 = vadd.f32 %v2422, %v2005
  %v2424 = vadd.f32 %v2423, %v2009
  %v2425 = vadd.f32 %v2424, %v2013
  %v2426 = vadd.f32 %v2425, %v2017
  %v2427 = vadd.f32 %v2426, %v2021
  %v2428 = vadd.f32 %v2427, %v2025
  %v2429 = vadd.f32 %v2428, %v2029
  %v2430 = vadd.f32 %v2429, %v2033
  %v2431 = vadd.f32 %v2430, %v2037
  %v2432 = vadd.f32 %v2431, %v2041
  %v2433 = vadd.f32 %v2432, %v2045
  %v2434 = vadd.f32 %v2433, %v2049
  %v2435 = vadd.f32 %v2434, %v2053
  %v2436 = vadd.f32 %v2435, %v2057
  %v2437 = vadd.f32 %v2436, %v2061
  %v2438 = vadd.f32 %v2437, %v2065
  %v2439 = vadd.f32 %v2438, %v2069
  %v2440 = vadd.f32 %v2439, %v2073
  %v2441 = vadd.f32 %v2440, %v2077
  %v2442 = vadd.f32 %v2441, %v2081
  %v2443 = vadd.f32 %v2442, %v2085
  %v2444 = vadd.f32 %v2443, %v2089
  %v2445 = vadd.f32 %v2444, %v2093
  %v2446 = vadd.f32 %v2445, %v2097
  %v2447 = vadd.f32 %v2446, %v2101
  %v2448 = vadd.f32 %v2447, %v2105
  %v2449 = vadd.f32 %v2448, %v2109
  %v2450 = vadd.f32 %v2449, %v2113
  %v2451 = vadd.f32 %v2450, %v2117
  %v2452 = vadd.f32 %v2451, %v2121
  %v2453 = vadd.f32 %v2452, %v2125
  %v2454 = vadd.f32 %v2453, %v2129
  %v2455 = vadd.f32 %v2454, %v2133
  %v2456 = vadd.f32 %v2455, %v2137
  %v2457 = vadd.f32 %v2456, %v2141
  %v2458 = vadd.f32 %v2457, %v2145
  %v2459 = vadd.f32 %v2458, %v2149
  %v2460 = vadd.f32 %v2459, %v2153
  %v2461 = vadd.f32 %v2460, %v2157
  %v2462 = vadd.f32 %v2461, %v2161
  %v2463 = vadd.f32 %v2462, %v2165
  %v2464 = vadd.f32 %v2463, %v2169
  %v2465 = vadd.f32 %v2464, %v2173
  %v2466 = vadd.f32 %v2465, %v2177
  %v2467 = vadd.f32 %v2466, %v2181
  %v2468 = vadd.f32 %v2467, %v2185
  %v2469 = vadd.f32 %v2468, %v2189
  %v2470 = vadd.f32 %v2469, %v2193
  %v2471 = vadd.f32 %v2470, %v2197
  %v2472 = vadd.f32 %v2471, %v2201
  %v2473 = vadd.f32 %v2472, %v2205
  %v2474 = vadd.f32 %v2473, %v2209
  %v2475 = vadd.f32 %v2474, %v2213
  %v2476 = vadd.f32 %v2475, %v2217
  %v2477 = vadd.f32 %v2476, %v2221
  %v2478 = vadd.f32 %v2477, %v2225
  %v2479 = vadd.f32 %v2478, %v2229
  %v2480 = vadd.f32 %v2479, %v2233
  %v2481 = vadd.f32 %v2480, %v2237
  %v2482 = vadd.f32 %v2481, %v2241
  %v2483 = vadd.f32 %v2482, %v2245
  %v2484 = vadd.f32 %v2483, %v2249
  %v2485 = vadd.f32 %v2484, %v2253
  %v2486 = vadd.f32 %v2485, %v2257
  %v2487 = vadd.f32 %v2486, %v2261
  %v2488 = vadd.f32 %v2487, %v2265
  %v2489 = vadd.f32 %v2488, %v2269
  %v2490 = vadd.f32 %v2489, %v2273
  %v2491 = vadd.f32 %v2490, %v2277
  %v2492 = vadd.f32 %v2491, %v2281
  %v2493 = vadd.f32 %v2492, %v2285
  %v2494 = vadd.f32 %v2493, %v2289
  %v2495 = vadd.f32 %v2494, %v2293
  %v2496 = vrot.slane %v2495, 4
  %v2497 = vadd.f32 %v2495, %v2496
  %v2498 = vrot.slane %v2497, 2
  %v2499 = vadd.f32 %v2497, %v2498
  %v2500 = vrot.slane %v2499, 1
  %v2501 = vadd.f32 %v2499, %v2500
  %v2502 = vadd.f32 %v1906, %v1910
  %v2503 = vadd.f32 %v2502, %v1914
  %v2504 = vadd.f32 %v2503, %v1918
  %v2505 = vadd.f32 %v2504, %v1922
  %v2506 = vadd.f32 %v2505, %v1926
  %v2507 = vadd.f32 %v2506, %v1930
  %v2508 = vadd.f32 %v2507, %v1934
  %v2509 = vadd.f32 %v2508, %v1938
  %v2510 = vadd.f32 %v2509, %v1942
  %v2511 = vadd.f32 %v2510, %v1946
  %v2512 = vadd.f32 %v2511, %v1950
  %v2513 = vadd.f32 %v2512, %v1954
  %v2514 = vadd.f32 %v2513, %v1958
  %v2515 = vadd.f32 %v2514, %v1962
  %v2516 = vadd.f32 %v2515, %v1966
  %v2517 = vadd.f32 %v2516, %v1970
  %v2518 = vadd.f32 %v2517, %v1974
  %v2519 = vadd.f32 %v2518, %v1978
  %v2520 = vadd.f32 %v2519, %v1982
  %v2521 = vadd.f32 %v2520, %v1986
  %v2522 = vadd.f32 %v2521, %v1990
  %v2523 = vadd.f32 %v2522, %v1994
  %v2524 = vadd.f32 %v2523, %v1998
  %v2525 = vadd.f32 %v2524, %v2002
  %v2526 = vadd.f32 %v2525, %v2006
  %v2527 = vadd.f32 %v2526, %v2010
  %v2528 = vadd.f32 %v2527, %v2014
  %v2529 = vadd.f32 %v2528, %v2018
  %v2530 = vadd.f32 %v2529, %v2022
  %v2531 = vadd.f32 %v2530, %v2026
  %v2532 = vadd.f32 %v2531, %v2030
  %v2533 = vadd.f32 %v2532, %v2034
  %v2534 = vadd.f32 %v2533, %v2038
  %v2535 = vadd.f32 %v2534, %v2042
  %v2536 = vadd.f32 %v2535, %v2046
  %v2537 = vadd.f32 %v2536, %v2050
  %v2538 = vadd.f32 %v2537, %v2054
  %v2539 = vadd.f32 %v2538, %v2058
  %v2540 = vadd.f32 %v2539, %v2062
  %v2541 = vadd.f32 %v2540, %v2066
  %v2542 = vadd.f32 %v2541, %v2070
  %v2543 = vadd.f32 %v2542, %v2074
  %v2544 = vadd.f32 %v2543, %v2078
  %v2545 = vadd.f32 %v2544, %v2082
  %v2546 = vadd.f32 %v2545, %v2086
  %v2547 = vadd.f32 %v2546, %v2090
  %v2548 = vadd.f32 %v2547, %v2094
  %v2549 = vadd.f32 %v2548, %v2098
  %v2550 = vadd.f32 %v2549, %v2102
  %v2551 = vadd.f32 %v2550, %v2106
  %v2552 = vadd.f32 %v2551, %v2110
  %v2553 = vadd.f32 %v2552, %v2114
  %v2554 = vadd.f32 %v2553, %v2118
  %v2555 = vadd.f32 %v2554, %v2122
  %v2556 = vadd.f32 %v2555, %v2126
  %v2557 = vadd.f32 %v2556, %v2130
  %v2558 = vadd.f32 %v2557, %v2134
  %v2559 = vadd.f32 %v2558, %v2138
  %v2560 = vadd.f32 %v2559, %v2142
  %v2561 = vadd.f32 %v2560, %v2146
  %v2562 = vadd.f32 %v2561, %v2150
  %v2563 = vadd.f32 %v2562, %v2154
  %v2564 = vadd.f32 %v2563, %v2158
  %v2565 = vadd.f32 %v2564, %v2162
  %v2566 = vadd.f32 %v2565, %v2166
  %v2567 = vadd.f32 %v2566, %v2170
  %v2568 = vadd.f32 %v2567, %v2174
  %v2569 = vadd.f32 %v2568, %v2178
  %v2570 = vadd.f32 %v2569, %v2182
  %v2571 = vadd.f32 %v2570, %v2186
  %v2572 = vadd.f32 %v2571, %v2190
  %v2573 = vadd.f32 %v2572, %v2194
  %v2574 = vadd.f32 %v2573, %v2198
  %v2575 = vadd.f32 %v2574, %v2202
  %v2576 = vadd.f32 %v2575, %v2206
  %v2577 = vadd.f32 %v2576, %v2210
  %v2578 = vadd.f32 %v2577, %v2214
  %v2579 = vadd.f32 %v2578, %v2218
  %v2580 = vadd.f32 %v2579, %v2222
  %v2581 = vadd.f32 %v2580, %v2226
  %v2582 = vadd.f32 %v2581, %v2230
  %v2583 = vadd.f32 %v2582, %v2234
  %v2584 = vadd.f32 %v2583, %v2238
  %v2585 = vadd.f32 %v2584, %v2242
  %v2586 = vadd.f32 %v2585, %v2246
  %v2587 = vadd.f32 %v2586, %v2250
  %v2588 = vadd.f32 %v2587, %v2254
  %v2589 = vadd.f32 %v2588, %v2258
  %v2590 = vadd.f32 %v2589, %v2262
  %v2591 = vadd.f32 %v2590, %v2266
  %v2592 = vadd.f32 %v2591, %v2270
  %v2593 = vadd.f32 %v2592, %v2274
  %v2594 = vadd.f32 %v2593, %v2278
  %v2595 = vadd.f32 %v2594, %v2282
  %v2596 = vadd.f32 %v2595, %v2286
  %v2597 = vadd.f32 %v2596, %v2290
  %v2598 = vadd.f32 %v2597, %v2294
  %v2599 = vrot.slane %v2598, 4
  %v2600 = vadd.f32 %v2598, %v2599
  %v2601 = vrot.slane %v2600, 2
  %v2602 = vadd.f32 %v2600, %v2601
  %v2603 = vrot.slane %v2602, 1
  %v2604 = vadd.f32 %v2602, %v2603
  %v2605 = vadd.f32 %v1907, %v1911
  %v2606 = vadd.f32 %v2605, %v1915
  %v2607 = vadd.f32 %v2606, %v1919
  %v2608 = vadd.f32 %v2607, %v1923
  %v2609 = vadd.f32 %v2608, %v1927
  %v2610 = vadd.f32 %v2609, %v1931
  %v2611 = vadd.f32 %v2610, %v1935
  %v2612 = vadd.f32 %v2611, %v1939
  %v2613 = vadd.f32 %v2612, %v1943
  %v2614 = vadd.f32 %v2613, %v1947
  %v2615 = vadd.f32 %v2614, %v1951
  %v2616 = vadd.f32 %v2615, %v1955
  %v2617 = vadd.f32 %v2616, %v1959
  %v2618 = vadd.f32 %v2617, %v1963
  %v2619 = vadd.f32 %v2618, %v1967
  %v2620 = vadd.f32 %v2619, %v1971
  %v2621 = vadd.f32 %v2620, %v1975
  %v2622 = vadd.f32 %v2621, %v1979
  %v2623 = vadd.f32 %v2622, %v1983
  %v2624 = vadd.f32 %v2623, %v1987
  %v2625 = vadd.f32 %v2624, %v1991
  %v2626 = vadd.f32 %v2625, %v1995
  %v2627 = vadd.f32 %v2626, %v1999
  %v2628 = vadd.f32 %v2627, %v2003
  %v2629 = vadd.f32 %v2628, %v2007
  %v2630 = vadd.f32 %v2629, %v2011
  %v2631 = vadd.f32 %v2630, %v2015
  %v2632 = vadd.f32 %v2631, %v2019
  %v2633 = vadd.f32 %v2632, %v2023
  %v2634 = vadd.f32 %v2633, %v2027
  %v2635 = vadd.f32 %v2634, %v2031
  %v2636 = vadd.f32 %v2635, %v2035
  %v2637 = vadd.f32 %v2636, %v2039
  %v2638 = vadd.f32 %v2637, %v2043
  %v2639 = vadd.f32 %v2638, %v2047
  %v2640 = vadd.f32 %v2639, %v2051
  %v2641 = vadd.f32 %v2640, %v2055
  %v2642 = vadd.f32 %v2641, %v2059
  %v2643 = vadd.f32 %v2642, %v2063
  %v2644 = vadd.f32 %v2643, %v2067
  %v2645 = vadd.f32 %v2644, %v2071
  %v2646 = vadd.f32 %v2645, %v2075
  %v2647 = vadd.f32 %v2646, %v2079
  %v2648 = vadd.f32 %v2647, %v2083
  %v2649 = vadd.f32 %v2648, %v2087
  %v2650 = vadd.f32 %v2649, %v2091
  %v2651 = vadd.f32 %v2650, %v2095
  %v2652 = vadd.f32 %v2651, %v2099
  %v2653 = vadd.f32 %v2652, %v2103
  %v2654 = vadd.f32 %v2653, %v2107
  %v2655 = vadd.f32 %v2654, %v2111
  %v2656 = vadd.f32 %v2655, %v2115
  %v2657 = vadd.f32 %v2656, %v2119
  %v2658 = vadd.f32 %v2657, %v2123
  %v2659 = vadd.f32 %v2658, %v2127
  %v2660 = vadd.f32 %v2659, %v2131
  %v2661 = vadd.f32 %v2660, %v2135
  %v2662 = vadd.f32 %v2661, %v2139
  %v2663 = vadd.f32 %v2662, %v2143
  %v2664 = vadd.f32 %v2663, %v2147
  %v2665 = vadd.f32 %v2664, %v2151
  %v2666 = vadd.f32 %v2665, %v2155
  %v2667 = vadd.f32 %v2666, %v2159
  %v2668 = vadd.f32 %v2667, %v2163
  %v2669 = vadd.f32 %v2668, %v2167
  %v2670 = vadd.f32 %v2669, %v2171
  %v2671 = vadd.f32 %v2670, %v2175
  %v2672 = vadd.f32 %v2671, %v2179
  %v2673 = vadd.f32 %v2672, %v2183
  %v2674 = vadd.f32 %v2673, %v2187
  %v2675 = vadd.f32 %v2674, %v2191
  %v2676 = vadd.f32 %v2675, %v2195
  %v2677 = vadd.f32 %v2676, %v2199
  %v2678 = vadd.f32 %v2677, %v2203
  %v2679 = vadd.f32 %v2678, %v2207
  %v2680 = vadd.f32 %v2679, %v2211
  %v2681 = vadd.f32 %v2680, %v2215
  %v2682 = vadd.f32 %v2681, %v2219
  %v2683 = vadd.f32 %v2682, %v2223
  %v2684 = vadd.f32 %v2683, %v2227
  %v2685 = vadd.f32 %v2684, %v2231
  %v2686 = vadd.f32 %v2685, %v2235
  %v2687 = vadd.f32 %v2686, %v2239
  %v2688 = vadd.f32 %v2687, %v2243
  %v2689 = vadd.f32 %v2688, %v2247
  %v2690 = vadd.f32 %v2689, %v2251
  %v2691 = vadd.f32 %v2690, %v2255
  %v2692 = vadd.f32 %v2691, %v2259
  %v2693 = vadd.f32 %v2692, %v2263
  %v2694 = vadd.f32 %v2693, %v2267
  %v2695 = vadd.f32 %v2694, %v2271
  %v2696 = vadd.f32 %v2695, %v2275
  %v2697 = vadd.f32 %v2696, %v2279
  %v2698 = vadd.f32 %v2697, %v2283
  %v2699 = vadd.f32 %v2698, %v2287
  %v2700 = vadd.f32 %v2699, %v2291
  %v2701 = vadd.f32 %v2700, %v2295
  %v2702 = vrot.slane %v2701, 4
  %v2703 = vadd.f32 %v2701, %v2702
  %v2704 = vrot.slane %v2703, 2
  %v2705 = vadd.f32 %v2703, %v2704
  %v2706 = vrot.slane %v2705, 1
  %v2707 = vadd.f32 %v2705, %v2706
  %v2708 = vmul.f32 %v2398, 0.0012755102
  %v2709 = vmul.f32 %v2501, 0.0012755102
  %v2710 = vmul.f32 %v2604, 0.0012755102
  %v2711 = vmul.f32 %v2707, 0.0012755102
  %v2712 = vmul.f32 %v1900, %v1900
  %v2713 = vmul.f32 %v1901, %v1901
  %v2714 = vmul.f32 %v1902, %v1902
  %v2715 = vmul.f32 %v1903, %v1903
  %v2716 = vsub.f32 %v2708, %v2712
  %v2717 = vsub.f32 %v2709, %v2713
  %v2718 = vsub.f32 %v2710, %v2714
  %v2719 = vsub.f32 %v2711, %v2715
  %v2720 = vadd.f32 %v2716, 1e-05
  %v2721 = vadd.f32 %v2717, 1e-05
  %v2722 = vadd.f32 %v2718, 1e-05
  %v2723 = vadd.f32 %v2719, 1e-05
  %v2724 = vrsqrt.pop %v2720
  %v2725 = vrsqrt.pop %v2721
  %v2726 = vrsqrt.pop %v2722
  %v2727 = vrsqrt.pop %v2723
  %v2728 = vld [vmem:[%s2] sm:$0xf]
  %v2730 = vlaneseq
  %v2731 = vshrl.u32 %v2730, 7
  %v2732 = vsub.s32 0, %v2731
  %v2733 = vrot.slane %v2728, %v2732
  %v2734 = vlaneseq
  %v2735 = vshrl.u32 %v2734, 7
  %v2736 = vsub.s32 1, %v2735
  %v2737 = vrot.slane %v2728, %v2736
  %v2738 = vlaneseq
  %v2739 = vshrl.u32 %v2738, 7
  %v2740 = vsub.s32 2, %v2739
  %v2741 = vrot.slane %v2728, %v2740
  %v2742 = vlaneseq
  %v2743 = vshrl.u32 %v2742, 7
  %v2744 = vsub.s32 3, %v2743
  %v2745 = vrot.slane %v2728, %v2744
  %v2750 = vmul.f32 %v2724, %v2733
  %v2751 = vmul.f32 %v2725, %v2737
  %v2752 = vmul.f32 %v2726, %v2741
  %v2753 = vmul.f32 %v2727, %v2745
  %v2754 = vld [vmem:[%s3] sm:$0xf]
  %v2755 = vmul.f32 %v1900, %v2750
  %v2756 = vmul.f32 %v1901, %v2751
  %v2757 = vmul.f32 %v1902, %v2752
  %v2758 = vmul.f32 %v1903, %v2753
  %v2763 = vcombine.low %v2755, %v2756
  %v2764 = vcombine.low %v2757, %v2758
  %v2766 = vunpack.c.l.s4 1966171168
  %v2767 = vunpack.c.0.s8 %v2766
  %v2768 = vlaneseq
  %v2769 = vshrl.u32 %v2768, 7
  %v2770 = vsub.s32 %v2767, %v2769
  %v2771 = vrot.slane %v2763, %v2770
  %v2773 = vunpack.c.l.s4 1966171168
  %v2774 = vunpack.c.0.s8 %v2773
  %v2775 = vlaneseq
  %v2776 = vshrl.u32 %v2775, 7
  %v2777 = vsub.s32 %v2774, %v2776
  %v2778 = vrot.slane %v2764, %v2777
  %v2779 = vcombine.low %v2771, %v2778
  %v2781 = vunpack.c.l.s4 1966171168
  %v2782 = vunpack.c.0.s8 %v2781
  %v2783 = vlaneseq
  %v2784 = vshrl.u32 %v2783, 7
  %v2785 = vsub.s32 %v2782, %v2784
  %v2786 = vrot.slane %v2779, %v2785
  %v2788 = vsub.f32 %v2754, %v2786
  %v2789 = vlaneseq
  %v2790 = vshrl.u32 %v2789, 7
  %v2791 = vsub.s32 0, %v2790
  %v2792 = vrot.slane %v2750, %v2791
  %v2793 = vlaneseq
  %v2794 = vshrl.u32 %v2793, 7
  %v2795 = vsub.s32 0, %v2794
  %v2796 = vrot.slane %v2751, %v2795
  %v2797 = vlaneseq
  %v2798 = vshrl.u32 %v2797, 7
  %v2799 = vsub.s32 0, %v2798
  %v2800 = vrot.slane %v2752, %v2799
  %v2801 = vlaneseq
  %v2802 = vshrl.u32 %v2801, 7
  %v2803 = vsub.s32 0, %v2802
  %v2804 = vrot.slane %v2753, %v2803
  %v2805 = vmul.f32 %v249, %v2792
  %v2806 = vmul.f32 %v251, %v2796
  %v2807 = vmul.f32 %v902, %v2800
  %v2808 = vmul.f32 %v904, %v2804
  %v2809 = vmul.f32 %v255, %v2792
  %v2810 = vmul.f32 %v257, %v2796
  %v2811 = vmul.f32 %v908, %v2800
  %v2812 = vmul.f32 %v910, %v2804
  %v2813 = vmul.f32 %v261, %v2792
  %v2814 = vmul.f32 %v263, %v2796
  %v2815 = vmul.f32 %v914, %v2800
  %v2816 = vmul.f32 %v916, %v2804
  %v2817 = vmul.f32 %v267, %v2792
  %v2818 = vmul.f32 %v269, %v2796
  %v2819 = vmul.f32 %v920, %v2800
  %v2820 = vmul.f32 %v922, %v2804
  %v2821 = vmul.f32 %v273, %v2792
  %v2822 = vmul.f32 %v275, %v2796
  %v2823 = vmul.f32 %v926, %v2800
  %v2824 = vmul.f32 %v928, %v2804
  %v2825 = vmul.f32 %v279, %v2792
  %v2826 = vmul.f32 %v281, %v2796
  %v2827 = vmul.f32 %v932, %v2800
  %v2828 = vmul.f32 %v934, %v2804
  %v2829 = vmul.f32 %v285, %v2792
  %v2830 = vmul.f32 %v287, %v2796
  %v2831 = vmul.f32 %v938, %v2800
  %v2832 = vmul.f32 %v940, %v2804
  %v2833 = vmul.f32 %v291, %v2792
  %v2834 = vmul.f32 %v293, %v2796
  %v2835 = vmul.f32 %v944, %v2800
  %v2836 = vmul.f32 %v946, %v2804
  %v2837 = vmul.f32 %v297, %v2792
  %v2838 = vmul.f32 %v299, %v2796
  %v2839 = vmul.f32 %v950, %v2800
  %v2840 = vmul.f32 %v952, %v2804
  %v2841 = vmul.f32 %v303, %v2792
  %v2842 = vmul.f32 %v305, %v2796
  %v2843 = vmul.f32 %v956, %v2800
  %v2844 = vmul.f32 %v958, %v2804
  %v2845 = vmul.f32 %v309, %v2792
  %v2846 = vmul.f32 %v311, %v2796
  %v2847 = vmul.f32 %v962, %v2800
  %v2848 = vmul.f32 %v964, %v2804
  %v2849 = vmul.f32 %v315, %v2792
  %v2850 = vmul.f32 %v317, %v2796
  %v2851 = vmul.f32 %v968, %v2800
  %v2852 = vmul.f32 %v970, %v2804
  %v2853 = vmul.f32 %v321, %v2792
  %v2854 = vmul.f32 %v323, %v2796
  %v2855 = vmul.f32 %v974, %v2800
  %v2856 = vmul.f32 %v976, %v2804
  %v2857 = vmul.f32 %v327, %v2792
  %v2858 = vmul.f32 %v329, %v2796
  %v2859 = vmul.f32 %v980, %v2800
  %v2860 = vmul.f32 %v982, %v2804
  %v2861 = vmul.f32 %v333, %v2792
  %v2862 = vmul.f32 %v335, %v2796
  %v2863 = vmul.f32 %v986, %v2800
  %v2864 = vmul.f32 %v988, %v2804
  %v2865 = vmul.f32 %v339, %v2792
  %v2866 = vmul.f32 %v341, %v2796
  %v2867 = vmul.f32 %v992, %v2800
  %v2868 = vmul.f32 %v994, %v2804
  %v2869 = vmul.f32 %v345, %v2792
  %v2870 = vmul.f32 %v347, %v2796
  %v2871 = vmul.f32 %v998, %v2800
  %v2872 = vmul.f32 %v1000, %v2804
  %v2873 = vmul.f32 %v351, %v2792
  %v2874 = vmul.f32 %v353, %v2796
  %v2875 = vmul.f32 %v1004, %v2800
  %v2876 = vmul.f32 %v1006, %v2804
  %v2877 = vmul.f32 %v357, %v2792
  %v2878 = vmul.f32 %v359, %v2796
  %v2879 = vmul.f32 %v1010, %v2800
  %v2880 = vmul.f32 %v1012, %v2804
  %v2881 = vmul.f32 %v363, %v2792
  %v2882 = vmul.f32 %v365, %v2796
  %v2883 = vmul.f32 %v1016, %v2800
  %v2884 = vmul.f32 %v1018, %v2804
  %v2885 = vmul.f32 %v369, %v2792
  %v2886 = vmul.f32 %v371, %v2796
  %v2887 = vmul.f32 %v1022, %v2800
  %v2888 = vmul.f32 %v1024, %v2804
  %v2889 = vmul.f32 %v375, %v2792
  %v2890 = vmul.f32 %v377, %v2796
  %v2891 = vmul.f32 %v1028, %v2800
  %v2892 = vmul.f32 %v1030, %v2804
  %v2893 = vmul.f32 %v381, %v2792
  %v2894 = vmul.f32 %v383, %v2796
  %v2895 = vmul.f32 %v1034, %v2800
  %v2896 = vmul.f32 %v1036, %v2804
  %v2897 = vmul.f32 %v387, %v2792
  %v2898 = vmul.f32 %v389, %v2796
  %v2899 = vmul.f32 %v1040, %v2800
  %v2900 = vmul.f32 %v1042, %v2804
  %v2901 = vmul.f32 %v393, %v2792
  %v2902 = vmul.f32 %v395, %v2796
  %v2903 = vmul.f32 %v1046, %v2800
  %v2904 = vmul.f32 %v1048, %v2804
  %v2905 = vmul.f32 %v399, %v2792
  %v2906 = vmul.f32 %v401, %v2796
  %v2907 = vmul.f32 %v1052, %v2800
  %v2908 = vmul.f32 %v1054, %v2804
  %v2909 = vmul.f32 %v405, %v2792
  %v2910 = vmul.f32 %v407, %v2796
  %v2911 = vmul.f32 %v1058, %v2800
  %v2912 = vmul.f32 %v1060, %v2804
  %v2913 = vmul.f32 %v411, %v2792
  %v2914 = vmul.f32 %v413, %v2796
  %v2915 = vmul.f32 %v1064, %v2800
  %v2916 = vmul.f32 %v1066, %v2804
  %v2917 = vmul.f32 %v417, %v2792
  %v2918 = vmul.f32 %v419, %v2796
  %v2919 = vmul.f32 %v1070, %v2800
  %v2920 = vmul.f32 %v1072, %v2804
  %v2921 = vmul.f32 %v423, %v2792
  %v2922 = vmul.f32 %v425, %v2796
  %v2923 = vmul.f32 %v1076, %v2800
  %v2924 = vmul.f32 %v1078, %v2804
  %v2925 = vmul.f32 %v429, %v2792
  %v2926 = vmul.f32 %v431, %v2796
  %v2927 = vmul.f32 %v1082, %v2800
  %v2928 = vmul.f32 %v1084, %v2804
  %v2929 = vmul.f32 %v435, %v2792
  %v2930 = vmul.f32 %v437, %v2796
  %v2931 = vmul.f32 %v1088, %v2800
  %v2932 = vmul.f32 %v1090, %v2804
  %v2933 = vmul.f32 %v441, %v2792
  %v2934 = vmul.f32 %v443, %v2796
  %v2935 = vmul.f32 %v1094, %v2800
  %v2936 = vmul.f32 %v1096, %v2804
  %v2937 = vmul.f32 %v447, %v2792
  %v2938 = vmul.f32 %v449, %v2796
  %v2939 = vmul.f32 %v1100, %v2800
  %v2940 = vmul.f32 %v1102, %v2804
  %v2941 = vmul.f32 %v453, %v2792
  %v2942 = vmul.f32 %v455, %v2796
  %v2943 = vmul.f32 %v1106, %v2800
  %v2944 = vmul.f32 %v1108, %v2804
  %v2945 = vmul.f32 %v459, %v2792
  %v2946 = vmul.f32 %v461, %v2796
  %v2947 = vmul.f32 %v1112, %v2800
  %v2948 = vmul.f32 %v1114, %v2804
  %v2949 = vmul.f32 %v465, %v2792
  %v2950 = vmul.f32 %v467, %v2796
  %v2951 = vmul.f32 %v1118, %v2800
  %v2952 = vmul.f32 %v1120, %v2804
  %v2953 = vmul.f32 %v471, %v2792
  %v2954 = vmul.f32 %v473, %v2796
  %v2955 = vmul.f32 %v1124, %v2800
  %v2956 = vmul.f32 %v1126, %v2804
  %v2957 = vmul.f32 %v477, %v2792
  %v2958 = vmul.f32 %v479, %v2796
  %v2959 = vmul.f32 %v1130, %v2800
  %v2960 = vmul.f32 %v1132, %v2804
  %v2961 = vmul.f32 %v483, %v2792
  %v2962 = vmul.f32 %v485, %v2796
  %v2963 = vmul.f32 %v1136, %v2800
  %v2964 = vmul.f32 %v1138, %v2804
  %v2965 = vmul.f32 %v489, %v2792
  %v2966 = vmul.f32 %v491, %v2796
  %v2967 = vmul.f32 %v1142, %v2800
  %v2968 = vmul.f32 %v1144, %v2804
  %v2969 = vmul.f32 %v495, %v2792
  %v2970 = vmul.f32 %v497, %v2796
  %v2971 = vmul.f32 %v1148, %v2800
  %v2972 = vmul.f32 %v1150, %v2804
  %v2973 = vmul.f32 %v501, %v2792
  %v2974 = vmul.f32 %v503, %v2796
  %v2975 = vmul.f32 %v1154, %v2800
  %v2976 = vmul.f32 %v1156, %v2804
  %v2977 = vmul.f32 %v507, %v2792
  %v2978 = vmul.f32 %v509, %v2796
  %v2979 = vmul.f32 %v1160, %v2800
  %v2980 = vmul.f32 %v1162, %v2804
  %v2981 = vmul.f32 %v513, %v2792
  %v2982 = vmul.f32 %v515, %v2796
  %v2983 = vmul.f32 %v1166, %v2800
  %v2984 = vmul.f32 %v1168, %v2804
  %v2985 = vmul.f32 %v519, %v2792
  %v2986 = vmul.f32 %v521, %v2796
  %v2987 = vmul.f32 %v1172, %v2800
  %v2988 = vmul.f32 %v1174, %v2804
  %v2989 = vmul.f32 %v525, %v2792
  %v2990 = vmul.f32 %v527, %v2796
  %v2991 = vmul.f32 %v1178, %v2800
  %v2992 = vmul.f32 %v1180, %v2804
  %v2993 = vmul.f32 %v531, %v2792
  %v2994 = vmul.f32 %v533, %v2796
  %v2995 = vmul.f32 %v1184, %v2800
  %v2996 = vmul.f32 %v1186, %v2804
  %v2997 = vmul.f32 %v537, %v2792
  %v2998 = vmul.f32 %v539, %v2796
  %v2999 = vmul.f32 %v1190, %v2800
  %v3000 = vmul.f32 %v1192, %v2804
  %v3001 = vmul.f32 %v543, %v2792
  %v3002 = vmul.f32 %v545, %v2796
  %v3003 = vmul.f32 %v1196, %v2800
  %v3004 = vmul.f32 %v1198, %v2804
  %v3005 = vmul.f32 %v549, %v2792
  %v3006 = vmul.f32 %v551, %v2796
  %v3007 = vmul.f32 %v1202, %v2800
  %v3008 = vmul.f32 %v1204, %v2804
  %v3009 = vmul.f32 %v555, %v2792
  %v3010 = vmul.f32 %v557, %v2796
  %v3011 = vmul.f32 %v1208, %v2800
  %v3012 = vmul.f32 %v1210, %v2804
  %v3013 = vmul.f32 %v561, %v2792
  %v3014 = vmul.f32 %v563, %v2796
  %v3015 = vmul.f32 %v1214, %v2800
  %v3016 = vmul.f32 %v1216, %v2804
  %v3017 = vmul.f32 %v567, %v2792
  %v3018 = vmul.f32 %v569, %v2796
  %v3019 = vmul.f32 %v1220, %v2800
  %v3020 = vmul.f32 %v1222, %v2804
  %v3021 = vmul.f32 %v573, %v2792
  %v3022 = vmul.f32 %v575, %v2796
  %v3023 = vmul.f32 %v1226, %v2800
  %v3024 = vmul.f32 %v1228, %v2804
  %v3025 = vmul.f32 %v579, %v2792
  %v3026 = vmul.f32 %v581, %v2796
  %v3027 = vmul.f32 %v1232, %v2800
  %v3028 = vmul.f32 %v1234, %v2804
  %v3029 = vmul.f32 %v585, %v2792
  %v3030 = vmul.f32 %v587, %v2796
  %v3031 = vmul.f32 %v1238, %v2800
  %v3032 = vmul.f32 %v1240, %v2804
  %v3033 = vmul.f32 %v591, %v2792
  %v3034 = vmul.f32 %v593, %v2796
  %v3035 = vmul.f32 %v1244, %v2800
  %v3036 = vmul.f32 %v1246, %v2804
  %v3037 = vmul.f32 %v597, %v2792
  %v3038 = vmul.f32 %v599, %v2796
  %v3039 = vmul.f32 %v1250, %v2800
  %v3040 = vmul.f32 %v1252, %v2804
  %v3041 = vmul.f32 %v603, %v2792
  %v3042 = vmul.f32 %v605, %v2796
  %v3043 = vmul.f32 %v1256, %v2800
  %v3044 = vmul.f32 %v1258, %v2804
  %v3045 = vmul.f32 %v609, %v2792
  %v3046 = vmul.f32 %v611, %v2796
  %v3047 = vmul.f32 %v1262, %v2800
  %v3048 = vmul.f32 %v1264, %v2804
  %v3049 = vmul.f32 %v615, %v2792
  %v3050 = vmul.f32 %v617, %v2796
  %v3051 = vmul.f32 %v1268, %v2800
  %v3052 = vmul.f32 %v1270, %v2804
  %v3053 = vmul.f32 %v621, %v2792
  %v3054 = vmul.f32 %v623, %v2796
  %v3055 = vmul.f32 %v1274, %v2800
  %v3056 = vmul.f32 %v1276, %v2804
  %v3057 = vmul.f32 %v627, %v2792
  %v3058 = vmul.f32 %v629, %v2796
  %v3059 = vmul.f32 %v1280, %v2800
  %v3060 = vmul.f32 %v1282, %v2804
  %v3061 = vmul.f32 %v633, %v2792
  %v3062 = vmul.f32 %v635, %v2796
  %v3063 = vmul.f32 %v1286, %v2800
  %v3064 = vmul.f32 %v1288, %v2804
  %v3065 = vmul.f32 %v639, %v2792
  %v3066 = vmul.f32 %v641, %v2796
  %v3067 = vmul.f32 %v1292, %v2800
  %v3068 = vmul.f32 %v1294, %v2804
  %v3069 = vmul.f32 %v645, %v2792
  %v3070 = vmul.f32 %v647, %v2796
  %v3071 = vmul.f32 %v1298, %v2800
  %v3072 = vmul.f32 %v1300, %v2804
  %v3073 = vmul.f32 %v651, %v2792
  %v3074 = vmul.f32 %v653, %v2796
  %v3075 = vmul.f32 %v1304, %v2800
  %v3076 = vmul.f32 %v1306, %v2804
  %v3077 = vmul.f32 %v657, %v2792
  %v3078 = vmul.f32 %v659, %v2796
  %v3079 = vmul.f32 %v1310, %v2800
  %v3080 = vmul.f32 %v1312, %v2804
  %v3081 = vmul.f32 %v663, %v2792
  %v3082 = vmul.f32 %v665, %v2796
  %v3083 = vmul.f32 %v1316, %v2800
  %v3084 = vmul.f32 %v1318, %v2804
  %v3085 = vmul.f32 %v669, %v2792
  %v3086 = vmul.f32 %v671, %v2796
  %v3087 = vmul.f32 %v1322, %v2800
  %v3088 = vmul.f32 %v1324, %v2804
  %v3089 = vmul.f32 %v675, %v2792
  %v3090 = vmul.f32 %v677, %v2796
  %v3091 = vmul.f32 %v1328, %v2800
  %v3092 = vmul.f32 %v1330, %v2804
  %v3093 = vmul.f32 %v681, %v2792
  %v3094 = vmul.f32 %v683, %v2796
  %v3095 = vmul.f32 %v1334, %v2800
  %v3096 = vmul.f32 %v1336, %v2804
  %v3097 = vmul.f32 %v687, %v2792
  %v3098 = vmul.f32 %v689, %v2796
  %v3099 = vmul.f32 %v1340, %v2800
  %v3100 = vmul.f32 %v1342, %v2804
  %v3101 = vmul.f32 %v693, %v2792
  %v3102 = vmul.f32 %v695, %v2796
  %v3103 = vmul.f32 %v1346, %v2800
  %v3104 = vmul.f32 %v1348, %v2804
  %v3105 = vmul.f32 %v699, %v2792
  %v3106 = vmul.f32 %v701, %v2796
  %v3107 = vmul.f32 %v1352, %v2800
  %v3108 = vmul.f32 %v1354, %v2804
  %v3109 = vmul.f32 %v705, %v2792
  %v3110 = vmul.f32 %v707, %v2796
  %v3111 = vmul.f32 %v1358, %v2800
  %v3112 = vmul.f32 %v1360, %v2804
  %v3113 = vmul.f32 %v711, %v2792
  %v3114 = vmul.f32 %v713, %v2796
  %v3115 = vmul.f32 %v1364, %v2800
  %v3116 = vmul.f32 %v1366, %v2804
  %v3117 = vmul.f32 %v717, %v2792
  %v3118 = vmul.f32 %v719, %v2796
  %v3119 = vmul.f32 %v1370, %v2800
  %v3120 = vmul.f32 %v1372, %v2804
  %v3121 = vmul.f32 %v723, %v2792
  %v3122 = vmul.f32 %v725, %v2796
  %v3123 = vmul.f32 %v1376, %v2800
  %v3124 = vmul.f32 %v1378, %v2804
  %v3125 = vmul.f32 %v729, %v2792
  %v3126 = vmul.f32 %v731, %v2796
  %v3127 = vmul.f32 %v1382, %v2800
  %v3128 = vmul.f32 %v1384, %v2804
  %v3129 = vmul.f32 %v735, %v2792
  %v3130 = vmul.f32 %v737, %v2796
  %v3131 = vmul.f32 %v1388, %v2800
  %v3132 = vmul.f32 %v1390, %v2804
  %v3133 = vmul.f32 %v741, %v2792
  %v3134 = vmul.f32 %v743, %v2796
  %v3135 = vmul.f32 %v1394, %v2800
  %v3136 = vmul.f32 %v1396, %v2804
  %v3137 = vmul.f32 %v747, %v2792
  %v3138 = vmul.f32 %v749, %v2796
  %v3139 = vmul.f32 %v1400, %v2800
  %v3140 = vmul.f32 %v1402, %v2804
  %v3141 = vmul.f32 %v753, %v2792
  %v3142 = vmul.f32 %v755, %v2796
  %v3143 = vmul.f32 %v1406, %v2800
  %v3144 = vmul.f32 %v1408, %v2804
  %v3145 = vmul.f32 %v759, %v2792
  %v3146 = vmul.f32 %v761, %v2796
  %v3147 = vmul.f32 %v1412, %v2800
  %v3148 = vmul.f32 %v1414, %v2804
  %v3149 = vmul.f32 %v765, %v2792
  %v3150 = vmul.f32 %v767, %v2796
  %v3151 = vmul.f32 %v1418, %v2800
  %v3152 = vmul.f32 %v1420, %v2804
  %v3153 = vmul.f32 %v771, %v2792
  %v3154 = vmul.f32 %v773, %v2796
  %v3155 = vmul.f32 %v1424, %v2800
  %v3156 = vmul.f32 %v1426, %v2804
  %v3157 = vmul.f32 %v777, %v2792
  %v3158 = vmul.f32 %v779, %v2796
  %v3159 = vmul.f32 %v1430, %v2800
  %v3160 = vmul.f32 %v1432, %v2804
  %v3161 = vmul.f32 %v783, %v2792
  %v3162 = vmul.f32 %v785, %v2796
  %v3163 = vmul.f32 %v1436, %v2800
  %v3164 = vmul.f32 %v1438, %v2804
  %v3165 = vmul.f32 %v789, %v2792
  %v3166 = vmul.f32 %v791, %v2796
  %v3167 = vmul.f32 %v1442, %v2800
  %v3168 = vmul.f32 %v1444, %v2804
  %v3169 = vmul.f32 %v795, %v2792
  %v3170 = vmul.f32 %v797, %v2796
  %v3171 = vmul.f32 %v1448, %v2800
  %v3172 = vmul.f32 %v1450, %v2804
  %v3173 = vmul.f32 %v801, %v2792
  %v3174 = vmul.f32 %v803, %v2796
  %v3175 = vmul.f32 %v1454, %v2800
  %v3176 = vmul.f32 %v1456, %v2804
  %v3177 = vmul.f32 %v807, %v2792
  %v3178 = vmul.f32 %v809, %v2796
  %v3179 = vmul.f32 %v1460, %v2800
  %v3180 = vmul.f32 %v1462, %v2804
  %v3181 = vmul.f32 %v813, %v2792
  %v3182 = vmul.f32 %v815, %v2796
  %v3183 = vmul.f32 %v1466, %v2800
  %v3184 = vmul.f32 %v1468, %v2804
  %v3185 = vmul.f32 %v819, %v2792
  %v3186 = vmul.f32 %v821, %v2796
  %v3187 = vmul.f32 %v1472, %v2800
  %v3188 = vmul.f32 %v1474, %v2804
  %v3189 = vmul.f32 %v825, %v2792
  %v3190 = vmul.f32 %v827, %v2796
  %v3191 = vmul.f32 %v1478, %v2800
  %v3192 = vmul.f32 %v1480, %v2804
  %v3193 = vmul.f32 %v831, %v2792
  %v3194 = vmul.f32 %v833, %v2796
  %v3195 = vmul.f32 %v1484, %v2800
  %v3196 = vmul.f32 %v1486, %v2804
  %v3198 = vlaneseq
  %v3199 = vshrl.u32 %v3198, 7
  %v3200 = vsub.s32 0, %v3199
  %v3201 = vrot.slane %v2788, %v3200
  %v3202 = vlaneseq
  %v3203 = vshrl.u32 %v3202, 7
  %v3204 = vsub.s32 1, %v3203
  %v3205 = vrot.slane %v2788, %v3204
  %v3206 = vlaneseq
  %v3207 = vshrl.u32 %v3206, 7
  %v3208 = vsub.s32 2, %v3207
  %v3209 = vrot.slane %v2788, %v3208
  %v3210 = vlaneseq
  %v3211 = vshrl.u32 %v3210, 7
  %v3212 = vsub.s32 3, %v3211
  %v3213 = vrot.slane %v2788, %v3212
  %v3218 = vadd.f32 %v2805, %v3201
  %v3219 = vadd.f32 %v2806, %v3205
  %v3220 = vadd.f32 %v2807, %v3209
  %v3221 = vadd.f32 %v2808, %v3213
  %v3222 = vadd.f32 %v2809, %v3201
  %v3223 = vadd.f32 %v2810, %v3205
  %v3224 = vadd.f32 %v2811, %v3209
  %v3225 = vadd.f32 %v2812, %v3213
  %v3226 = vadd.f32 %v2813, %v3201
  %v3227 = vadd.f32 %v2814, %v3205
  %v3228 = vadd.f32 %v2815, %v3209
  %v3229 = vadd.f32 %v2816, %v3213
  %v3230 = vadd.f32 %v2817, %v3201
  %v3231 = vadd.f32 %v2818, %v3205
  %v3232 = vadd.f32 %v2819, %v3209
  %v3233 = vadd.f32 %v2820, %v3213
  %v3234 = vadd.f32 %v2821, %v3201
  %v3235 = vadd.f32 %v2822, %v3205
  %v3236 = vadd.f32 %v2823, %v3209
  %v3237 = vadd.f32 %v2824, %v3213
  %v3238 = vadd.f32 %v2825, %v3201
  %v3239 = vadd.f32 %v2826, %v3205
  %v3240 = vadd.f32 %v2827, %v3209
  %v3241 = vadd.f32 %v2828, %v3213
  %v3242 = vadd.f32 %v2829, %v3201
  %v3243 = vadd.f32 %v2830, %v3205
  %v3244 = vadd.f32 %v2831, %v3209
  %v3245 = vadd.f32 %v2832, %v3213
  %v3246 = vadd.f32 %v2833, %v3201
  %v3247 = vadd.f32 %v2834, %v3205
  %v3248 = vadd.f32 %v2835, %v3209
  %v3249 = vadd.f32 %v2836, %v3213
  %v3250 = vadd.f32 %v2837, %v3201
  %v3251 = vadd.f32 %v2838, %v3205
  %v3252 = vadd.f32 %v2839, %v3209
  %v3253 = vadd.f32 %v2840, %v3213
  %v3254 = vadd.f32 %v2841, %v3201
  %v3255 = vadd.f32 %v2842, %v3205
  %v3256 = vadd.f32 %v2843, %v3209
  %v3257 = vadd.f32 %v2844, %v3213
  %v3258 = vadd.f32 %v2845, %v3201
  %v3259 = vadd.f32 %v2846, %v3205
  %v3260 = vadd.f32 %v2847, %v3209
  %v3261 = vadd.f32 %v2848, %v3213
  %v3262 = vadd.f32 %v2849, %v3201
  %v3263 = vadd.f32 %v2850, %v3205
  %v3264 = vadd.f32 %v2851, %v3209
  %v3265 = vadd.f32 %v2852, %v3213
  %v3266 = vadd.f32 %v2853, %v3201
  %v3267 = vadd.f32 %v2854, %v3205
  %v3268 = vadd.f32 %v2855, %v3209
  %v3269 = vadd.f32 %v2856, %v3213
  %v3270 = vadd.f32 %v2857, %v3201
  %v3271 = vadd.f32 %v2858, %v3205
  %v3272 = vadd.f32 %v2859, %v3209
  %v3273 = vadd.f32 %v2860, %v3213
  %v3274 = vadd.f32 %v2861, %v3201
  %v3275 = vadd.f32 %v2862, %v3205
  %v3276 = vadd.f32 %v2863, %v3209
  %v3277 = vadd.f32 %v2864, %v3213
  %v3278 = vadd.f32 %v2865, %v3201
  %v3279 = vadd.f32 %v2866, %v3205
  %v3280 = vadd.f32 %v2867, %v3209
  %v3281 = vadd.f32 %v2868, %v3213
  %v3282 = vadd.f32 %v2869, %v3201
  %v3283 = vadd.f32 %v2870, %v3205
  %v3284 = vadd.f32 %v2871, %v3209
  %v3285 = vadd.f32 %v2872, %v3213
  %v3286 = vadd.f32 %v2873, %v3201
  %v3287 = vadd.f32 %v2874, %v3205
  %v3288 = vadd.f32 %v2875, %v3209
  %v3289 = vadd.f32 %v2876, %v3213
  %v3290 = vadd.f32 %v2877, %v3201
  %v3291 = vadd.f32 %v2878, %v3205
  %v3292 = vadd.f32 %v2879, %v3209
  %v3293 = vadd.f32 %v2880, %v3213
  %v3294 = vadd.f32 %v2881, %v3201
  %v3295 = vadd.f32 %v2882, %v3205
  %v3296 = vadd.f32 %v2883, %v3209
  %v3297 = vadd.f32 %v2884, %v3213
  %v3298 = vadd.f32 %v2885, %v3201
  %v3299 = vadd.f32 %v2886, %v3205
  %v3300 = vadd.f32 %v2887, %v3209
  %v3301 = vadd.f32 %v2888, %v3213
  %v3302 = vadd.f32 %v2889, %v3201
  %v3303 = vadd.f32 %v2890, %v3205
  %v3304 = vadd.f32 %v2891, %v3209
  %v3305 = vadd.f32 %v2892, %v3213
  %v3306 = vadd.f32 %v2893, %v3201
  %v3307 = vadd.f32 %v2894, %v3205
  %v3308 = vadd.f32 %v2895, %v3209
  %v3309 = vadd.f32 %v2896, %v3213
  %v3310 = vadd.f32 %v2897, %v3201
  %v3311 = vadd.f32 %v2898, %v3205
  %v3312 = vadd.f32 %v2899, %v3209
  %v3313 = vadd.f32 %v2900, %v3213
  %v3314 = vadd.f32 %v2901, %v3201
  %v3315 = vadd.f32 %v2902, %v3205
  %v3316 = vadd.f32 %v2903, %v3209
  %v3317 = vadd.f32 %v2904, %v3213
  %v3318 = vadd.f32 %v2905, %v3201
  %v3319 = vadd.f32 %v2906, %v3205
  %v3320 = vadd.f32 %v2907, %v3209
  %v3321 = vadd.f32 %v2908, %v3213
  %v3322 = vadd.f32 %v2909, %v3201
  %v3323 = vadd.f32 %v2910, %v3205
  %v3324 = vadd.f32 %v2911, %v3209
  %v3325 = vadd.f32 %v2912, %v3213
  %v3326 = vadd.f32 %v2913, %v3201
  %v3327 = vadd.f32 %v2914, %v3205
  %v3328 = vadd.f32 %v2915, %v3209
  %v3329 = vadd.f32 %v2916, %v3213
  %v3330 = vadd.f32 %v2917, %v3201
  %v3331 = vadd.f32 %v2918, %v3205
  %v3332 = vadd.f32 %v2919, %v3209
  %v3333 = vadd.f32 %v2920, %v3213
  %v3334 = vadd.f32 %v2921, %v3201
  %v3335 = vadd.f32 %v2922, %v3205
  %v3336 = vadd.f32 %v2923, %v3209
  %v3337 = vadd.f32 %v2924, %v3213
  %v3338 = vadd.f32 %v2925, %v3201
  %v3339 = vadd.f32 %v2926, %v3205
  %v3340 = vadd.f32 %v2927, %v3209
  %v3341 = vadd.f32 %v2928, %v3213
  %v3342 = vadd.f32 %v2929, %v3201
  %v3343 = vadd.f32 %v2930, %v3205
  %v3344 = vadd.f32 %v2931, %v3209
  %v3345 = vadd.f32 %v2932, %v3213
  %v3346 = vadd.f32 %v2933, %v3201
  %v3347 = vadd.f32 %v2934, %v3205
  %v3348 = vadd.f32 %v2935, %v3209
  %v3349 = vadd.f32 %v2936, %v3213
  %v3350 = vadd.f32 %v2937, %v3201
  %v3351 = vadd.f32 %v2938, %v3205
  %v3352 = vadd.f32 %v2939, %v3209
  %v3353 = vadd.f32 %v2940, %v3213
  %v3354 = vadd.f32 %v2941, %v3201
  %v3355 = vadd.f32 %v2942, %v3205
  %v3356 = vadd.f32 %v2943, %v3209
  %v3357 = vadd.f32 %v2944, %v3213
  %v3358 = vadd.f32 %v2945, %v3201
  %v3359 = vadd.f32 %v2946, %v3205
  %v3360 = vadd.f32 %v2947, %v3209
  %v3361 = vadd.f32 %v2948, %v3213
  %v3362 = vadd.f32 %v2949, %v3201
  %v3363 = vadd.f32 %v2950, %v3205
  %v3364 = vadd.f32 %v2951, %v3209
  %v3365 = vadd.f32 %v2952, %v3213
  %v3366 = vadd.f32 %v2953, %v3201
  %v3367 = vadd.f32 %v2954, %v3205
  %v3368 = vadd.f32 %v2955, %v3209
  %v3369 = vadd.f32 %v2956, %v3213
  %v3370 = vadd.f32 %v2957, %v3201
  %v3371 = vadd.f32 %v2958, %v3205
  %v3372 = vadd.f32 %v2959, %v3209
  %v3373 = vadd.f32 %v2960, %v3213
  %v3374 = vadd.f32 %v2961, %v3201
  %v3375 = vadd.f32 %v2962, %v3205
  %v3376 = vadd.f32 %v2963, %v3209
  %v3377 = vadd.f32 %v2964, %v3213
  %v3378 = vadd.f32 %v2965, %v3201
  %v3379 = vadd.f32 %v2966, %v3205
  %v3380 = vadd.f32 %v2967, %v3209
  %v3381 = vadd.f32 %v2968, %v3213
  %v3382 = vadd.f32 %v2969, %v3201
  %v3383 = vadd.f32 %v2970, %v3205
  %v3384 = vadd.f32 %v2971, %v3209
  %v3385 = vadd.f32 %v2972, %v3213
  %v3386 = vadd.f32 %v2973, %v3201
  %v3387 = vadd.f32 %v2974, %v3205
  %v3388 = vadd.f32 %v2975, %v3209
  %v3389 = vadd.f32 %v2976, %v3213
  %v3390 = vadd.f32 %v2977, %v3201
  %v3391 = vadd.f32 %v2978, %v3205
  %v3392 = vadd.f32 %v2979, %v3209
  %v3393 = vadd.f32 %v2980, %v3213
  %v3394 = vadd.f32 %v2981, %v3201
  %v3395 = vadd.f32 %v2982, %v3205
  %v3396 = vadd.f32 %v2983, %v3209
  %v3397 = vadd.f32 %v2984, %v3213
  %v3398 = vadd.f32 %v2985, %v3201
  %v3399 = vadd.f32 %v2986, %v3205
  %v3400 = vadd.f32 %v2987, %v3209
  %v3401 = vadd.f32 %v2988, %v3213
  %v3402 = vadd.f32 %v2989, %v3201
  %v3403 = vadd.f32 %v2990, %v3205
  %v3404 = vadd.f32 %v2991, %v3209
  %v3405 = vadd.f32 %v2992, %v3213
  %v3406 = vadd.f32 %v2993, %v3201
  %v3407 = vadd.f32 %v2994, %v3205
  %v3408 = vadd.f32 %v2995, %v3209
  %v3409 = vadd.f32 %v2996, %v3213
  %v3410 = vadd.f32 %v2997, %v3201
  %v3411 = vadd.f32 %v2998, %v3205
  %v3412 = vadd.f32 %v2999, %v3209
  %v3413 = vadd.f32 %v3000, %v3213
  %v3414 = vadd.f32 %v3001, %v3201
  %v3415 = vadd.f32 %v3002, %v3205
  %v3416 = vadd.f32 %v3003, %v3209
  %v3417 = vadd.f32 %v3004, %v3213
  %v3418 = vadd.f32 %v3005, %v3201
  %v3419 = vadd.f32 %v3006, %v3205
  %v3420 = vadd.f32 %v3007, %v3209
  %v3421 = vadd.f32 %v3008, %v3213
  %v3422 = vadd.f32 %v3009, %v3201
  %v3423 = vadd.f32 %v3010, %v3205
  %v3424 = vadd.f32 %v3011, %v3209
  %v3425 = vadd.f32 %v3012, %v3213
  %v3426 = vadd.f32 %v3013, %v3201
  %v3427 = vadd.f32 %v3014, %v3205
  %v3428 = vadd.f32 %v3015, %v3209
  %v3429 = vadd.f32 %v3016, %v3213
  %v3430 = vadd.f32 %v3017, %v3201
  %v3431 = vadd.f32 %v3018, %v3205
  %v3432 = vadd.f32 %v3019, %v3209
  %v3433 = vadd.f32 %v3020, %v3213
  %v3434 = vadd.f32 %v3021, %v3201
  %v3435 = vadd.f32 %v3022, %v3205
  %v3436 = vadd.f32 %v3023, %v3209
  %v3437 = vadd.f32 %v3024, %v3213
  %v3438 = vadd.f32 %v3025, %v3201
  %v3439 = vadd.f32 %v3026, %v3205
  %v3440 = vadd.f32 %v3027, %v3209
  %v3441 = vadd.f32 %v3028, %v3213
  %v3442 = vadd.f32 %v3029, %v3201
  %v3443 = vadd.f32 %v3030, %v3205
  %v3444 = vadd.f32 %v3031, %v3209
  %v3445 = vadd.f32 %v3032, %v3213
  %v3446 = vadd.f32 %v3033, %v3201
  %v3447 = vadd.f32 %v3034, %v3205
  %v3448 = vadd.f32 %v3035, %v3209
  %v3449 = vadd.f32 %v3036, %v3213
  %v3450 = vadd.f32 %v3037, %v3201
  %v3451 = vadd.f32 %v3038, %v3205
  %v3452 = vadd.f32 %v3039, %v3209
  %v3453 = vadd.f32 %v3040, %v3213
  %v3454 = vadd.f32 %v3041, %v3201
  %v3455 = vadd.f32 %v3042, %v3205
  %v3456 = vadd.f32 %v3043, %v3209
  %v3457 = vadd.f32 %v3044, %v3213
  %v3458 = vadd.f32 %v3045, %v3201
  %v3459 = vadd.f32 %v3046, %v3205
  %v3460 = vadd.f32 %v3047, %v3209
  %v3461 = vadd.f32 %v3048, %v3213
  %v3462 = vadd.f32 %v3049, %v3201
  %v3463 = vadd.f32 %v3050, %v3205
  %v3464 = vadd.f32 %v3051, %v3209
  %v3465 = vadd.f32 %v3052, %v3213
  %v3466 = vadd.f32 %v3053, %v3201
  %v3467 = vadd.f32 %v3054, %v3205
  %v3468 = vadd.f32 %v3055, %v3209
  %v3469 = vadd.f32 %v3056, %v3213
  %v3470 = vadd.f32 %v3057, %v3201
  %v3471 = vadd.f32 %v3058, %v3205
  %v3472 = vadd.f32 %v3059, %v3209
  %v3473 = vadd.f32 %v3060, %v3213
  %v3474 = vadd.f32 %v3061, %v3201
  %v3475 = vadd.f32 %v3062, %v3205
  %v3476 = vadd.f32 %v3063, %v3209
  %v3477 = vadd.f32 %v3064, %v3213
  %v3478 = vadd.f32 %v3065, %v3201
  %v3479 = vadd.f32 %v3066, %v3205
  %v3480 = vadd.f32 %v3067, %v3209
  %v3481 = vadd.f32 %v3068, %v3213
  %v3482 = vadd.f32 %v3069, %v3201
  %v3483 = vadd.f32 %v3070, %v3205
  %v3484 = vadd.f32 %v3071, %v3209
  %v3485 = vadd.f32 %v3072, %v3213
  %v3486 = vadd.f32 %v3073, %v3201
  %v3487 = vadd.f32 %v3074, %v3205
  %v3488 = vadd.f32 %v3075, %v3209
  %v3489 = vadd.f32 %v3076, %v3213
  %v3490 = vadd.f32 %v3077, %v3201
  %v3491 = vadd.f32 %v3078, %v3205
  %v3492 = vadd.f32 %v3079, %v3209
  %v3493 = vadd.f32 %v3080, %v3213
  %v3494 = vadd.f32 %v3081, %v3201
  %v3495 = vadd.f32 %v3082, %v3205
  %v3496 = vadd.f32 %v3083, %v3209
  %v3497 = vadd.f32 %v3084, %v3213
  %v3498 = vadd.f32 %v3085, %v3201
  %v3499 = vadd.f32 %v3086, %v3205
  %v3500 = vadd.f32 %v3087, %v3209
  %v3501 = vadd.f32 %v3088, %v3213
  %v3502 = vadd.f32 %v3089, %v3201
  %v3503 = vadd.f32 %v3090, %v3205
  %v3504 = vadd.f32 %v3091, %v3209
  %v3505 = vadd.f32 %v3092, %v3213
  %v3506 = vadd.f32 %v3093, %v3201
  %v3507 = vadd.f32 %v3094, %v3205
  %v3508 = vadd.f32 %v3095, %v3209
  %v3509 = vadd.f32 %v3096, %v3213
  %v3510 = vadd.f32 %v3097, %v3201
  %v3511 = vadd.f32 %v3098, %v3205
  %v3512 = vadd.f32 %v3099, %v3209
  %v3513 = vadd.f32 %v3100, %v3213
  %v3514 = vadd.f32 %v3101, %v3201
  %v3515 = vadd.f32 %v3102, %v3205
  %v3516 = vadd.f32 %v3103, %v3209
  %v3517 = vadd.f32 %v3104, %v3213
  %v3518 = vadd.f32 %v3105, %v3201
  %v3519 = vadd.f32 %v3106, %v3205
  %v3520 = vadd.f32 %v3107, %v3209
  %v3521 = vadd.f32 %v3108, %v3213
  %v3522 = vadd.f32 %v3109, %v3201
  %v3523 = vadd.f32 %v3110, %v3205
  %v3524 = vadd.f32 %v3111, %v3209
  %v3525 = vadd.f32 %v3112, %v3213
  %v3526 = vadd.f32 %v3113, %v3201
  %v3527 = vadd.f32 %v3114, %v3205
  %v3528 = vadd.f32 %v3115, %v3209
  %v3529 = vadd.f32 %v3116, %v3213
  %v3530 = vadd.f32 %v3117, %v3201
  %v3531 = vadd.f32 %v3118, %v3205
  %v3532 = vadd.f32 %v3119, %v3209
  %v3533 = vadd.f32 %v3120, %v3213
  %v3534 = vadd.f32 %v3121, %v3201
  %v3535 = vadd.f32 %v3122, %v3205
  %v3536 = vadd.f32 %v3123, %v3209
  %v3537 = vadd.f32 %v3124, %v3213
  %v3538 = vadd.f32 %v3125, %v3201
  %v3539 = vadd.f32 %v3126, %v3205
  %v3540 = vadd.f32 %v3127, %v3209
  %v3541 = vadd.f32 %v3128, %v3213
  %v3542 = vadd.f32 %v3129, %v3201
  %v3543 = vadd.f32 %v3130, %v3205
  %v3544 = vadd.f32 %v3131, %v3209
  %v3545 = vadd.f32 %v3132, %v3213
  %v3546 = vadd.f32 %v3133, %v3201
  %v3547 = vadd.f32 %v3134, %v3205
  %v3548 = vadd.f32 %v3135, %v3209
  %v3549 = vadd.f32 %v3136, %v3213
  %v3550 = vadd.f32 %v3137, %v3201
  %v3551 = vadd.f32 %v3138, %v3205
  %v3552 = vadd.f32 %v3139, %v3209
  %v3553 = vadd.f32 %v3140, %v3213
  %v3554 = vadd.f32 %v3141, %v3201
  %v3555 = vadd.f32 %v3142, %v3205
  %v3556 = vadd.f32 %v3143, %v3209
  %v3557 = vadd.f32 %v3144, %v3213
  %v3558 = vadd.f32 %v3145, %v3201
  %v3559 = vadd.f32 %v3146, %v3205
  %v3560 = vadd.f32 %v3147, %v3209
  %v3561 = vadd.f32 %v3148, %v3213
  %v3562 = vadd.f32 %v3149, %v3201
  %v3563 = vadd.f32 %v3150, %v3205
  %v3564 = vadd.f32 %v3151, %v3209
  %v3565 = vadd.f32 %v3152, %v3213
  %v3566 = vadd.f32 %v3153, %v3201
  %v3567 = vadd.f32 %v3154, %v3205
  %v3568 = vadd.f32 %v3155, %v3209
  %v3569 = vadd.f32 %v3156, %v3213
  %v3570 = vadd.f32 %v3157, %v3201
  %v3571 = vadd.f32 %v3158, %v3205
  %v3572 = vadd.f32 %v3159, %v3209
  %v3573 = vadd.f32 %v3160, %v3213
  %v3574 = vadd.f32 %v3161, %v3201
  %v3575 = vadd.f32 %v3162, %v3205
  %v3576 = vadd.f32 %v3163, %v3209
  %v3577 = vadd.f32 %v3164, %v3213
  %v3578 = vadd.f32 %v3165, %v3201
  %v3579 = vadd.f32 %v3166, %v3205
  %v3580 = vadd.f32 %v3167, %v3209
  %v3581 = vadd.f32 %v3168, %v3213
  %v3582 = vadd.f32 %v3169, %v3201
  %v3583 = vadd.f32 %v3170, %v3205
  %v3584 = vadd.f32 %v3171, %v3209
  %v3585 = vadd.f32 %v3172, %v3213
  %v3586 = vadd.f32 %v3173, %v3201
  %v3587 = vadd.f32 %v3174, %v3205
  %v3588 = vadd.f32 %v3175, %v3209
  %v3589 = vadd.f32 %v3176, %v3213
  %v3590 = vadd.f32 %v3177, %v3201
  %v3591 = vadd.f32 %v3178, %v3205
  %v3592 = vadd.f32 %v3179, %v3209
  %v3593 = vadd.f32 %v3180, %v3213
  %v3594 = vadd.f32 %v3181, %v3201
  %v3595 = vadd.f32 %v3182, %v3205
  %v3596 = vadd.f32 %v3183, %v3209
  %v3597 = vadd.f32 %v3184, %v3213
  %v3598 = vadd.f32 %v3185, %v3201
  %v3599 = vadd.f32 %v3186, %v3205
  %v3600 = vadd.f32 %v3187, %v3209
  %v3601 = vadd.f32 %v3188, %v3213
  %v3602 = vadd.f32 %v3189, %v3201
  %v3603 = vadd.f32 %v3190, %v3205
  %v3604 = vadd.f32 %v3191, %v3209
  %v3605 = vadd.f32 %v3192, %v3213
  %v3606 = vadd.f32 %v3193, %v3201
  %v3607 = vadd.f32 %v3194, %v3205
  %v3608 = vadd.f32 %v3195, %v3209
  %v3609 = vadd.f32 %v3196, %v3213
  %v3610 = vld [vmem:[%s4] sm:$0xff]
  %v3611 = vld [vmem:[%s4 + $0x8] sm:$0xff]
  %v3612 = vld [vmem:[%s4 + $0x10] sm:$0xff]
  %v3613 = vld [vmem:[%s4 + $0x18] sm:$0xff]
  %v3614 = vld [vmem:[%s4 + $0x20] sm:$0xff]
  %v3615 = vld [vmem:[%s4 + $0x28] sm:$0xff]
  %v3616 = vld [vmem:[%s4 + $0x30] sm:$0xff]
  %v3617 = vld [vmem:[%s4 + $0x38] sm:$0xff]
  %v3618 = vld [vmem:[%s4 + $0x40] sm:$0xff]
  %v3619 = vld [vmem:[%s4 + $0x48] sm:$0xff]
  %v3620 = vld [vmem:[%s4 + $0x50] sm:$0xff]
  %v3621 = vld [vmem:[%s4 + $0x58] sm:$0xff]
  %v3622 = vld [vmem:[%s4 + $0x60] sm:$0xff]
  %v3623 = vld [vmem:[%s4 + $0x68] sm:$0xff]
  %v3624 = vld [vmem:[%s4 + $0x70] sm:$0xff]
  %v3625 = vld [vmem:[%s4 + $0x78] sm:$0xff]
  %v3626 = vld [vmem:[%s4 + $0x80] sm:$0xff]
  %v3627 = vld [vmem:[%s4 + $0x88] sm:$0xff]
  %v3628 = vld [vmem:[%s4 + $0x90] sm:$0xff]
  %v3629 = vld [vmem:[%s4 + $0x98] sm:$0xff]
  %v3630 = vld [vmem:[%s4 + $0xa0] sm:$0xff]
  %v3631 = vld [vmem:[%s4 + $0xa8] sm:$0xff]
  %v3632 = vld [vmem:[%s4 + $0xb0] sm:$0xff]
  %v3633 = vld [vmem:[%s4 + $0xb8] sm:$0xff]
  %v3634 = vld [vmem:[%s4 + $0xc0] sm:$0xff]
  %v3635 = vld [vmem:[%s4 + $0xc8] sm:$0xff]
  %v3636 = vld [vmem:[%s4 + $0xd0] sm:$0xff]
  %v3637 = vld [vmem:[%s4 + $0xd8] sm:$0xff]
  %v3638 = vld [vmem:[%s4 + $0xe0] sm:$0xff]
  %v3639 = vld [vmem:[%s4 + $0xe8] sm:$0xff]
  %v3640 = vld [vmem:[%s4 + $0xf0] sm:$0xff]
  %v3641 = vld [vmem:[%s4 + $0xf8] sm:$0xff]
  %v3642 = vld [vmem:[%s4 + $0x100] sm:$0xff]
  %v3643 = vld [vmem:[%s4 + $0x108] sm:$0xff]
  %v3644 = vld [vmem:[%s4 + $0x110] sm:$0xff]
  %v3645 = vld [vmem:[%s4 + $0x118] sm:$0xff]
  %v3646 = vld [vmem:[%s4 + $0x120] sm:$0xff]
  %v3647 = vld [vmem:[%s4 + $0x128] sm:$0xff]
  %v3648 = vld [vmem:[%s4 + $0x130] sm:$0xff]
  %v3649 = vld [vmem:[%s4 + $0x138] sm:$0xff]
  %v3650 = vld [vmem:[%s4 + $0x140] sm:$0xff]
  %v3651 = vld [vmem:[%s4 + $0x148] sm:$0xff]
  %v3652 = vld [vmem:[%s4 + $0x150] sm:$0xff]
  %v3653 = vld [vmem:[%s4 + $0x158] sm:$0xff]
  %v3654 = vld [vmem:[%s4 + $0x160] sm:$0xff]
  %v3655 = vld [vmem:[%s4 + $0x168] sm:$0xff]
  %v3656 = vld [vmem:[%s4 + $0x170] sm:$0xff]
  %v3657 = vld [vmem:[%s4 + $0x178] sm:$0xff]
  %v3658 = vld [vmem:[%s4 + $0x180] sm:$0xff]
  %v3659 = vld [vmem:[%s4 + $0x188] sm:$0xff]
  %v3660 = vld [vmem:[%s4 + $0x190] sm:$0xff]
  %v3661 = vld [vmem:[%s4 + $0x198] sm:$0xff]
  %v3662 = vld [vmem:[%s4 + $0x1a0] sm:$0xff]
  %v3663 = vld [vmem:[%s4 + $0x1a8] sm:$0xff]
  %v3664 = vld [vmem:[%s4 + $0x1b0] sm:$0xff]
  %v3665 = vld [vmem:[%s4 + $0x1b8] sm:$0xff]
  %v3666 = vld [vmem:[%s4 + $0x1c0] sm:$0xff]
  %v3667 = vld [vmem:[%s4 + $0x1c8] sm:$0xff]
  %v3668 = vld [vmem:[%s4 + $0x1d0] sm:$0xff]
  %v3669 = vld [vmem:[%s4 + $0x1d8] sm:$0xff]
  %v3670 = vld [vmem:[%s4 + $0x1e0] sm:$0xff]
  %v3671 = vld [vmem:[%s4 + $0x1e8] sm:$0xff]
  %v3672 = vld [vmem:[%s4 + $0x1f0] sm:$0xff]
  %v3673 = vld [vmem:[%s4 + $0x1f8] sm:$0xff]
  %v3674 = vld [vmem:[%s4 + $0x200] sm:$0xff]
  %v3675 = vld [vmem:[%s4 + $0x208] sm:$0xff]
  %v3676 = vld [vmem:[%s4 + $0x210] sm:$0xff]
  %v3677 = vld [vmem:[%s4 + $0x218] sm:$0xff]
  %v3678 = vld [vmem:[%s4 + $0x220] sm:$0xff]
  %v3679 = vld [vmem:[%s4 + $0x228] sm:$0xff]
  %v3680 = vld [vmem:[%s4 + $0x230] sm:$0xff]
  %v3681 = vld [vmem:[%s4 + $0x238] sm:$0xff]
  %v3682 = vld [vmem:[%s4 + $0x240] sm:$0xff]
  %v3683 = vld [vmem:[%s4 + $0x248] sm:$0xff]
  %v3684 = vld [vmem:[%s4 + $0x250] sm:$0xff]
  %v3685 = vld [vmem:[%s4 + $0x258] sm:$0xff]
  %v3686 = vld [vmem:[%s4 + $0x260] sm:$0xff]
  %v3687 = vld [vmem:[%s4 + $0x268] sm:$0xff]
  %v3688 = vld [vmem:[%s4 + $0x270] sm:$0xff]
  %v3689 = vld [vmem:[%s4 + $0x278] sm:$0xff]
  %v3690 = vld [vmem:[%s4 + $0x280] sm:$0xff]
  %v3691 = vld [vmem:[%s4 + $0x288] sm:$0xff]
  %v3692 = vld [vmem:[%s4 + $0x290] sm:$0xff]
  %v3693 = vld [vmem:[%s4 + $0x298] sm:$0xff]
  %v3694 = vld [vmem:[%s4 + $0x2a0] sm:$0xff]
  %v3695 = vld [vmem:[%s4 + $0x2a8] sm:$0xff]
  %v3696 = vld [vmem:[%s4 + $0x2b0] sm:$0xff]
  %v3697 = vld [vmem:[%s4 + $0x2b8] sm:$0xff]
  %v3698 = vld [vmem:[%s4 + $0x2c0] sm:$0xff]
  %v3699 = vld [vmem:[%s4 + $0x2c8] sm:$0xff]
  %v3700 = vld [vmem:[%s4 + $0x2d0] sm:$0xff]
  %v3701 = vld [vmem:[%s4 + $0x2d8] sm:$0xff]
  %v3702 = vld [vmem:[%s4 + $0x2e0] sm:$0xff]
  %v3703 = vld [vmem:[%s4 + $0x2e8] sm:$0xff]
  %v3704 = vld [vmem:[%s4 + $0x2f0] sm:$0xff]
  %v3705 = vld [vmem:[%s4 + $0x2f8] sm:$0xff]
  %v3706 = vld [vmem:[%s4 + $0x300] sm:$0xff]
  %v3707 = vld [vmem:[%s4 + $0x308] sm:$0xff]
  %v3708 = vld [vmem:[%s4 + $0x310] sm:$0xff]
  %v3709 = vld [vmem:[%s4 + $0x318] sm:$0xff]
  %v3710 = vld [vmem:[%s4 + $0x320] sm:$0xff]
  %v3711 = vld [vmem:[%s4 + $0x328] sm:$0xff]
  %v3712 = vld [vmem:[%s4 + $0x330] sm:$0xff]
  %v3713 = vld [vmem:[%s4 + $0x338] sm:$0xff]
  %v3714 = vld [vmem:[%s4 + $0x340] sm:$0xff]
  %v3715 = vld [vmem:[%s4 + $0x348] sm:$0xff]
  %v3716 = vld [vmem:[%s4 + $0x350] sm:$0xff]
  %v3717 = vld [vmem:[%s4 + $0x358] sm:$0xff]
  %v3718 = vld [vmem:[%s4 + $0x360] sm:$0xff]
  %v3719 = vld [vmem:[%s4 + $0x368] sm:$0xff]
  %v3720 = vld [vmem:[%s4 + $0x370] sm:$0xff]
  %v3721 = vld [vmem:[%s4 + $0x378] sm:$0xff]
  %v3722 = vld [vmem:[%s4 + $0x380] sm:$0xff]
  %v3723 = vld [vmem:[%s4 + $0x388] sm:$0xff]
  %v3724 = vld [vmem:[%s4 + $0x390] sm:$0xff]
  %v3725 = vld [vmem:[%s4 + $0x398] sm:$0xff]
  %v3726 = vld [vmem:[%s4 + $0x3a0] sm:$0xff]
  %v3727 = vld [vmem:[%s4 + $0x3a8] sm:$0xff]
  %v3728 = vld [vmem:[%s4 + $0x3b0] sm:$0xff]
  %v3729 = vld [vmem:[%s4 + $0x3b8] sm:$0xff]
  %v3730 = vld [vmem:[%s4 + $0x3c0] sm:$0xff]
  %v3731 = vld [vmem:[%s4 + $0x3c8] sm:$0xff]
  %v3732 = vld [vmem:[%s4 + $0x3d0] sm:$0xff]
  %v3733 = vld [vmem:[%s4 + $0x3d8] sm:$0xff]
  %v3734 = vld [vmem:[%s4 + $0x3e0] sm:$0xff]
  %v3735 = vld [vmem:[%s4 + $0x3e8] sm:$0xff]
  %v3736 = vld [vmem:[%s4 + $0x3f0] sm:$0xff]
  %v3737 = vld [vmem:[%s4 + $0x3f8] sm:$0xff]
  %v3738 = vld [vmem:[%s4 + $0x400] sm:$0xff]
  %v3739 = vld [vmem:[%s4 + $0x408] sm:$0xff]
  %v3740 = vld [vmem:[%s4 + $0x410] sm:$0xff]
  %v3741 = vld [vmem:[%s4 + $0x418] sm:$0xff]
  %v3742 = vld [vmem:[%s4 + $0x420] sm:$0xff]
  %v3743 = vld [vmem:[%s4 + $0x428] sm:$0xff]
  %v3744 = vld [vmem:[%s4 + $0x430] sm:$0xff]
  %v3745 = vld [vmem:[%s4 + $0x438] sm:$0xff]
  %v3746 = vld [vmem:[%s4 + $0x440] sm:$0xff]
  %v3747 = vld [vmem:[%s4 + $0x448] sm:$0xff]
  %v3748 = vld [vmem:[%s4 + $0x450] sm:$0xff]
  %v3749 = vld [vmem:[%s4 + $0x458] sm:$0xff]
  %v3750 = vld [vmem:[%s4 + $0x460] sm:$0xff]
  %v3751 = vld [vmem:[%s4 + $0x468] sm:$0xff]
  %v3752 = vld [vmem:[%s4 + $0x470] sm:$0xff]
  %v3753 = vld [vmem:[%s4 + $0x478] sm:$0xff]
  %v3754 = vld [vmem:[%s4 + $0x480] sm:$0xff]
  %v3755 = vld [vmem:[%s4 + $0x488] sm:$0xff]
  %v3756 = vld [vmem:[%s4 + $0x490] sm:$0xff]
  %v3757 = vld [vmem:[%s4 + $0x498] sm:$0xff]
  %v3758 = vld [vmem:[%s4 + $0x4a0] sm:$0xff]
  %v3759 = vld [vmem:[%s4 + $0x4a8] sm:$0xff]
  %v3760 = vld [vmem:[%s4 + $0x4b0] sm:$0xff]
  %v3761 = vld [vmem:[%s4 + $0x4b8] sm:$0xff]
  %v3762 = vld [vmem:[%s4 + $0x4c0] sm:$0xff]
  %v3763 = vld [vmem:[%s4 + $0x4c8] sm:$0xff]
  %v3764 = vld [vmem:[%s4 + $0x4d0] sm:$0xff]
  %v3765 = vld [vmem:[%s4 + $0x4d8] sm:$0xff]
  %v3766 = vld [vmem:[%s4 + $0x4e0] sm:$0xff]
  %v3767 = vld [vmem:[%s4 + $0x4e8] sm:$0xff]
  %v3768 = vld [vmem:[%s4 + $0x4f0] sm:$0xff]
  %v3769 = vld [vmem:[%s4 + $0x4f8] sm:$0xff]
  %v3770 = vld [vmem:[%s4 + $0x500] sm:$0xff]
  %v3771 = vld [vmem:[%s4 + $0x508] sm:$0xff]
  %v3772 = vld [vmem:[%s4 + $0x510] sm:$0xff]
  %v3773 = vld [vmem:[%s4 + $0x518] sm:$0xff]
  %v3774 = vld [vmem:[%s4 + $0x520] sm:$0xff]
  %v3775 = vld [vmem:[%s4 + $0x528] sm:$0xff]
  %v3776 = vld [vmem:[%s4 + $0x530] sm:$0xff]
  %v3777 = vld [vmem:[%s4 + $0x538] sm:$0xff]
  %v3778 = vld [vmem:[%s4 + $0x540] sm:$0xff]
  %v3779 = vld [vmem:[%s4 + $0x548] sm:$0xff]
  %v3780 = vld [vmem:[%s4 + $0x550] sm:$0xff]
  %v3781 = vld [vmem:[%s4 + $0x558] sm:$0xff]
  %v3782 = vld [vmem:[%s4 + $0x560] sm:$0xff]
  %v3783 = vld [vmem:[%s4 + $0x568] sm:$0xff]
  %v3784 = vld [vmem:[%s4 + $0x570] sm:$0xff]
  %v3785 = vld [vmem:[%s4 + $0x578] sm:$0xff]
  %v3786 = vld [vmem:[%s4 + $0x580] sm:$0xff]
  %v3787 = vld [vmem:[%s4 + $0x588] sm:$0xff]
  %v3788 = vld [vmem:[%s4 + $0x590] sm:$0xff]
  %v3789 = vld [vmem:[%s4 + $0x598] sm:$0xff]
  %v3790 = vld [vmem:[%s4 + $0x5a0] sm:$0xff]
  %v3791 = vld [vmem:[%s4 + $0x5a8] sm:$0xff]
  %v3792 = vld [vmem:[%s4 + $0x5b0] sm:$0xff]
  %v3793 = vld [vmem:[%s4 + $0x5b8] sm:$0xff]
  %v3794 = vld [vmem:[%s4 + $0x5c0] sm:$0xff]
  %v3795 = vld [vmem:[%s4 + $0x5c8] sm:$0xff]
  %v3796 = vld [vmem:[%s4 + $0x5d0] sm:$0xff]
  %v3797 = vld [vmem:[%s4 + $0x5d8] sm:$0xff]
  %v3798 = vld [vmem:[%s4 + $0x5e0] sm:$0xff]
  %v3799 = vld [vmem:[%s4 + $0x5e8] sm:$0xff]
  %v3800 = vld [vmem:[%s4 + $0x5f0] sm:$0xff]
  %v3801 = vld [vmem:[%s4 + $0x5f8] sm:$0xff]
  %v3802 = vld [vmem:[%s4 + $0x600] sm:$0xff]
  %v3803 = vld [vmem:[%s4 + $0x608] sm:$0xff]
  %v3804 = vld [vmem:[%s4 + $0x610] sm:$0xff]
  %v3805 = vld [vmem:[%s4 + $0x618] sm:$0xff]
  %v3806 = vld [vmem:[%s4 + $0x620] sm:$0xff]
  %v3807 = vld [vmem:[%s4 + $0x628] sm:$0xff]
  %v3808 = vld [vmem:[%s4 + $0x630] sm:$0xff]
  %v3809 = vld [vmem:[%s4 + $0x638] sm:$0xff]
  %v3810 = vld [vmem:[%s4 + $0x640] sm:$0xff]
  %v3811 = vld [vmem:[%s4 + $0x648] sm:$0xff]
  %v3812 = vld [vmem:[%s4 + $0x650] sm:$0xff]
  %v3813 = vld [vmem:[%s4 + $0x658] sm:$0xff]
  %v3814 = vld [vmem:[%s4 + $0x660] sm:$0xff]
  %v3815 = vld [vmem:[%s4 + $0x668] sm:$0xff]
  %v3816 = vld [vmem:[%s4 + $0x670] sm:$0xff]
  %v3817 = vld [vmem:[%s4 + $0x678] sm:$0xff]
  %v3818 = vld [vmem:[%s4 + $0x680] sm:$0xff]
  %v3819 = vld [vmem:[%s4 + $0x688] sm:$0xff]
  %v3820 = vld [vmem:[%s4 + $0x690] sm:$0xff]
  %v3821 = vld [vmem:[%s4 + $0x698] sm:$0xff]
  %v3822 = vld [vmem:[%s4 + $0x6a0] sm:$0xff]
  %v3823 = vld [vmem:[%s4 + $0x6a8] sm:$0xff]
  %v3824 = vld [vmem:[%s4 + $0x6b0] sm:$0xff]
  %v3825 = vld [vmem:[%s4 + $0x6b8] sm:$0xff]
  %v3826 = vld [vmem:[%s4 + $0x6c0] sm:$0xff]
  %v3827 = vld [vmem:[%s4 + $0x6c8] sm:$0xff]
  %v3828 = vld [vmem:[%s4 + $0x6d0] sm:$0xff]
  %v3829 = vld [vmem:[%s4 + $0x6d8] sm:$0xff]
  %v3830 = vld [vmem:[%s4 + $0x6e0] sm:$0xff]
  %v3831 = vld [vmem:[%s4 + $0x6e8] sm:$0xff]
  %v3832 = vld [vmem:[%s4 + $0x6f0] sm:$0xff]
  %v3833 = vld [vmem:[%s4 + $0x6f8] sm:$0xff]
  %v3834 = vld [vmem:[%s4 + $0x700] sm:$0xff]
  %v3835 = vld [vmem:[%s4 + $0x708] sm:$0xff]
  %v3836 = vld [vmem:[%s4 + $0x710] sm:$0xff]
  %v3837 = vld [vmem:[%s4 + $0x718] sm:$0xff]
  %v3838 = vld [vmem:[%s4 + $0x720] sm:$0xff]
  %v3839 = vld [vmem:[%s4 + $0x728] sm:$0xff]
  %v3840 = vld [vmem:[%s4 + $0x730] sm:$0xff]
  %v3841 = vld [vmem:[%s4 + $0x738] sm:$0xff]
  %v3842 = vld [vmem:[%s4 + $0x740] sm:$0xff]
  %v3843 = vld [vmem:[%s4 + $0x748] sm:$0xff]
  %v3844 = vld [vmem:[%s4 + $0x750] sm:$0xff]
  %v3845 = vld [vmem:[%s4 + $0x758] sm:$0xff]
  %v3846 = vld [vmem:[%s4 + $0x760] sm:$0xff]
  %v3847 = vld [vmem:[%s4 + $0x768] sm:$0xff]
  %v3848 = vld [vmem:[%s4 + $0x770] sm:$0xff]
  %v3849 = vld [vmem:[%s4 + $0x778] sm:$0xff]
  %v3850 = vld [vmem:[%s4 + $0x780] sm:$0xff]
  %v3851 = vld [vmem:[%s4 + $0x788] sm:$0xff]
  %v3852 = vld [vmem:[%s4 + $0x790] sm:$0xff]
  %v3853 = vld [vmem:[%s4 + $0x798] sm:$0xff]
  %v3854 = vld [vmem:[%s4 + $0x7a0] sm:$0xff]
  %v3855 = vld [vmem:[%s4 + $0x7a8] sm:$0xff]
  %v3856 = vld [vmem:[%s4 + $0x7b0] sm:$0xff]
  %v3857 = vld [vmem:[%s4 + $0x7b8] sm:$0xff]
  %v3858 = vld [vmem:[%s4 + $0x7c0] sm:$0xff]
  %v3859 = vld [vmem:[%s4 + $0x7c8] sm:$0xff]
  %v3860 = vld [vmem:[%s4 + $0x7d0] sm:$0xff]
  %v3861 = vld [vmem:[%s4 + $0x7d8] sm:$0xff]
  %v3862 = vld [vmem:[%s4 + $0x7e0] sm:$0xff]
  %v3863 = vld [vmem:[%s4 + $0x7e8] sm:$0xff]
  %v3864 = vld [vmem:[%s4 + $0x7f0] sm:$0xff]
  %v3865 = vld [vmem:[%s4 + $0x7f8] sm:$0xff]
  %v3866 = vld [vmem:[%s4 + $0x800] sm:$0xff]
  %v3867 = vld [vmem:[%s4 + $0x808] sm:$0xff]
  %v3868 = vld [vmem:[%s4 + $0x810] sm:$0xff]
  %v3869 = vld [vmem:[%s4 + $0x818] sm:$0xff]
  %v3870 = vld [vmem:[%s4 + $0x820] sm:$0xff]
  %v3871 = vld [vmem:[%s4 + $0x828] sm:$0xff]
  %v3872 = vld [vmem:[%s4 + $0x830] sm:$0xff]
  %v3873 = vld [vmem:[%s4 + $0x838] sm:$0xff]
  %v3874 = vld [vmem:[%s4 + $0x840] sm:$0xff]
  %v3875 = vld [vmem:[%s4 + $0x848] sm:$0xff]
  %v3876 = vld [vmem:[%s4 + $0x850] sm:$0xff]
  %v3877 = vld [vmem:[%s4 + $0x858] sm:$0xff]
  %v3878 = vld [vmem:[%s4 + $0x860] sm:$0xff]
  %v3879 = vld [vmem:[%s4 + $0x868] sm:$0xff]
  %v3880 = vld [vmem:[%s4 + $0x870] sm:$0xff]
  %v3881 = vld [vmem:[%s4 + $0x878] sm:$0xff]
  %v3882 = vld [vmem:[%s4 + $0x880] sm:$0xff]
  %v3883 = vld [vmem:[%s4 + $0x888] sm:$0xff]
  %v3884 = vld [vmem:[%s4 + $0x890] sm:$0xff]
  %v3885 = vld [vmem:[%s4 + $0x898] sm:$0xff]
  %v3886 = vld [vmem:[%s4 + $0x8a0] sm:$0xff]
  %v3887 = vld [vmem:[%s4 + $0x8a8] sm:$0xff]
  %v3888 = vld [vmem:[%s4 + $0x8b0] sm:$0xff]
  %v3889 = vld [vmem:[%s4 + $0x8b8] sm:$0xff]
  %v3890 = vld [vmem:[%s4 + $0x8c0] sm:$0xff]
  %v3891 = vld [vmem:[%s4 + $0x8c8] sm:$0xff]
  %v3892 = vld [vmem:[%s4 + $0x8d0] sm:$0xff]
  %v3893 = vld [vmem:[%s4 + $0x8d8] sm:$0xff]
  %v3894 = vld [vmem:[%s4 + $0x8e0] sm:$0xff]
  %v3895 = vld [vmem:[%s4 + $0x8e8] sm:$0xff]
  %v3896 = vld [vmem:[%s4 + $0x8f0] sm:$0xff]
  %v3897 = vld [vmem:[%s4 + $0x8f8] sm:$0xff]
  %v3898 = vld [vmem:[%s4 + $0x900] sm:$0xff]
  %v3899 = vld [vmem:[%s4 + $0x908] sm:$0xff]
  %v3900 = vld [vmem:[%s4 + $0x910] sm:$0xff]
  %v3901 = vld [vmem:[%s4 + $0x918] sm:$0xff]
  %v3902 = vld [vmem:[%s4 + $0x920] sm:$0xff]
  %v3903 = vld [vmem:[%s4 + $0x928] sm:$0xff]
  %v3904 = vld [vmem:[%s4 + $0x930] sm:$0xff]
  %v3905 = vld [vmem:[%s4 + $0x938] sm:$0xff]
  %v3906 = vld [vmem:[%s4 + $0x940] sm:$0xff]
  %v3907 = vld [vmem:[%s4 + $0x948] sm:$0xff]
  %v3908 = vld [vmem:[%s4 + $0x950] sm:$0xff]
  %v3909 = vld [vmem:[%s4 + $0x958] sm:$0xff]
  %v3910 = vld [vmem:[%s4 + $0x960] sm:$0xff]
  %v3911 = vld [vmem:[%s4 + $0x968] sm:$0xff]
  %v3912 = vld [vmem:[%s4 + $0x970] sm:$0xff]
  %v3913 = vld [vmem:[%s4 + $0x978] sm:$0xff]
  %v3914 = vld [vmem:[%s4 + $0x980] sm:$0xff]
  %v3915 = vld [vmem:[%s4 + $0x988] sm:$0xff]
  %v3916 = vld [vmem:[%s4 + $0x990] sm:$0xff]
  %v3917 = vld [vmem:[%s4 + $0x998] sm:$0xff]
  %v3918 = vld [vmem:[%s4 + $0x9a0] sm:$0xff]
  %v3919 = vld [vmem:[%s4 + $0x9a8] sm:$0xff]
  %v3920 = vld [vmem:[%s4 + $0x9b0] sm:$0xff]
  %v3921 = vld [vmem:[%s4 + $0x9b8] sm:$0xff]
  %v3922 = vld [vmem:[%s4 + $0x9c0] sm:$0xff]
  %v3923 = vld [vmem:[%s4 + $0x9c8] sm:$0xff]
  %v3924 = vld [vmem:[%s4 + $0x9d0] sm:$0xff]
  %v3925 = vld [vmem:[%s4 + $0x9d8] sm:$0xff]
  %v3926 = vld [vmem:[%s4 + $0x9e0] sm:$0xff]
  %v3927 = vld [vmem:[%s4 + $0x9e8] sm:$0xff]
  %v3928 = vld [vmem:[%s4 + $0x9f0] sm:$0xff]
  %v3929 = vld [vmem:[%s4 + $0x9f8] sm:$0xff]
  %v3930 = vld [vmem:[%s4 + $0xa00] sm:$0xff]
  %v3931 = vld [vmem:[%s4 + $0xa08] sm:$0xff]
  %v3932 = vld [vmem:[%s4 + $0xa10] sm:$0xff]
  %v3933 = vld [vmem:[%s4 + $0xa18] sm:$0xff]
  %v3934 = vld [vmem:[%s4 + $0xa20] sm:$0xff]
  %v3935 = vld [vmem:[%s4 + $0xa28] sm:$0xff]
  %v3936 = vld [vmem:[%s4 + $0xa30] sm:$0xff]
  %v3937 = vld [vmem:[%s4 + $0xa38] sm:$0xff]
  %v3938 = vld [vmem:[%s4 + $0xa40] sm:$0xff]
  %v3939 = vld [vmem:[%s4 + $0xa48] sm:$0xff]
  %v3940 = vld [vmem:[%s4 + $0xa50] sm:$0xff]
  %v3941 = vld [vmem:[%s4 + $0xa58] sm:$0xff]
  %v3942 = vld [vmem:[%s4 + $0xa60] sm:$0xff]
  %v3943 = vld [vmem:[%s4 + $0xa68] sm:$0xff]
  %v3944 = vld [vmem:[%s4 + $0xa70] sm:$0xff]
  %v3945 = vld [vmem:[%s4 + $0xa78] sm:$0xff]
  %v3946 = vld [vmem:[%s4 + $0xa80] sm:$0xff]
  %v3947 = vld [vmem:[%s4 + $0xa88] sm:$0xff]
  %v3948 = vld [vmem:[%s4 + $0xa90] sm:$0xff]
  %v3949 = vld [vmem:[%s4 + $0xa98] sm:$0xff]
  %v3950 = vld [vmem:[%s4 + $0xaa0] sm:$0xff]
  %v3951 = vld [vmem:[%s4 + $0xaa8] sm:$0xff]
  %v3952 = vld [vmem:[%s4 + $0xab0] sm:$0xff]
  %v3953 = vld [vmem:[%s4 + $0xab8] sm:$0xff]
  %v3954 = vld [vmem:[%s4 + $0xac0] sm:$0xff]
  %v3955 = vld [vmem:[%s4 + $0xac8] sm:$0xff]
  %v3956 = vld [vmem:[%s4 + $0xad0] sm:$0xff]
  %v3957 = vld [vmem:[%s4 + $0xad8] sm:$0xff]
  %v3958 = vld [vmem:[%s4 + $0xae0] sm:$0xff]
  %v3959 = vld [vmem:[%s4 + $0xae8] sm:$0xff]
  %v3960 = vld [vmem:[%s4 + $0xaf0] sm:$0xff]
  %v3961 = vld [vmem:[%s4 + $0xaf8] sm:$0xff]
  %v3962 = vld [vmem:[%s4 + $0xb00] sm:$0xff]
  %v3963 = vld [vmem:[%s4 + $0xb08] sm:$0xff]
  %v3964 = vld [vmem:[%s4 + $0xb10] sm:$0xff]
  %v3965 = vld [vmem:[%s4 + $0xb18] sm:$0xff]
  %v3966 = vld [vmem:[%s4 + $0xb20] sm:$0xff]
  %v3967 = vld [vmem:[%s4 + $0xb28] sm:$0xff]
  %v3968 = vld [vmem:[%s4 + $0xb30] sm:$0xff]
  %v3969 = vld [vmem:[%s4 + $0xb38] sm:$0xff]
  %v3970 = vld [vmem:[%s4 + $0xb40] sm:$0xff]
  %v3971 = vld [vmem:[%s4 + $0xb48] sm:$0xff]
  %v3972 = vld [vmem:[%s4 + $0xb50] sm:$0xff]
  %v3973 = vld [vmem:[%s4 + $0xb58] sm:$0xff]
  %v3974 = vld [vmem:[%s4 + $0xb60] sm:$0xff]
  %v3975 = vld [vmem:[%s4 + $0xb68] sm:$0xff]
  %v3976 = vld [vmem:[%s4 + $0xb70] sm:$0xff]
  %v3977 = vld [vmem:[%s4 + $0xb78] sm:$0xff]
  %v3978 = vld [vmem:[%s4 + $0xb80] sm:$0xff]
  %v3979 = vld [vmem:[%s4 + $0xb88] sm:$0xff]
  %v3980 = vld [vmem:[%s4 + $0xb90] sm:$0xff]
  %v3981 = vld [vmem:[%s4 + $0xb98] sm:$0xff]
  %v3982 = vld [vmem:[%s4 + $0xba0] sm:$0xff]
  %v3983 = vld [vmem:[%s4 + $0xba8] sm:$0xff]
  %v3984 = vld [vmem:[%s4 + $0xbb0] sm:$0xff]
  %v3985 = vld [vmem:[%s4 + $0xbb8] sm:$0xff]
  %v3986 = vld [vmem:[%s4 + $0xbc0] sm:$0xff]
  %v3987 = vld [vmem:[%s4 + $0xbc8] sm:$0xff]
  %v3988 = vld [vmem:[%s4 + $0xbd0] sm:$0xff]
  %v3989 = vld [vmem:[%s4 + $0xbd8] sm:$0xff]
  %v3990 = vld [vmem:[%s4 + $0xbe0] sm:$0xff]
  %v3991 = vld [vmem:[%s4 + $0xbe8] sm:$0xff]
  %v3992 = vld [vmem:[%s4 + $0xbf0] sm:$0xff]
  %v3993 = vld [vmem:[%s4 + $0xbf8] sm:$0xff]
  %v3994 = vld [vmem:[%s4 + $0xc00] sm:$0xff]
  %v3995 = vld [vmem:[%s4 + $0xc08] sm:$0xff]
  %v3996 = vld [vmem:[%s4 + $0xc10] sm:$0xff]
  %v3997 = vld [vmem:[%s4 + $0xc18] sm:$0xff]
  %v3998 = vld [vmem:[%s4 + $0xc20] sm:$0xff]
  %v3999 = vld [vmem:[%s4 + $0xc28] sm:$0xff]
  %v4000 = vld [vmem:[%s4 + $0xc30] sm:$0xff]
  %v4001 = vld [vmem:[%s4 + $0xc38] sm:$0xff]
  %v4002 = vadd.f32 %v3218, %v3610
  %v4003 = vadd.f32 %v3219, %v3611
  %v4004 = vadd.f32 %v3220, %v3612
  %v4005 = vadd.f32 %v3221, %v3613
  %v4006 = vadd.f32 %v3222, %v3614
  %v4007 = vadd.f32 %v3223, %v3615
  %v4008 = vadd.f32 %v3224, %v3616
  %v4009 = vadd.f32 %v3225, %v3617
  %v4010 = vadd.f32 %v3226, %v3618
  %v4011 = vadd.f32 %v3227, %v3619
  %v4012 = vadd.f32 %v3228, %v3620
  %v4013 = vadd.f32 %v3229, %v3621
  %v4014 = vadd.f32 %v3230, %v3622
  %v4015 = vadd.f32 %v3231, %v3623
  %v4016 = vadd.f32 %v3232, %v3624
  %v4017 = vadd.f32 %v3233, %v3625
  %v4018 = vadd.f32 %v3234, %v3626
  %v4019 = vadd.f32 %v3235, %v3627
  %v4020 = vadd.f32 %v3236, %v3628
  %v4021 = vadd.f32 %v3237, %v3629
  %v4022 = vadd.f32 %v3238, %v3630
  %v4023 = vadd.f32 %v3239, %v3631
  %v4024 = vadd.f32 %v3240, %v3632
  %v4025 = vadd.f32 %v3241, %v3633
  %v4026 = vadd.f32 %v3242, %v3634
  %v4027 = vadd.f32 %v3243, %v3635
  %v4028 = vadd.f32 %v3244, %v3636
  %v4029 = vadd.f32 %v3245, %v3637
  %v4030 = vadd.f32 %v3246, %v3638
  %v4031 = vadd.f32 %v3247, %v3639
  %v4032 = vadd.f32 %v3248, %v3640
  %v4033 = vadd.f32 %v3249, %v3641
  %v4034 = vadd.f32 %v3250, %v3642
  %v4035 = vadd.f32 %v3251, %v3643
  %v4036 = vadd.f32 %v3252, %v3644
  %v4037 = vadd.f32 %v3253, %v3645
  %v4038 = vadd.f32 %v3254, %v3646
  %v4039 = vadd.f32 %v3255, %v3647
  %v4040 = vadd.f32 %v3256, %v3648
  %v4041 = vadd.f32 %v3257, %v3649
  %v4042 = vadd.f32 %v3258, %v3650
  %v4043 = vadd.f32 %v3259, %v3651
  %v4044 = vadd.f32 %v3260, %v3652
  %v4045 = vadd.f32 %v3261, %v3653
  %v4046 = vadd.f32 %v3262, %v3654
  %v4047 = vadd.f32 %v3263, %v3655
  %v4048 = vadd.f32 %v3264, %v3656
  %v4049 = vadd.f32 %v3265, %v3657
  %v4050 = vadd.f32 %v3266, %v3658
  %v4051 = vadd.f32 %v3267, %v3659
  %v4052 = vadd.f32 %v3268, %v3660
  %v4053 = vadd.f32 %v3269, %v3661
  %v4054 = vadd.f32 %v3270, %v3662
  %v4055 = vadd.f32 %v3271, %v3663
  %v4056 = vadd.f32 %v3272, %v3664
  %v4057 = vadd.f32 %v3273, %v3665
  %v4058 = vadd.f32 %v3274, %v3666
  %v4059 = vadd.f32 %v3275, %v3667
  %v4060 = vadd.f32 %v3276, %v3668
  %v4061 = vadd.f32 %v3277, %v3669
  %v4062 = vadd.f32 %v3278, %v3670
  %v4063 = vadd.f32 %v3279, %v3671
  %v4064 = vadd.f32 %v3280, %v3672
  %v4065 = vadd.f32 %v3281, %v3673
  %v4066 = vadd.f32 %v3282, %v3674
  %v4067 = vadd.f32 %v3283, %v3675
  %v4068 = vadd.f32 %v3284, %v3676
  %v4069 = vadd.f32 %v3285, %v3677
  %v4070 = vadd.f32 %v3286, %v3678
  %v4071 = vadd.f32 %v3287, %v3679
  %v4072 = vadd.f32 %v3288, %v3680
  %v4073 = vadd.f32 %v3289, %v3681
  %v4074 = vadd.f32 %v3290, %v3682
  %v4075 = vadd.f32 %v3291, %v3683
  %v4076 = vadd.f32 %v3292, %v3684
  %v4077 = vadd.f32 %v3293, %v3685
  %v4078 = vadd.f32 %v3294, %v3686
  %v4079 = vadd.f32 %v3295, %v3687
  %v4080 = vadd.f32 %v3296, %v3688
  %v4081 = vadd.f32 %v3297, %v3689
  %v4082 = vadd.f32 %v3298, %v3690
  %v4083 = vadd.f32 %v3299, %v3691
  %v4084 = vadd.f32 %v3300, %v3692
  %v4085 = vadd.f32 %v3301, %v3693
  %v4086 = vadd.f32 %v3302, %v3694
  %v4087 = vadd.f32 %v3303, %v3695
  %v4088 = vadd.f32 %v3304, %v3696
  %v4089 = vadd.f32 %v3305, %v3697
  %v4090 = vadd.f32 %v3306, %v3698
  %v4091 = vadd.f32 %v3307, %v3699
  %v4092 = vadd.f32 %v3308, %v3700
  %v4093 = vadd.f32 %v3309, %v3701
  %v4094 = vadd.f32 %v3310, %v3702
  %v4095 = vadd.f32 %v3311, %v3703
  %v4096 = vadd.f32 %v3312, %v3704
  %v4097 = vadd.f32 %v3313, %v3705
  %v4098 = vadd.f32 %v3314, %v3706
  %v4099 = vadd.f32 %v3315, %v3707
  %v4100 = vadd.f32 %v3316, %v3708
  %v4101 = vadd.f32 %v3317, %v3709
  %v4102 = vadd.f32 %v3318, %v3710
  %v4103 = vadd.f32 %v3319, %v3711
  %v4104 = vadd.f32 %v3320, %v3712
  %v4105 = vadd.f32 %v3321, %v3713
  %v4106 = vadd.f32 %v3322, %v3714
  %v4107 = vadd.f32 %v3323, %v3715
  %v4108 = vadd.f32 %v3324, %v3716
  %v4109 = vadd.f32 %v3325, %v3717
  %v4110 = vadd.f32 %v3326, %v3718
  %v4111 = vadd.f32 %v3327, %v3719
  %v4112 = vadd.f32 %v3328, %v3720
  %v4113 = vadd.f32 %v3329, %v3721
  %v4114 = vadd.f32 %v3330, %v3722
  %v4115 = vadd.f32 %v3331, %v3723
  %v4116 = vadd.f32 %v3332, %v3724
  %v4117 = vadd.f32 %v3333, %v3725
  %v4118 = vadd.f32 %v3334, %v3726
  %v4119 = vadd.f32 %v3335, %v3727
  %v4120 = vadd.f32 %v3336, %v3728
  %v4121 = vadd.f32 %v3337, %v3729
  %v4122 = vadd.f32 %v3338, %v3730
  %v4123 = vadd.f32 %v3339, %v3731
  %v4124 = vadd.f32 %v3340, %v3732
  %v4125 = vadd.f32 %v3341, %v3733
  %v4126 = vadd.f32 %v3342, %v3734
  %v4127 = vadd.f32 %v3343, %v3735
  %v4128 = vadd.f32 %v3344, %v3736
  %v4129 = vadd.f32 %v3345, %v3737
  %v4130 = vadd.f32 %v3346, %v3738
  %v4131 = vadd.f32 %v3347, %v3739
  %v4132 = vadd.f32 %v3348, %v3740
  %v4133 = vadd.f32 %v3349, %v3741
  %v4134 = vadd.f32 %v3350, %v3742
  %v4135 = vadd.f32 %v3351, %v3743
  %v4136 = vadd.f32 %v3352, %v3744
  %v4137 = vadd.f32 %v3353, %v3745
  %v4138 = vadd.f32 %v3354, %v3746
  %v4139 = vadd.f32 %v3355, %v3747
  %v4140 = vadd.f32 %v3356, %v3748
  %v4141 = vadd.f32 %v3357, %v3749
  %v4142 = vadd.f32 %v3358, %v3750
  %v4143 = vadd.f32 %v3359, %v3751
  %v4144 = vadd.f32 %v3360, %v3752
  %v4145 = vadd.f32 %v3361, %v3753
  %v4146 = vadd.f32 %v3362, %v3754
  %v4147 = vadd.f32 %v3363, %v3755
  %v4148 = vadd.f32 %v3364, %v3756
  %v4149 = vadd.f32 %v3365, %v3757
  %v4150 = vadd.f32 %v3366, %v3758
  %v4151 = vadd.f32 %v3367, %v3759
  %v4152 = vadd.f32 %v3368, %v3760
  %v4153 = vadd.f32 %v3369, %v3761
  %v4154 = vadd.f32 %v3370, %v3762
  %v4155 = vadd.f32 %v3371, %v3763
  %v4156 = vadd.f32 %v3372, %v3764
  %v4157 = vadd.f32 %v3373, %v3765
  %v4158 = vadd.f32 %v3374, %v3766
  %v4159 = vadd.f32 %v3375, %v3767
  %v4160 = vadd.f32 %v3376, %v3768
  %v4161 = vadd.f32 %v3377, %v3769
  %v4162 = vadd.f32 %v3378, %v3770
  %v4163 = vadd.f32 %v3379, %v3771
  %v4164 = vadd.f32 %v3380, %v3772
  %v4165 = vadd.f32 %v3381, %v3773
  %v4166 = vadd.f32 %v3382, %v3774
  %v4167 = vadd.f32 %v3383, %v3775
  %v4168 = vadd.f32 %v3384, %v3776
  %v4169 = vadd.f32 %v3385, %v3777
  %v4170 = vadd.f32 %v3386, %v3778
  %v4171 = vadd.f32 %v3387, %v3779
  %v4172 = vadd.f32 %v3388, %v3780
  %v4173 = vadd.f32 %v3389, %v3781
  %v4174 = vadd.f32 %v3390, %v3782
  %v4175 = vadd.f32 %v3391, %v3783
  %v4176 = vadd.f32 %v3392, %v3784
  %v4177 = vadd.f32 %v3393, %v3785
  %v4178 = vadd.f32 %v3394, %v3786
  %v4179 = vadd.f32 %v3395, %v3787
  %v4180 = vadd.f32 %v3396, %v3788
  %v4181 = vadd.f32 %v3397, %v3789
  %v4182 = vadd.f32 %v3398, %v3790
  %v4183 = vadd.f32 %v3399, %v3791
  %v4184 = vadd.f32 %v3400, %v3792
  %v4185 = vadd.f32 %v3401, %v3793
  %v4186 = vadd.f32 %v3402, %v3794
  %v4187 = vadd.f32 %v3403, %v3795
  %v4188 = vadd.f32 %v3404, %v3796
  %v4189 = vadd.f32 %v3405, %v3797
  %v4190 = vadd.f32 %v3406, %v3798
  %v4191 = vadd.f32 %v3407, %v3799
  %v4192 = vadd.f32 %v3408, %v3800
  %v4193 = vadd.f32 %v3409, %v3801
  %v4194 = vadd.f32 %v3410, %v3802
  %v4195 = vadd.f32 %v3411, %v3803
  %v4196 = vadd.f32 %v3412, %v3804
  %v4197 = vadd.f32 %v3413, %v3805
  %v4198 = vadd.f32 %v3414, %v3806
  %v4199 = vadd.f32 %v3415, %v3807
  %v4200 = vadd.f32 %v3416, %v3808
  %v4201 = vadd.f32 %v3417, %v3809
  %v4202 = vadd.f32 %v3418, %v3810
  %v4203 = vadd.f32 %v3419, %v3811
  %v4204 = vadd.f32 %v3420, %v3812
  %v4205 = vadd.f32 %v3421, %v3813
  %v4206 = vadd.f32 %v3422, %v3814
  %v4207 = vadd.f32 %v3423, %v3815
  %v4208 = vadd.f32 %v3424, %v3816
  %v4209 = vadd.f32 %v3425, %v3817
  %v4210 = vadd.f32 %v3426, %v3818
  %v4211 = vadd.f32 %v3427, %v3819
  %v4212 = vadd.f32 %v3428, %v3820
  %v4213 = vadd.f32 %v3429, %v3821
  %v4214 = vadd.f32 %v3430, %v3822
  %v4215 = vadd.f32 %v3431, %v3823
  %v4216 = vadd.f32 %v3432, %v3824
  %v4217 = vadd.f32 %v3433, %v3825
  %v4218 = vadd.f32 %v3434, %v3826
  %v4219 = vadd.f32 %v3435, %v3827
  %v4220 = vadd.f32 %v3436, %v3828
  %v4221 = vadd.f32 %v3437, %v3829
  %v4222 = vadd.f32 %v3438, %v3830
  %v4223 = vadd.f32 %v3439, %v3831
  %v4224 = vadd.f32 %v3440, %v3832
  %v4225 = vadd.f32 %v3441, %v3833
  %v4226 = vadd.f32 %v3442, %v3834
  %v4227 = vadd.f32 %v3443, %v3835
  %v4228 = vadd.f32 %v3444, %v3836
  %v4229 = vadd.f32 %v3445, %v3837
  %v4230 = vadd.f32 %v3446, %v3838
  %v4231 = vadd.f32 %v3447, %v3839
  %v4232 = vadd.f32 %v3448, %v3840
  %v4233 = vadd.f32 %v3449, %v3841
  %v4234 = vadd.f32 %v3450, %v3842
  %v4235 = vadd.f32 %v3451, %v3843
  %v4236 = vadd.f32 %v3452, %v3844
  %v4237 = vadd.f32 %v3453, %v3845
  %v4238 = vadd.f32 %v3454, %v3846
  %v4239 = vadd.f32 %v3455, %v3847
  %v4240 = vadd.f32 %v3456, %v3848
  %v4241 = vadd.f32 %v3457, %v3849
  %v4242 = vadd.f32 %v3458, %v3850
  %v4243 = vadd.f32 %v3459, %v3851
  %v4244 = vadd.f32 %v3460, %v3852
  %v4245 = vadd.f32 %v3461, %v3853
  %v4246 = vadd.f32 %v3462, %v3854
  %v4247 = vadd.f32 %v3463, %v3855
  %v4248 = vadd.f32 %v3464, %v3856
  %v4249 = vadd.f32 %v3465, %v3857
  %v4250 = vadd.f32 %v3466, %v3858
  %v4251 = vadd.f32 %v3467, %v3859
  %v4252 = vadd.f32 %v3468, %v3860
  %v4253 = vadd.f32 %v3469, %v3861
  %v4254 = vadd.f32 %v3470, %v3862
  %v4255 = vadd.f32 %v3471, %v3863
  %v4256 = vadd.f32 %v3472, %v3864
  %v4257 = vadd.f32 %v3473, %v3865
  %v4258 = vadd.f32 %v3474, %v3866
  %v4259 = vadd.f32 %v3475, %v3867
  %v4260 = vadd.f32 %v3476, %v3868
  %v4261 = vadd.f32 %v3477, %v3869
  %v4262 = vadd.f32 %v3478, %v3870
  %v4263 = vadd.f32 %v3479, %v3871
  %v4264 = vadd.f32 %v3480, %v3872
  %v4265 = vadd.f32 %v3481, %v3873
  %v4266 = vadd.f32 %v3482, %v3874
  %v4267 = vadd.f32 %v3483, %v3875
  %v4268 = vadd.f32 %v3484, %v3876
  %v4269 = vadd.f32 %v3485, %v3877
  %v4270 = vadd.f32 %v3486, %v3878
  %v4271 = vadd.f32 %v3487, %v3879
  %v4272 = vadd.f32 %v3488, %v3880
  %v4273 = vadd.f32 %v3489, %v3881
  %v4274 = vadd.f32 %v3490, %v3882
  %v4275 = vadd.f32 %v3491, %v3883
  %v4276 = vadd.f32 %v3492, %v3884
  %v4277 = vadd.f32 %v3493, %v3885
  %v4278 = vadd.f32 %v3494, %v3886
  %v4279 = vadd.f32 %v3495, %v3887
  %v4280 = vadd.f32 %v3496, %v3888
  %v4281 = vadd.f32 %v3497, %v3889
  %v4282 = vadd.f32 %v3498, %v3890
  %v4283 = vadd.f32 %v3499, %v3891
  %v4284 = vadd.f32 %v3500, %v3892
  %v4285 = vadd.f32 %v3501, %v3893
  %v4286 = vadd.f32 %v3502, %v3894
  %v4287 = vadd.f32 %v3503, %v3895
  %v4288 = vadd.f32 %v3504, %v3896
  %v4289 = vadd.f32 %v3505, %v3897
  %v4290 = vadd.f32 %v3506, %v3898
  %v4291 = vadd.f32 %v3507, %v3899
  %v4292 = vadd.f32 %v3508, %v3900
  %v4293 = vadd.f32 %v3509, %v3901
  %v4294 = vadd.f32 %v3510, %v3902
  %v4295 = vadd.f32 %v3511, %v3903
  %v4296 = vadd.f32 %v3512, %v3904
  %v4297 = vadd.f32 %v3513, %v3905
  %v4298 = vadd.f32 %v3514, %v3906
  %v4299 = vadd.f32 %v3515, %v3907
  %v4300 = vadd.f32 %v3516, %v3908
  %v4301 = vadd.f32 %v3517, %v3909
  %v4302 = vadd.f32 %v3518, %v3910
  %v4303 = vadd.f32 %v3519, %v3911
  %v4304 = vadd.f32 %v3520, %v3912
  %v4305 = vadd.f32 %v3521, %v3913
  %v4306 = vadd.f32 %v3522, %v3914
  %v4307 = vadd.f32 %v3523, %v3915
  %v4308 = vadd.f32 %v3524, %v3916
  %v4309 = vadd.f32 %v3525, %v3917
  %v4310 = vadd.f32 %v3526, %v3918
  %v4311 = vadd.f32 %v3527, %v3919
  %v4312 = vadd.f32 %v3528, %v3920
  %v4313 = vadd.f32 %v3529, %v3921
  %v4314 = vadd.f32 %v3530, %v3922
  %v4315 = vadd.f32 %v3531, %v3923
  %v4316 = vadd.f32 %v3532, %v3924
  %v4317 = vadd.f32 %v3533, %v3925
  %v4318 = vadd.f32 %v3534, %v3926
  %v4319 = vadd.f32 %v3535, %v3927
  %v4320 = vadd.f32 %v3536, %v3928
  %v4321 = vadd.f32 %v3537, %v3929
  %v4322 = vadd.f32 %v3538, %v3930
  %v4323 = vadd.f32 %v3539, %v3931
  %v4324 = vadd.f32 %v3540, %v3932
  %v4325 = vadd.f32 %v3541, %v3933
  %v4326 = vadd.f32 %v3542, %v3934
  %v4327 = vadd.f32 %v3543, %v3935
  %v4328 = vadd.f32 %v3544, %v3936
  %v4329 = vadd.f32 %v3545, %v3937
  %v4330 = vadd.f32 %v3546, %v3938
  %v4331 = vadd.f32 %v3547, %v3939
  %v4332 = vadd.f32 %v3548, %v3940
  %v4333 = vadd.f32 %v3549, %v3941
  %v4334 = vadd.f32 %v3550, %v3942
  %v4335 = vadd.f32 %v3551, %v3943
  %v4336 = vadd.f32 %v3552, %v3944
  %v4337 = vadd.f32 %v3553, %v3945
  %v4338 = vadd.f32 %v3554, %v3946
  %v4339 = vadd.f32 %v3555, %v3947
  %v4340 = vadd.f32 %v3556, %v3948
  %v4341 = vadd.f32 %v3557, %v3949
  %v4342 = vadd.f32 %v3558, %v3950
  %v4343 = vadd.f32 %v3559, %v3951
  %v4344 = vadd.f32 %v3560, %v3952
  %v4345 = vadd.f32 %v3561, %v3953
  %v4346 = vadd.f32 %v3562, %v3954
  %v4347 = vadd.f32 %v3563, %v3955
  %v4348 = vadd.f32 %v3564, %v3956
  %v4349 = vadd.f32 %v3565, %v3957
  %v4350 = vadd.f32 %v3566, %v3958
  %v4351 = vadd.f32 %v3567, %v3959
  %v4352 = vadd.f32 %v3568, %v3960
  %v4353 = vadd.f32 %v3569, %v3961
  %v4354 = vadd.f32 %v3570, %v3962
  %v4355 = vadd.f32 %v3571, %v3963
  %v4356 = vadd.f32 %v3572, %v3964
  %v4357 = vadd.f32 %v3573, %v3965
  %v4358 = vadd.f32 %v3574, %v3966
  %v4359 = vadd.f32 %v3575, %v3967
  %v4360 = vadd.f32 %v3576, %v3968
  %v4361 = vadd.f32 %v3577, %v3969
  %v4362 = vadd.f32 %v3578, %v3970
  %v4363 = vadd.f32 %v3579, %v3971
  %v4364 = vadd.f32 %v3580, %v3972
  %v4365 = vadd.f32 %v3581, %v3973
  %v4366 = vadd.f32 %v3582, %v3974
  %v4367 = vadd.f32 %v3583, %v3975
  %v4368 = vadd.f32 %v3584, %v3976
  %v4369 = vadd.f32 %v3585, %v3977
  %v4370 = vadd.f32 %v3586, %v3978
  %v4371 = vadd.f32 %v3587, %v3979
  %v4372 = vadd.f32 %v3588, %v3980
  %v4373 = vadd.f32 %v3589, %v3981
  %v4374 = vadd.f32 %v3590, %v3982
  %v4375 = vadd.f32 %v3591, %v3983
  %v4376 = vadd.f32 %v3592, %v3984
  %v4377 = vadd.f32 %v3593, %v3985
  %v4378 = vadd.f32 %v3594, %v3986
  %v4379 = vadd.f32 %v3595, %v3987
  %v4380 = vadd.f32 %v3596, %v3988
  %v4381 = vadd.f32 %v3597, %v3989
  %v4382 = vadd.f32 %v3598, %v3990
  %v4383 = vadd.f32 %v3599, %v3991
  %v4384 = vadd.f32 %v3600, %v3992
  %v4385 = vadd.f32 %v3601, %v3993
  %v4386 = vadd.f32 %v3602, %v3994
  %v4387 = vadd.f32 %v3603, %v3995
  %v4388 = vadd.f32 %v3604, %v3996
  %v4389 = vadd.f32 %v3605, %v3997
  %v4390 = vadd.f32 %v3606, %v3998
  %v4391 = vadd.f32 %v3607, %v3999
  %v4392 = vadd.f32 %v3608, %v4000
  %v4393 = vadd.f32 %v3609, %v4001
  %4394 = vst [vmem:[%s5] sm:$0xff] %v4002
  %4395 = vst [vmem:[%s5 + $0x8] sm:$0xff] %v4003
  %4396 = vst [vmem:[%s5 + $0x10] sm:$0xff] %v4004
  %4397 = vst [vmem:[%s5 + $0x18] sm:$0xff] %v4005
  %4398 = vst [vmem:[%s5 + $0x20] sm:$0xff] %v4006
  %4399 = vst [vmem:[%s5 + $0x28] sm:$0xff] %v4007
  %4400 = vst [vmem:[%s5 + $0x30] sm:$0xff] %v4008
  %4401 = vst [vmem:[%s5 + $0x38] sm:$0xff] %v4009
  %4402 = vst [vmem:[%s5 + $0x40] sm:$0xff] %v4010
  %4403 = vst [vmem:[%s5 + $0x48] sm:$0xff] %v4011
  %4404 = vst [vmem:[%s5 + $0x50] sm:$0xff] %v4012
  %4405 = vst [vmem:[%s5 + $0x58] sm:$0xff] %v4013
  %4406 = vst [vmem:[%s5 + $0x60] sm:$0xff] %v4014
  %4407 = vst [vmem:[%s5 + $0x68] sm:$0xff] %v4015
  %4408 = vst [vmem:[%s5 + $0x70] sm:$0xff] %v4016
  %4409 = vst [vmem:[%s5 + $0x78] sm:$0xff] %v4017
  %4410 = vst [vmem:[%s5 + $0x80] sm:$0xff] %v4018
  %4411 = vst [vmem:[%s5 + $0x88] sm:$0xff] %v4019
  %4412 = vst [vmem:[%s5 + $0x90] sm:$0xff] %v4020
  %4413 = vst [vmem:[%s5 + $0x98] sm:$0xff] %v4021
  %4414 = vst [vmem:[%s5 + $0xa0] sm:$0xff] %v4022
  %4415 = vst [vmem:[%s5 + $0xa8] sm:$0xff] %v4023
  %4416 = vst [vmem:[%s5 + $0xb0] sm:$0xff] %v4024
  %4417 = vst [vmem:[%s5 + $0xb8] sm:$0xff] %v4025
  %4418 = vst [vmem:[%s5 + $0xc0] sm:$0xff] %v4026
  %4419 = vst [vmem:[%s5 + $0xc8] sm:$0xff] %v4027
  %4420 = vst [vmem:[%s5 + $0xd0] sm:$0xff] %v4028
  %4421 = vst [vmem:[%s5 + $0xd8] sm:$0xff] %v4029
  %4422 = vst [vmem:[%s5 + $0xe0] sm:$0xff] %v4030
  %4423 = vst [vmem:[%s5 + $0xe8] sm:$0xff] %v4031
  %4424 = vst [vmem:[%s5 + $0xf0] sm:$0xff] %v4032
  %4425 = vst [vmem:[%s5 + $0xf8] sm:$0xff] %v4033
  %4426 = vst [vmem:[%s5 + $0x100] sm:$0xff] %v4034
  %4427 = vst [vmem:[%s5 + $0x108] sm:$0xff] %v4035
  %4428 = vst [vmem:[%s5 + $0x110] sm:$0xff] %v4036
  %4429 = vst [vmem:[%s5 + $0x118] sm:$0xff] %v4037
  %4430 = vst [vmem:[%s5 + $0x120] sm:$0xff] %v4038
  %4431 = vst [vmem:[%s5 + $0x128] sm:$0xff] %v4039
  %4432 = vst [vmem:[%s5 + $0x130] sm:$0xff] %v4040
  %4433 = vst [vmem:[%s5 + $0x138] sm:$0xff] %v4041
  %4434 = vst [vmem:[%s5 + $0x140] sm:$0xff] %v4042
  %4435 = vst [vmem:[%s5 + $0x148] sm:$0xff] %v4043
  %4436 = vst [vmem:[%s5 + $0x150] sm:$0xff] %v4044
  %4437 = vst [vmem:[%s5 + $0x158] sm:$0xff] %v4045
  %4438 = vst [vmem:[%s5 + $0x160] sm:$0xff] %v4046
  %4439 = vst [vmem:[%s5 + $0x168] sm:$0xff] %v4047
  %4440 = vst [vmem:[%s5 + $0x170] sm:$0xff] %v4048
  %4441 = vst [vmem:[%s5 + $0x178] sm:$0xff] %v4049
  %4442 = vst [vmem:[%s5 + $0x180] sm:$0xff] %v4050
  %4443 = vst [vmem:[%s5 + $0x188] sm:$0xff] %v4051
  %4444 = vst [vmem:[%s5 + $0x190] sm:$0xff] %v4052
  %4445 = vst [vmem:[%s5 + $0x198] sm:$0xff] %v4053
  %4446 = vst [vmem:[%s5 + $0x1a0] sm:$0xff] %v4054
  %4447 = vst [vmem:[%s5 + $0x1a8] sm:$0xff] %v4055
  %4448 = vst [vmem:[%s5 + $0x1b0] sm:$0xff] %v4056
  %4449 = vst [vmem:[%s5 + $0x1b8] sm:$0xff] %v4057
  %4450 = vst [vmem:[%s5 + $0x1c0] sm:$0xff] %v4058
  %4451 = vst [vmem:[%s5 + $0x1c8] sm:$0xff] %v4059
  %4452 = vst [vmem:[%s5 + $0x1d0] sm:$0xff] %v4060
  %4453 = vst [vmem:[%s5 + $0x1d8] sm:$0xff] %v4061
  %4454 = vst [vmem:[%s5 + $0x1e0] sm:$0xff] %v4062
  %4455 = vst [vmem:[%s5 + $0x1e8] sm:$0xff] %v4063
  %4456 = vst [vmem:[%s5 + $0x1f0] sm:$0xff] %v4064
  %4457 = vst [vmem:[%s5 + $0x1f8] sm:$0xff] %v4065
  %4458 = vst [vmem:[%s5 + $0x200] sm:$0xff] %v4066
  %4459 = vst [vmem:[%s5 + $0x208] sm:$0xff] %v4067
  %4460 = vst [vmem:[%s5 + $0x210] sm:$0xff] %v4068
  %4461 = vst [vmem:[%s5 + $0x218] sm:$0xff] %v4069
  %4462 = vst [vmem:[%s5 + $0x220] sm:$0xff] %v4070
  %4463 = vst [vmem:[%s5 + $0x228] sm:$0xff] %v4071
  %4464 = vst [vmem:[%s5 + $0x230] sm:$0xff] %v4072
  %4465 = vst [vmem:[%s5 + $0x238] sm:$0xff] %v4073
  %4466 = vst [vmem:[%s5 + $0x240] sm:$0xff] %v4074
  %4467 = vst [vmem:[%s5 + $0x248] sm:$0xff] %v4075
  %4468 = vst [vmem:[%s5 + $0x250] sm:$0xff] %v4076
  %4469 = vst [vmem:[%s5 + $0x258] sm:$0xff] %v4077
  %4470 = vst [vmem:[%s5 + $0x260] sm:$0xff] %v4078
  %4471 = vst [vmem:[%s5 + $0x268] sm:$0xff] %v4079
  %4472 = vst [vmem:[%s5 + $0x270] sm:$0xff] %v4080
  %4473 = vst [vmem:[%s5 + $0x278] sm:$0xff] %v4081
  %4474 = vst [vmem:[%s5 + $0x280] sm:$0xff] %v4082
  %4475 = vst [vmem:[%s5 + $0x288] sm:$0xff] %v4083
  %4476 = vst [vmem:[%s5 + $0x290] sm:$0xff] %v4084
  %4477 = vst [vmem:[%s5 + $0x298] sm:$0xff] %v4085
  %4478 = vst [vmem:[%s5 + $0x2a0] sm:$0xff] %v4086
  %4479 = vst [vmem:[%s5 + $0x2a8] sm:$0xff] %v4087
  %4480 = vst [vmem:[%s5 + $0x2b0] sm:$0xff] %v4088
  %4481 = vst [vmem:[%s5 + $0x2b8] sm:$0xff] %v4089
  %4482 = vst [vmem:[%s5 + $0x2c0] sm:$0xff] %v4090
  %4483 = vst [vmem:[%s5 + $0x2c8] sm:$0xff] %v4091
  %4484 = vst [vmem:[%s5 + $0x2d0] sm:$0xff] %v4092
  %4485 = vst [vmem:[%s5 + $0x2d8] sm:$0xff] %v4093
  %4486 = vst [vmem:[%s5 + $0x2e0] sm:$0xff] %v4094
  %4487 = vst [vmem:[%s5 + $0x2e8] sm:$0xff] %v4095
  %4488 = vst [vmem:[%s5 + $0x2f0] sm:$0xff] %v4096
  %4489 = vst [vmem:[%s5 + $0x2f8] sm:$0xff] %v4097
  %4490 = vst [vmem:[%s5 + $0x300] sm:$0xff] %v4098
  %4491 = vst [vmem:[%s5 + $0x308] sm:$0xff] %v4099
  %4492 = vst [vmem:[%s5 + $0x310] sm:$0xff] %v4100
  %4493 = vst [vmem:[%s5 + $0x318] sm:$0xff] %v4101
  %4494 = vst [vmem:[%s5 + $0x320] sm:$0xff] %v4102
  %4495 = vst [vmem:[%s5 + $0x328] sm:$0xff] %v4103
  %4496 = vst [vmem:[%s5 + $0x330] sm:$0xff] %v4104
  %4497 = vst [vmem:[%s5 + $0x338] sm:$0xff] %v4105
  %4498 = vst [vmem:[%s5 + $0x340] sm:$0xff] %v4106
  %4499 = vst [vmem:[%s5 + $0x348] sm:$0xff] %v4107
  %4500 = vst [vmem:[%s5 + $0x350] sm:$0xff] %v4108
  %4501 = vst [vmem:[%s5 + $0x358] sm:$0xff] %v4109
  %4502 = vst [vmem:[%s5 + $0x360] sm:$0xff] %v4110
  %4503 = vst [vmem:[%s5 + $0x368] sm:$0xff] %v4111
  %4504 = vst [vmem:[%s5 + $0x370] sm:$0xff] %v4112
  %4505 = vst [vmem:[%s5 + $0x378] sm:$0xff] %v4113
  %4506 = vst [vmem:[%s5 + $0x380] sm:$0xff] %v4114
  %4507 = vst [vmem:[%s5 + $0x388] sm:$0xff] %v4115
  %4508 = vst [vmem:[%s5 + $0x390] sm:$0xff] %v4116
  %4509 = vst [vmem:[%s5 + $0x398] sm:$0xff] %v4117
  %4510 = vst [vmem:[%s5 + $0x3a0] sm:$0xff] %v4118
  %4511 = vst [vmem:[%s5 + $0x3a8] sm:$0xff] %v4119
  %4512 = vst [vmem:[%s5 + $0x3b0] sm:$0xff] %v4120
  %4513 = vst [vmem:[%s5 + $0x3b8] sm:$0xff] %v4121
  %4514 = vst [vmem:[%s5 + $0x3c0] sm:$0xff] %v4122
  %4515 = vst [vmem:[%s5 + $0x3c8] sm:$0xff] %v4123
  %4516 = vst [vmem:[%s5 + $0x3d0] sm:$0xff] %v4124
  %4517 = vst [vmem:[%s5 + $0x3d8] sm:$0xff] %v4125
  %4518 = vst [vmem:[%s5 + $0x3e0] sm:$0xff] %v4126
  %4519 = vst [vmem:[%s5 + $0x3e8] sm:$0xff] %v4127
  %4520 = vst [vmem:[%s5 + $0x3f0] sm:$0xff] %v4128
  %4521 = vst [vmem:[%s5 + $0x3f8] sm:$0xff] %v4129
  %4522 = vst [vmem:[%s5 + $0x400] sm:$0xff] %v4130
  %4523 = vst [vmem:[%s5 + $0x408] sm:$0xff] %v4131
  %4524 = vst [vmem:[%s5 + $0x410] sm:$0xff] %v4132
  %4525 = vst [vmem:[%s5 + $0x418] sm:$0xff] %v4133
  %4526 = vst [vmem:[%s5 + $0x420] sm:$0xff] %v4134
  %4527 = vst [vmem:[%s5 + $0x428] sm:$0xff] %v4135
  %4528 = vst [vmem:[%s5 + $0x430] sm:$0xff] %v4136
  %4529 = vst [vmem:[%s5 + $0x438] sm:$0xff] %v4137
  %4530 = vst [vmem:[%s5 + $0x440] sm:$0xff] %v4138
  %4531 = vst [vmem:[%s5 + $0x448] sm:$0xff] %v4139
  %4532 = vst [vmem:[%s5 + $0x450] sm:$0xff] %v4140
  %4533 = vst [vmem:[%s5 + $0x458] sm:$0xff] %v4141
  %4534 = vst [vmem:[%s5 + $0x460] sm:$0xff] %v4142
  %4535 = vst [vmem:[%s5 + $0x468] sm:$0xff] %v4143
  %4536 = vst [vmem:[%s5 + $0x470] sm:$0xff] %v4144
  %4537 = vst [vmem:[%s5 + $0x478] sm:$0xff] %v4145
  %4538 = vst [vmem:[%s5 + $0x480] sm:$0xff] %v4146
  %4539 = vst [vmem:[%s5 + $0x488] sm:$0xff] %v4147
  %4540 = vst [vmem:[%s5 + $0x490] sm:$0xff] %v4148
  %4541 = vst [vmem:[%s5 + $0x498] sm:$0xff] %v4149
  %4542 = vst [vmem:[%s5 + $0x4a0] sm:$0xff] %v4150
  %4543 = vst [vmem:[%s5 + $0x4a8] sm:$0xff] %v4151
  %4544 = vst [vmem:[%s5 + $0x4b0] sm:$0xff] %v4152
  %4545 = vst [vmem:[%s5 + $0x4b8] sm:$0xff] %v4153
  %4546 = vst [vmem:[%s5 + $0x4c0] sm:$0xff] %v4154
  %4547 = vst [vmem:[%s5 + $0x4c8] sm:$0xff] %v4155
  %4548 = vst [vmem:[%s5 + $0x4d0] sm:$0xff] %v4156
  %4549 = vst [vmem:[%s5 + $0x4d8] sm:$0xff] %v4157
  %4550 = vst [vmem:[%s5 + $0x4e0] sm:$0xff] %v4158
  %4551 = vst [vmem:[%s5 + $0x4e8] sm:$0xff] %v4159
  %4552 = vst [vmem:[%s5 + $0x4f0] sm:$0xff] %v4160
  %4553 = vst [vmem:[%s5 + $0x4f8] sm:$0xff] %v4161
  %4554 = vst [vmem:[%s5 + $0x500] sm:$0xff] %v4162
  %4555 = vst [vmem:[%s5 + $0x508] sm:$0xff] %v4163
  %4556 = vst [vmem:[%s5 + $0x510] sm:$0xff] %v4164
  %4557 = vst [vmem:[%s5 + $0x518] sm:$0xff] %v4165
  %4558 = vst [vmem:[%s5 + $0x520] sm:$0xff] %v4166
  %4559 = vst [vmem:[%s5 + $0x528] sm:$0xff] %v4167
  %4560 = vst [vmem:[%s5 + $0x530] sm:$0xff] %v4168
  %4561 = vst [vmem:[%s5 + $0x538] sm:$0xff] %v4169
  %4562 = vst [vmem:[%s5 + $0x540] sm:$0xff] %v4170
  %4563 = vst [vmem:[%s5 + $0x548] sm:$0xff] %v4171
  %4564 = vst [vmem:[%s5 + $0x550] sm:$0xff] %v4172
  %4565 = vst [vmem:[%s5 + $0x558] sm:$0xff] %v4173
  %4566 = vst [vmem:[%s5 + $0x560] sm:$0xff] %v4174
  %4567 = vst [vmem:[%s5 + $0x568] sm:$0xff] %v4175
  %4568 = vst [vmem:[%s5 + $0x570] sm:$0xff] %v4176
  %4569 = vst [vmem:[%s5 + $0x578] sm:$0xff] %v4177
  %4570 = vst [vmem:[%s5 + $0x580] sm:$0xff] %v4178
  %4571 = vst [vmem:[%s5 + $0x588] sm:$0xff] %v4179
  %4572 = vst [vmem:[%s5 + $0x590] sm:$0xff] %v4180
  %4573 = vst [vmem:[%s5 + $0x598] sm:$0xff] %v4181
  %4574 = vst [vmem:[%s5 + $0x5a0] sm:$0xff] %v4182
  %4575 = vst [vmem:[%s5 + $0x5a8] sm:$0xff] %v4183
  %4576 = vst [vmem:[%s5 + $0x5b0] sm:$0xff] %v4184
  %4577 = vst [vmem:[%s5 + $0x5b8] sm:$0xff] %v4185
  %4578 = vst [vmem:[%s5 + $0x5c0] sm:$0xff] %v4186
  %4579 = vst [vmem:[%s5 + $0x5c8] sm:$0xff] %v4187
  %4580 = vst [vmem:[%s5 + $0x5d0] sm:$0xff] %v4188
  %4581 = vst [vmem:[%s5 + $0x5d8] sm:$0xff] %v4189
  %4582 = vst [vmem:[%s5 + $0x5e0] sm:$0xff] %v4190
  %4583 = vst [vmem:[%s5 + $0x5e8] sm:$0xff] %v4191
  %4584 = vst [vmem:[%s5 + $0x5f0] sm:$0xff] %v4192
  %4585 = vst [vmem:[%s5 + $0x5f8] sm:$0xff] %v4193
  %4586 = vst [vmem:[%s5 + $0x600] sm:$0xff] %v4194
  %4587 = vst [vmem:[%s5 + $0x608] sm:$0xff] %v4195
  %4588 = vst [vmem:[%s5 + $0x610] sm:$0xff] %v4196
  %4589 = vst [vmem:[%s5 + $0x618] sm:$0xff] %v4197
  %4590 = vst [vmem:[%s5 + $0x620] sm:$0xff] %v4198
  %4591 = vst [vmem:[%s5 + $0x628] sm:$0xff] %v4199
  %4592 = vst [vmem:[%s5 + $0x630] sm:$0xff] %v4200
  %4593 = vst [vmem:[%s5 + $0x638] sm:$0xff] %v4201
  %4594 = vst [vmem:[%s5 + $0x640] sm:$0xff] %v4202
  %4595 = vst [vmem:[%s5 + $0x648] sm:$0xff] %v4203
  %4596 = vst [vmem:[%s5 + $0x650] sm:$0xff] %v4204
  %4597 = vst [vmem:[%s5 + $0x658] sm:$0xff] %v4205
  %4598 = vst [vmem:[%s5 + $0x660] sm:$0xff] %v4206
  %4599 = vst [vmem:[%s5 + $0x668] sm:$0xff] %v4207
  %4600 = vst [vmem:[%s5 + $0x670] sm:$0xff] %v4208
  %4601 = vst [vmem:[%s5 + $0x678] sm:$0xff] %v4209
  %4602 = vst [vmem:[%s5 + $0x680] sm:$0xff] %v4210
  %4603 = vst [vmem:[%s5 + $0x688] sm:$0xff] %v4211
  %4604 = vst [vmem:[%s5 + $0x690] sm:$0xff] %v4212
  %4605 = vst [vmem:[%s5 + $0x698] sm:$0xff] %v4213
  %4606 = vst [vmem:[%s5 + $0x6a0] sm:$0xff] %v4214
  %4607 = vst [vmem:[%s5 + $0x6a8] sm:$0xff] %v4215
  %4608 = vst [vmem:[%s5 + $0x6b0] sm:$0xff] %v4216
  %4609 = vst [vmem:[%s5 + $0x6b8] sm:$0xff] %v4217
  %4610 = vst [vmem:[%s5 + $0x6c0] sm:$0xff] %v4218
  %4611 = vst [vmem:[%s5 + $0x6c8] sm:$0xff] %v4219
  %4612 = vst [vmem:[%s5 + $0x6d0] sm:$0xff] %v4220
  %4613 = vst [vmem:[%s5 + $0x6d8] sm:$0xff] %v4221
  %4614 = vst [vmem:[%s5 + $0x6e0] sm:$0xff] %v4222
  %4615 = vst [vmem:[%s5 + $0x6e8] sm:$0xff] %v4223
  %4616 = vst [vmem:[%s5 + $0x6f0] sm:$0xff] %v4224
  %4617 = vst [vmem:[%s5 + $0x6f8] sm:$0xff] %v4225
  %4618 = vst [vmem:[%s5 + $0x700] sm:$0xff] %v4226
  %4619 = vst [vmem:[%s5 + $0x708] sm:$0xff] %v4227
  %4620 = vst [vmem:[%s5 + $0x710] sm:$0xff] %v4228
  %4621 = vst [vmem:[%s5 + $0x718] sm:$0xff] %v4229
  %4622 = vst [vmem:[%s5 + $0x720] sm:$0xff] %v4230
  %4623 = vst [vmem:[%s5 + $0x728] sm:$0xff] %v4231
  %4624 = vst [vmem:[%s5 + $0x730] sm:$0xff] %v4232
  %4625 = vst [vmem:[%s5 + $0x738] sm:$0xff] %v4233
  %4626 = vst [vmem:[%s5 + $0x740] sm:$0xff] %v4234
  %4627 = vst [vmem:[%s5 + $0x748] sm:$0xff] %v4235
  %4628 = vst [vmem:[%s5 + $0x750] sm:$0xff] %v4236
  %4629 = vst [vmem:[%s5 + $0x758] sm:$0xff] %v4237
  %4630 = vst [vmem:[%s5 + $0x760] sm:$0xff] %v4238
  %4631 = vst [vmem:[%s5 + $0x768] sm:$0xff] %v4239
  %4632 = vst [vmem:[%s5 + $0x770] sm:$0xff] %v4240
  %4633 = vst [vmem:[%s5 + $0x778] sm:$0xff] %v4241
  %4634 = vst [vmem:[%s5 + $0x780] sm:$0xff] %v4242
  %4635 = vst [vmem:[%s5 + $0x788] sm:$0xff] %v4243
  %4636 = vst [vmem:[%s5 + $0x790] sm:$0xff] %v4244
  %4637 = vst [vmem:[%s5 + $0x798] sm:$0xff] %v4245
  %4638 = vst [vmem:[%s5 + $0x7a0] sm:$0xff] %v4246
  %4639 = vst [vmem:[%s5 + $0x7a8] sm:$0xff] %v4247
  %4640 = vst [vmem:[%s5 + $0x7b0] sm:$0xff] %v4248
  %4641 = vst [vmem:[%s5 + $0x7b8] sm:$0xff] %v4249
  %4642 = vst [vmem:[%s5 + $0x7c0] sm:$0xff] %v4250
  %4643 = vst [vmem:[%s5 + $0x7c8] sm:$0xff] %v4251
  %4644 = vst [vmem:[%s5 + $0x7d0] sm:$0xff] %v4252
  %4645 = vst [vmem:[%s5 + $0x7d8] sm:$0xff] %v4253
  %4646 = vst [vmem:[%s5 + $0x7e0] sm:$0xff] %v4254
  %4647 = vst [vmem:[%s5 + $0x7e8] sm:$0xff] %v4255
  %4648 = vst [vmem:[%s5 + $0x7f0] sm:$0xff] %v4256
  %4649 = vst [vmem:[%s5 + $0x7f8] sm:$0xff] %v4257
  %4650 = vst [vmem:[%s5 + $0x800] sm:$0xff] %v4258
  %4651 = vst [vmem:[%s5 + $0x808] sm:$0xff] %v4259
  %4652 = vst [vmem:[%s5 + $0x810] sm:$0xff] %v4260
  %4653 = vst [vmem:[%s5 + $0x818] sm:$0xff] %v4261
  %4654 = vst [vmem:[%s5 + $0x820] sm:$0xff] %v4262
  %4655 = vst [vmem:[%s5 + $0x828] sm:$0xff] %v4263
  %4656 = vst [vmem:[%s5 + $0x830] sm:$0xff] %v4264
  %4657 = vst [vmem:[%s5 + $0x838] sm:$0xff] %v4265
  %4658 = vst [vmem:[%s5 + $0x840] sm:$0xff] %v4266
  %4659 = vst [vmem:[%s5 + $0x848] sm:$0xff] %v4267
  %4660 = vst [vmem:[%s5 + $0x850] sm:$0xff] %v4268
  %4661 = vst [vmem:[%s5 + $0x858] sm:$0xff] %v4269
  %4662 = vst [vmem:[%s5 + $0x860] sm:$0xff] %v4270
  %4663 = vst [vmem:[%s5 + $0x868] sm:$0xff] %v4271
  %4664 = vst [vmem:[%s5 + $0x870] sm:$0xff] %v4272
  %4665 = vst [vmem:[%s5 + $0x878] sm:$0xff] %v4273
  %4666 = vst [vmem:[%s5 + $0x880] sm:$0xff] %v4274
  %4667 = vst [vmem:[%s5 + $0x888] sm:$0xff] %v4275
  %4668 = vst [vmem:[%s5 + $0x890] sm:$0xff] %v4276
  %4669 = vst [vmem:[%s5 + $0x898] sm:$0xff] %v4277
  %4670 = vst [vmem:[%s5 + $0x8a0] sm:$0xff] %v4278
  %4671 = vst [vmem:[%s5 + $0x8a8] sm:$0xff] %v4279
  %4672 = vst [vmem:[%s5 + $0x8b0] sm:$0xff] %v4280
  %4673 = vst [vmem:[%s5 + $0x8b8] sm:$0xff] %v4281
  %4674 = vst [vmem:[%s5 + $0x8c0] sm:$0xff] %v4282
  %4675 = vst [vmem:[%s5 + $0x8c8] sm:$0xff] %v4283
  %4676 = vst [vmem:[%s5 + $0x8d0] sm:$0xff] %v4284
  %4677 = vst [vmem:[%s5 + $0x8d8] sm:$0xff] %v4285
  %4678 = vst [vmem:[%s5 + $0x8e0] sm:$0xff] %v4286
  %4679 = vst [vmem:[%s5 + $0x8e8] sm:$0xff] %v4287
  %4680 = vst [vmem:[%s5 + $0x8f0] sm:$0xff] %v4288
  %4681 = vst [vmem:[%s5 + $0x8f8] sm:$0xff] %v4289
  %4682 = vst [vmem:[%s5 + $0x900] sm:$0xff] %v4290
  %4683 = vst [vmem:[%s5 + $0x908] sm:$0xff] %v4291
  %4684 = vst [vmem:[%s5 + $0x910] sm:$0xff] %v4292
  %4685 = vst [vmem:[%s5 + $0x918] sm:$0xff] %v4293
  %4686 = vst [vmem:[%s5 + $0x920] sm:$0xff] %v4294
  %4687 = vst [vmem:[%s5 + $0x928] sm:$0xff] %v4295
  %4688 = vst [vmem:[%s5 + $0x930] sm:$0xff] %v4296
  %4689 = vst [vmem:[%s5 + $0x938] sm:$0xff] %v4297
  %4690 = vst [vmem:[%s5 + $0x940] sm:$0xff] %v4298
  %4691 = vst [vmem:[%s5 + $0x948] sm:$0xff] %v4299
  %4692 = vst [vmem:[%s5 + $0x950] sm:$0xff] %v4300
  %4693 = vst [vmem:[%s5 + $0x958] sm:$0xff] %v4301
  %4694 = vst [vmem:[%s5 + $0x960] sm:$0xff] %v4302
  %4695 = vst [vmem:[%s5 + $0x968] sm:$0xff] %v4303
  %4696 = vst [vmem:[%s5 + $0x970] sm:$0xff] %v4304
  %4697 = vst [vmem:[%s5 + $0x978] sm:$0xff] %v4305
  %4698 = vst [vmem:[%s5 + $0x980] sm:$0xff] %v4306
  %4699 = vst [vmem:[%s5 + $0x988] sm:$0xff] %v4307
  %4700 = vst [vmem:[%s5 + $0x990] sm:$0xff] %v4308
  %4701 = vst [vmem:[%s5 + $0x998] sm:$0xff] %v4309
  %4702 = vst [vmem:[%s5 + $0x9a0] sm:$0xff] %v4310
  %4703 = vst [vmem:[%s5 + $0x9a8] sm:$0xff] %v4311
  %4704 = vst [vmem:[%s5 + $0x9b0] sm:$0xff] %v4312
  %4705 = vst [vmem:[%s5 + $0x9b8] sm:$0xff] %v4313
  %4706 = vst [vmem:[%s5 + $0x9c0] sm:$0xff] %v4314
  %4707 = vst [vmem:[%s5 + $0x9c8] sm:$0xff] %v4315
  %4708 = vst [vmem:[%s5 + $0x9d0] sm:$0xff] %v4316
  %4709 = vst [vmem:[%s5 + $0x9d8] sm:$0xff] %v4317
  %4710 = vst [vmem:[%s5 + $0x9e0] sm:$0xff] %v4318
  %4711 = vst [vmem:[%s5 + $0x9e8] sm:$0xff] %v4319
  %4712 = vst [vmem:[%s5 + $0x9f0] sm:$0xff] %v4320
  %4713 = vst [vmem:[%s5 + $0x9f8] sm:$0xff] %v4321
  %4714 = vst [vmem:[%s5 + $0xa00] sm:$0xff] %v4322
  %4715 = vst [vmem:[%s5 + $0xa08] sm:$0xff] %v4323
  %4716 = vst [vmem:[%s5 + $0xa10] sm:$0xff] %v4324
  %4717 = vst [vmem:[%s5 + $0xa18] sm:$0xff] %v4325
  %4718 = vst [vmem:[%s5 + $0xa20] sm:$0xff] %v4326
  %4719 = vst [vmem:[%s5 + $0xa28] sm:$0xff] %v4327
  %4720 = vst [vmem:[%s5 + $0xa30] sm:$0xff] %v4328
  %4721 = vst [vmem:[%s5 + $0xa38] sm:$0xff] %v4329
  %4722 = vst [vmem:[%s5 + $0xa40] sm:$0xff] %v4330
  %4723 = vst [vmem:[%s5 + $0xa48] sm:$0xff] %v4331
  %4724 = vst [vmem:[%s5 + $0xa50] sm:$0xff] %v4332
  %4725 = vst [vmem:[%s5 + $0xa58] sm:$0xff] %v4333
  %4726 = vst [vmem:[%s5 + $0xa60] sm:$0xff] %v4334
  %4727 = vst [vmem:[%s5 + $0xa68] sm:$0xff] %v4335
  %4728 = vst [vmem:[%s5 + $0xa70] sm:$0xff] %v4336
  %4729 = vst [vmem:[%s5 + $0xa78] sm:$0xff] %v4337
  %4730 = vst [vmem:[%s5 + $0xa80] sm:$0xff] %v4338
  %4731 = vst [vmem:[%s5 + $0xa88] sm:$0xff] %v4339
  %4732 = vst [vmem:[%s5 + $0xa90] sm:$0xff] %v4340
  %4733 = vst [vmem:[%s5 + $0xa98] sm:$0xff] %v4341
  %4734 = vst [vmem:[%s5 + $0xaa0] sm:$0xff] %v4342
  %4735 = vst [vmem:[%s5 + $0xaa8] sm:$0xff] %v4343
  %4736 = vst [vmem:[%s5 + $0xab0] sm:$0xff] %v4344
  %4737 = vst [vmem:[%s5 + $0xab8] sm:$0xff] %v4345
  %4738 = vst [vmem:[%s5 + $0xac0] sm:$0xff] %v4346
  %4739 = vst [vmem:[%s5 + $0xac8] sm:$0xff] %v4347
  %4740 = vst [vmem:[%s5 + $0xad0] sm:$0xff] %v4348
  %4741 = vst [vmem:[%s5 + $0xad8] sm:$0xff] %v4349
  %4742 = vst [vmem:[%s5 + $0xae0] sm:$0xff] %v4350
  %4743 = vst [vmem:[%s5 + $0xae8] sm:$0xff] %v4351
  %4744 = vst [vmem:[%s5 + $0xaf0] sm:$0xff] %v4352
  %4745 = vst [vmem:[%s5 + $0xaf8] sm:$0xff] %v4353
  %4746 = vst [vmem:[%s5 + $0xb00] sm:$0xff] %v4354
  %4747 = vst [vmem:[%s5 + $0xb08] sm:$0xff] %v4355
  %4748 = vst [vmem:[%s5 + $0xb10] sm:$0xff] %v4356
  %4749 = vst [vmem:[%s5 + $0xb18] sm:$0xff] %v4357
  %4750 = vst [vmem:[%s5 + $0xb20] sm:$0xff] %v4358
  %4751 = vst [vmem:[%s5 + $0xb28] sm:$0xff] %v4359
  %4752 = vst [vmem:[%s5 + $0xb30] sm:$0xff] %v4360
  %4753 = vst [vmem:[%s5 + $0xb38] sm:$0xff] %v4361
  %4754 = vst [vmem:[%s5 + $0xb40] sm:$0xff] %v4362
  %4755 = vst [vmem:[%s5 + $0xb48] sm:$0xff] %v4363
  %4756 = vst [vmem:[%s5 + $0xb50] sm:$0xff] %v4364
  %4757 = vst [vmem:[%s5 + $0xb58] sm:$0xff] %v4365
  %4758 = vst [vmem:[%s5 + $0xb60] sm:$0xff] %v4366
  %4759 = vst [vmem:[%s5 + $0xb68] sm:$0xff] %v4367
  %4760 = vst [vmem:[%s5 + $0xb70] sm:$0xff] %v4368
  %4761 = vst [vmem:[%s5 + $0xb78] sm:$0xff] %v4369
  %4762 = vst [vmem:[%s5 + $0xb80] sm:$0xff] %v4370
  %4763 = vst [vmem:[%s5 + $0xb88] sm:$0xff] %v4371
  %4764 = vst [vmem:[%s5 + $0xb90] sm:$0xff] %v4372
  %4765 = vst [vmem:[%s5 + $0xb98] sm:$0xff] %v4373
  %4766 = vst [vmem:[%s5 + $0xba0] sm:$0xff] %v4374
  %4767 = vst [vmem:[%s5 + $0xba8] sm:$0xff] %v4375
  %4768 = vst [vmem:[%s5 + $0xbb0] sm:$0xff] %v4376
  %4769 = vst [vmem:[%s5 + $0xbb8] sm:$0xff] %v4377
  %4770 = vst [vmem:[%s5 + $0xbc0] sm:$0xff] %v4378
  %4771 = vst [vmem:[%s5 + $0xbc8] sm:$0xff] %v4379
  %4772 = vst [vmem:[%s5 + $0xbd0] sm:$0xff] %v4380
  %4773 = vst [vmem:[%s5 + $0xbd8] sm:$0xff] %v4381
  %4774 = vst [vmem:[%s5 + $0xbe0] sm:$0xff] %v4382
  %4775 = vst [vmem:[%s5 + $0xbe8] sm:$0xff] %v4383
  %4776 = vst [vmem:[%s5 + $0xbf0] sm:$0xff] %v4384
  %4777 = vst [vmem:[%s5 + $0xbf8] sm:$0xff] %v4385
  %4778 = vst [vmem:[%s5 + $0xc00] sm:$0xff] %v4386
  %4779 = vst [vmem:[%s5 + $0xc08] sm:$0xff] %v4387
  %4780 = vst [vmem:[%s5 + $0xc10] sm:$0xff] %v4388
  %4781 = vst [vmem:[%s5 + $0xc18] sm:$0xff] %v4389
  %4782 = vst [vmem:[%s5 + $0xc20] sm:$0xff] %v4390
  %4783 = vst [vmem:[%s5 + $0xc28] sm:$0xff] %v4391
  %4784 = vst [vmem:[%s5 + $0xc30] sm:$0xff] %v4392
  %4785 = vst [vmem:[%s5 + $0xc38] sm:$0xff] %v4393
  // Predicated region
  $region22: #{conv1x1_bn_add.1} parent=0 // pred_check
    _
  $region23: #{conv1x1_bn_add.1} parent=0 // pred_check_branch
    %4787 = sbr.rel (0) target = $region25
  $region24: #{conv1x1_bn_add.1} parent=0 // pred_region
    _
  $region25: #{conv1x1_bn_add.1} parent=0 // pred_fallthru
    _
  // Predicated region
  $region26: #{conv1x1_bn_add.1} parent=0 // pred_check
    _
  $region27: #{conv1x1_bn_add.1} parent=0 // pred_check_branch
    %4789 = sbr.rel (0) target = $region29
  $region28: #{conv1x1_bn_add.1} parent=0 // pred_region
    _
  $region29: #{conv1x1_bn_add.1} parent=0 // pred_fallthru
    _

</llo_original>
